<compile_context>
chip_gen: v6e
topology: v6e:2x2x1
jax: 0.10.0
libtpu: 0.0.40
codegen_flags: <defaults>
</compile_context>

<pallas_src>
import jax
import jax.numpy as jnp
from jax import lax
from jax.experimental import pallas as pl
from jax.experimental.pallas import tpu as pltpu


# ----------------------------------------------------------------------------
# 3x3 conv + folded BN + ReLU over a zero-padded VMEM tile.
# ----------------------------------------------------------------------------
def _conv3x3_bn_relu(xp, w_flat, scale, shift):
    """3x3 'valid' conv over a zero-padded bf16 tile with folded BN + ReLU.

    xp:       (R+2, W+2, C) bf16   zero-padded input tile
    w_flat:   (9*C, Cout)   bf16   weights flattened in (dh, dw, c) order
    scale/shift: (1, Cout)  f32
    returns:  (R, W, Cout)  f32
    """
    r = xp.shape[0] - 2
    w = xp.shape[1] - 2
    c = xp.shape[2]
    cout = w_flat.shape[1]
    if c >= 128:
        # Per-tap accumulation: identical MXU work (K=C already fills the MXU)
        # but no 9x patches buffer and no lane-axis concat.
        acc = jnp.zeros((r * w, cout), jnp.float32)
        for dh in range(3):
            for dw in range(3):
                tap = xp[dh:dh + r, dw:dw + w, :].reshape(r * w, c)
                k0 = (dh * 3 + dw) * c
                acc = acc + jnp.dot(tap, w_flat[k0:k0 + c, :],
                                    preferred_element_type=jnp.float32)
    else:
        # Small C: im2col so the single matmul has K = 9*C.
        cols = [xp[dh:dh + r, dw:dw + w, :].reshape(r * w, c)
                for dh in range(3) for dw in range(3)]
        patches = jnp.concatenate(cols, axis=-1)                # (R*W, 9*C) bf16
        acc = jnp.dot(patches, w_flat, preferred_element_type=jnp.float32)
    y = jnp.maximum(acc * scale + shift, 0.0)
    return y.reshape(r, w, cout)


# ----------------------------------------------------------------------------
# Fused kernel: ConvTranspose2d(2,2) + crop-concat + pad + DoubleConv.
# ----------------------------------------------------------------------------
def _up_double_conv_kernel(xr_ref, x2_ref, wup_ref, bup_ref,
                           w1_ref, s1_ref, t1_ref,
                           w2_ref, s2_ref, t2_ref,
                           o_ref, xpad_ref, hp_ref):
    # xr_ref : (1, H1, Wu, Cin) bf16  x1 with each column repeated twice
    # x2_ref : (1, Hu, Wu, Ch)  bf16  cropped skip connection
    # wup_ref: (Cin, 4*Ch)      bf16  up-conv weights, columns ordered (di,dj,oc)
    # bup_ref: (1, Ch)          f32   up-conv bias
    # w1_ref : (9*Cin, Cout) bf16 ; w2_ref: (9*Cout, Cout) bf16
    # s*/t*  : (1, Cout) f32         folded BN scale / shift (conv bias folded in)
    # o_ref  : (1, TH, Wu, Cout) f32 output row tile
    # xpad_ref: (Hu+4, Wu+2, Cin) bf16  padded concat(x2, up(x1)) image (persists over t)
    # hp_ref  : (TH+2, Wu+2, Cout) bf16 padded conv1 tile (conv2 input)
    t = pl.program_id(1)
    num_t = pl.num_programs(1)
    th = o_ref.shape[1]
    wu = o_ref.shape[2]
    cout = o_ref.shape[3]
    h1 = xr_ref.shape[1]
    cin = xr_ref.shape[3]
    ch = cin // 2
    hu = 2 * h1

    # ---- once per image: upsample + concat + pad, entirely in VMEM ----------
    @pl.when(t == 0)
    def _build_xpad():
        # zero only the halo border (top/bottom 2 rows, left/right column)
        zrow = jnp.zeros((2, wu + 2, cin), xpad_ref.dtype)
        xpad_ref[0:2, :, :] = zrow
        xpad_ref[hu + 2:hu + 4, :, :] = zrow
        zcol = jnp.zeros((hu + 4, 1, cin), xpad_ref.dtype)
        xpad_ref[:, 0:1, :] = zcol
        xpad_ref[:, wu + 1:wu + 2, :] = zcol
        # conv2's width zero-padding columns (interior writes never touch them)
        zc2 = jnp.zeros((th + 2, 1, cout), hp_ref.dtype)
        hp_ref[:, 0:1, :] = zc2
        hp_ref[:, wu + 1:wu + 2, :] = zc2

        # even output columns take the dj=0 tap, odd columns the dj=1 tap
        odd_col = lax.broadcasted_iota(jnp.int32, (wu, 1), 0) % 2

        def body(i, carry):
            # ConvTranspose2d(k=2, s=2): one matmul gives all four taps for
            # input row i (x already width-repeated); a column-parity select
            # picks dj, di selects the even / odd output row.
            y = jnp.dot(xr_ref[0, i], wup_ref[...],
                        preferred_element_type=jnp.float32)      # (Wu, 4*Ch)
            for di in range(2):
                c0 = y[:, di * 2 * ch:di * 2 * ch + ch]           # dj = 0
                c1 = y[:, di * 2 * ch + ch:di * 2 * ch + 2 * ch]  # dj = 1
                up_row = jnp.where(odd_col == 0, c0, c1) + bup_ref[...]
                row = jnp.concatenate(
                    [x2_ref[0, 2 * i + di], up_row.astype(xpad_ref.dtype)],
                    axis=-1)                                      # (Wu, Cin)
                xpad_ref[2 + 2 * i + di, 1:wu + 1, :] = row
            return carry

        lax.fori_loop(0, h1, body, 0)

    # ---- conv1 over a (TH+4)-row window -> conv1 rows [t*TH-1, t*TH+TH+1) ----
    # (2-row recompute halo so conv2 has its 1-row neighborhood in VMEM)
    start = t * th
    if th % 8 == 0:
        start = pl.multiple_of(start, 8)
    xw = xpad_ref[pl.ds(start, th + 4), :, :]
    h = _conv3x3_bn_relu(xw, w1_ref[...], s1_ref[...], t1_ref[...])  # (TH+2, Wu, Cout)

    hp_ref[:, 1:wu + 1, :] = h.astype(hp_ref.dtype)

    # conv1 halo rows that fall outside the image are conv2's zero padding
    @pl.when(t == 0)
    def _zero_top():
        hp_ref[0:1, :, :] = jnp.zeros((1, wu + 2, cout), hp_ref.dtype)

    @pl.when(t == num_t - 1)
    def _zero_bottom():
        hp_ref[th + 1:th + 2, :, :] = jnp.zeros((1, wu + 2, cout), hp_ref.dtype)

    out = _conv3x3_bn_relu(hp_ref[...], w2_ref[...], s2_ref[...], t2_ref[...])  # (TH, Wu, Cout)
    o_ref[0] = out.astype(o_ref.dtype)


# ----------------------------------------------------------------------------
# Module glue (parameter setup, layout conversion, BN folding).
# ----------------------------------------------------------------------------
def _fold_bn(gamma, beta, running_mean, running_var, eps=1e-5):
    scale = gamma / jnp.sqrt(running_var + eps)
    shift = beta - running_mean * scale
    return scale, shift


def _pick_row_tile(hu, wu, cin, cout, budget_bytes=8 << 20, target=32):
    """Largest TH dividing Hu with TH <= target and per-step working set under budget."""
    per_row = (wu + 2) * cin * 2                                  # padded input rows
    per_row += wu * (9 * cin if cin < 128 else cin) * 2           # conv1 patches / tap slab
    per_row += wu * cout * 4                                      # conv1 f32 accumulator
    per_row += (wu + 2) * cout * 2                                # staged conv1 rows
    per_row += wu * (9 * cout if cout < 128 else cout) * 2        # conv2 patches
    per_row += 2 * wu * cout * 4                                  # conv2 acc + f32 output
    th = int(max(1, min(hu, target, budget_bytes // max(per_row, 1))))
    while hu % th:
        th -= 1
    return th


def init_up_params(key, in_channels, out_channels):
    c_half = in_channels // 2
    ks = jax.random.split(key, 12)
    p = {}
    # ConvTranspose2d(in_channels, in_channels//2, k=2, s=2): weight (Cin, Cin//2, 2, 2)
    p["up_w"] = 0.1 * jax.random.normal(ks[0], (in_channels, c_half, 2, 2), jnp.float32)
    p["up_b"] = 0.1 * jax.random.normal(ks[1], (c_half,), jnp.float32)
    # DoubleConv conv1: Conv2d(in_channels, out_channels, 3, pad=1)
    p["c1_w"] = 0.1 * jax.random.normal(ks[2], (out_channels, in_channels, 3, 3), jnp.float32)
    p["c1_b"] = 0.1 * jax.random.normal(ks[3], (out_channels,), jnp.float32)
    p["bn1_gamma"] = 1.0 + 0.1 * jax.random.normal(ks[4], (out_channels,), jnp.float32)
    p["bn1_beta"] = 0.1 * jax.random.normal(ks[5], (out_channels,), jnp.float32)
    p["bn1_mean"] = 0.1 * jax.random.normal(ks[6], (out_channels,), jnp.float32)
    p["bn1_var"] = jax.random.uniform(ks[7], (out_channels,), jnp.float32, 0.5, 1.5)
    # DoubleConv conv2: Conv2d(out_channels, out_channels, 3, pad=1)
    p["c2_w"] = 0.1 * jax.random.normal(ks[8], (out_channels, out_channels, 3, 3), jnp.float32)
    p["c2_b"] = 0.1 * jax.random.normal(ks[9], (out_channels,), jnp.float32)
    p["bn2_gamma"] = 1.0 + 0.1 * jax.random.normal(ks[10], (out_channels,), jnp.float32)
    p["bn2_beta"] = 0.1 * jax.random.normal(ks[11], (out_channels,), jnp.float32)
    p["bn2_mean"] = jnp.zeros((out_channels,), jnp.float32)
    p["bn2_var"] = jnp.ones((out_channels,), jnp.float32)
    return p


@jax.jit
def up_forward(params, x1_nchw, x2_nchw):
    """Forward of `Up`. Inputs/outputs are NCHW to match PyTorch."""
    # ---- layout: NCHW -> NHWC (interface cost only); MXU operands in bf16
    x1 = jnp.transpose(x1_nchw, (0, 2, 3, 1)).astype(jnp.bfloat16)   # (N,H1,W1,Cin)
    x2 = jnp.transpose(x2_nchw, (0, 2, 3, 1))                        # (N,H2,W2,Ch)
    N, H1, W1, Cin = x1.shape
    c_half = Cin // 2
    Hu, Wu = 2 * H1, 2 * W1

    # Width-repeat of x1 (x1r[n,i,w,:] == x1[n,i,w//2,:]).  XLA fuses this with
    # the transpose/cast; it lets the kernel do the transposed conv with
    # full-width matmuls + a column-parity select, so the upsampled tensor
    # never makes an HBM round trip and no lane->sublane reshape is needed.
    x1r = jnp.repeat(x1, 2, axis=2)                                  # (N,H1,Wu,Cin)

    # ---- center crop x2 to the upsampled spatial size (usually a no-op slice)
    diffY = x2.shape[1] - Hu
    diffX = x2.shape[2] - Wu
    x2c = x2[:, diffY // 2:diffY // 2 + Hu,
             diffX // 2:diffX // 2 + Wu, :].astype(jnp.bfloat16)

    # ---- parameters: up-conv weights as (Cin, 4*Ch) with columns (di, dj, oc)
    w_up = jnp.transpose(params["up_w"], (0, 2, 3, 1)).reshape(Cin, 4 * c_half)
    w_up = w_up.astype(jnp.bfloat16)
    b_up = params["up_b"].reshape(1, c_half)

    Cout = params["c1_w"].shape[0]
    w1 = jnp.transpose(params["c1_w"], (2, 3, 1, 0)).reshape(9 * Cin, Cout)
    w1 = w1.astype(jnp.bfloat16)
    s1, t1 = _fold_bn(params["bn1_gamma"], params["bn1_beta"],
                      params["bn1_mean"], params["bn1_var"])
    t1 = t1 + s1 * params["c1_b"]                  # fold conv bias into BN shift
    w2 = jnp.transpose(params["c2_w"], (2, 3, 1, 0)).reshape(9 * Cout, Cout)
    w2 = w2.astype(jnp.bfloat16)
    s2, t2 = _fold_bn(params["bn2_gamma"], params["bn2_beta"],
                      params["bn2_mean"], params["bn2_var"])
    t2 = t2 + s2 * params["c2_b"]
    s1 = s1.reshape(1, Cout)
    t1 = t1.reshape(1, Cout)
    s2 = s2.reshape(1, Cout)
    t2 = t2.reshape(1, Cout)

    TH = _pick_row_tile(Hu, Wu, Cin, Cout)         # output rows per grid step
    T = Hu // TH

    # VMEM budget: double-buffered blocks + scratch + in-kernel temporaries,
    # capped well below v7x's 64 MiB per-core VMEM.
    est = 2 * H1 * Wu * Cin * 2
    est += 2 * Hu * Wu * c_half * 2
    est += 2 * (Cin * 4 * c_half + 9 * Cin * Cout + 9 * Cout * Cout) * 2
    est += 2 * TH * Wu * Cout * 4
    est += (Hu + 4) * (Wu + 2) * Cin * 2
    est += (TH + 2) * (Wu + 2) * Cout * 2
    est += (TH + 2) * Wu * (9 * Cin if Cin < 128 else Cin) * 2
    est += (TH + 2) * Wu * Cout * 4
    est += TH * Wu * (9 * Cout if Cout < 128 else Cout) * 2
    est += TH * Wu * Cout * 4
    vmem_limit = int(min(48 * 2 ** 20, max(24 * 2 ** 20, 2 * est)))

    # TODO(synk): for very large images the resident full-image input blocks
    # (x1r, x2c) and the full-image xpad scratch should become halo row-tiles
    # (manual DMA) so per-step VMEM stays O(TH) rows on v7x's 64 MiB.
    out_nhwc = pl.pallas_call(
        _up_double_conv_kernel,
        out_shape=jax.ShapeDtypeStruct((N, Hu, Wu, Cout), jnp.float32),
        grid=(N, T),
        in_specs=[
            pl.BlockSpec((1, H1, Wu, Cin), lambda n, t: (n, 0, 0, 0)),     # x1 width-rep
            pl.BlockSpec((1, Hu, Wu, c_half), lambda n, t: (n, 0, 0, 0)),  # x2 crop
            pl.BlockSpec((Cin, 4 * c_half), lambda n, t: (0, 0)),
            pl.BlockSpec((1, c_half), lambda n, t: (0, 0)),
            pl.BlockSpec((9 * Cin, Cout), lambda n, t: (0, 0)),
            pl.BlockSpec((1, Cout), lambda n, t: (0, 0)),
            pl.BlockSpec((1, Cout), lambda n, t: (0, 0)),
            pl.BlockSpec((9 * Cout, Cout), lambda n, t: (0, 0)),
            pl.BlockSpec((1, Cout), lambda n, t: (0, 0)),
            pl.BlockSpec((1, Cout), lambda n, t: (0, 0)),
        ],
        out_specs=pl.BlockSpec((1, TH, Wu, Cout), lambda n, t: (n, t, 0, 0)),
        scratch_shapes=[
            pltpu.VMEM((Hu + 4, Wu + 2, Cin), jnp.bfloat16),     # padded concat image
            pltpu.VMEM((TH + 2, Wu + 2, Cout), jnp.bfloat16),    # padded conv1 tile
        ],
        compiler_params=pltpu.CompilerParams(
            dimension_semantics=("parallel", "arbitrary"),
            vmem_limit_bytes=vmem_limit),
    )(x1r, x2c, w_up, b_up, w1, s1, t1, w2, s2, t2)

    # ---- layout: NHWC -> NCHW
    return jnp.transpose(out_nhwc, (0, 3, 1, 2))


# ----------------------------------------------------------------------------
# Pure-JAX reference (NHWC) used only for the self-check in __main__.
# ----------------------------------------------------------------------------
def _reference_up(params, x1_nchw, x2_nchw):
    x1 = jnp.transpose(x1_nchw, (0, 2, 3, 1))
    x2 = jnp.transpose(x2_nchw, (0, 2, 3, 1))
    N, H1, W1, Cin = x1.shape
    c_half = Cin // 2
    Hu, Wu = 2 * H1, 2 * W1

    w_t = jnp.transpose(params["up_w"], (0, 2, 3, 1))          # (Cin, 2, 2, Ch)
    y = jnp.einsum("nijc,cdef->nidjef", x1, w_t).reshape(N, Hu, Wu, c_half)
    y = y + params["up_b"]

    diffY = x2.shape[1] - Hu
    diffX = x2.shape[2] - Wu
    x2c = x2[:, diffY // 2:diffY // 2 + Hu, diffX // 2:diffX // 2 + Wu, :]
    x = jnp.concatenate([x2c, y], axis=-1)

    def conv_bn_relu(x, w, b, gamma, beta, mean, var):
        w_hwio = jnp.transpose(w, (2, 3, 1, 0))
        z = lax.conv_general_dilated(
            x, w_hwio, window_strides=(1, 1), padding="SAME",
            dimension_numbers=("NHWC", "HWIO", "NHWC")) + b
        s, t = _fold_bn(gamma, beta, mean, var)
        return jnp.maximum(z * s + t, 0.0)

    h = conv_bn_relu(x, params["c1_w"], params["c1_b"], params["bn1_gamma"],
                     params["bn1_beta"], params["bn1_mean"], params["bn1_var"])
    o = conv_bn_relu(h, params["c2_w"], params["c2_b"], params["bn2_gamma"],
                     params["bn2_beta"], params["bn2_mean"], params["bn2_var"])
    return jnp.transpose(o, (0, 3, 1, 2))


if __name__ == "__main__":
    key = jax.random.PRNGKey(0)
    k_param, k_x1, k_x2 = jax.random.split(key, 3)

    in_channels, out_channels = 8, 4
    # x1: deep feature map (N, Cin, H, W); x2: skip connection (N, Cin//2, 2H, 2W)
    x1 = jax.random.normal(k_x1, (2, in_channels, 8, 8), jnp.float32)
    x2 = jax.random.normal(k_x2, (2, in_channels // 2, 16, 16), jnp.float32)

    params = init_up_params(k_param, in_channels, out_channels)

    out = up_forward(params, x1, x2)
    out = jax.block_until_ready(out)

    expected_shape = (2, out_channels, 16, 16)
    assert out.shape == expected_shape, (out.shape, expected_shape)
    assert bool(jnp.all(jnp.isfinite(out)))

    ref = _reference_up(params, x1, x2)
    err = float(jnp.max(jnp.abs(out - ref)))
    assert err < 0.1, f"max abs error vs reference too large: {err}"

    print("KERNEL_OK")
</pallas_src>

<mosaic_0001>
module attributes {stable_mosaic.version = 11 : i64} {
  func.func @_up_double_conv_kernel(%arg0: i32, %arg1: i32, %arg2: memref<1x8x16x8xbf16, #tpu.memory_space<vmem>>, %arg3: memref<1x16x16x4xbf16, #tpu.memory_space<vmem>>, %arg4: memref<8x16xbf16, #tpu.memory_space<vmem>>, %arg5: memref<1x4xf32, #tpu.memory_space<vmem>>, %arg6: memref<72x4xbf16, #tpu.memory_space<vmem>>, %arg7: memref<1x4xf32, #tpu.memory_space<vmem>>, %arg8: memref<1x4xf32, #tpu.memory_space<vmem>>, %arg9: memref<36x4xbf16, #tpu.memory_space<vmem>>, %arg10: memref<1x4xf32, #tpu.memory_space<vmem>>, %arg11: memref<1x4xf32, #tpu.memory_space<vmem>>, %arg12: memref<1x16x16x4xf32, #tpu.memory_space<vmem>>, %arg13: memref<20x18x8xbf16, #tpu.memory_space<vmem>>, %arg14: memref<18x18x4xbf16, #tpu.memory_space<vmem>>) attributes {dimension_semantics = [#tpu.dimension_semantics<parallel>, #tpu.dimension_semantics<arbitrary>], iteration_bounds = array<i64: 2, 1>, scalar_prefetch = 0 : i64, scratch_operands = 2 : i64, tpu.core_type = #tpu.core_type<tc>, window_params = [{transform_indices = @transform_0, window_bounds = array<i64: 1, 8, 16, 8>}, {transform_indices = @transform_1, window_bounds = array<i64: 1, 16, 16, 4>}, {pipeline_mode = #tpu.pipeline_mode<synchronous>, transform_indices = @transform_2, window_bounds = array<i64: 8, 16>}, {pipeline_mode = #tpu.pipeline_mode<synchronous>, transform_indices = @transform_3, window_bounds = array<i64: 1, 4>}, {pipeline_mode = #tpu.pipeline_mode<synchronous>, transform_indices = @transform_4, window_bounds = array<i64: 72, 4>}, {pipeline_mode = #tpu.pipeline_mode<synchronous>, transform_indices = @transform_5, window_bounds = array<i64: 1, 4>}, {pipeline_mode = #tpu.pipeline_mode<synchronous>, transform_indices = @transform_6, window_bounds = array<i64: 1, 4>}, {pipeline_mode = #tpu.pipeline_mode<synchronous>, transform_indices = @transform_7, window_bounds = array<i64: 36, 4>}, {pipeline_mode = #tpu.pipeline_mode<synchronous>, transform_indices = @transform_8, window_bounds = array<i64: 1, 4>}, {pipeline_mode = #tpu.pipeline_mode<synchronous>, transform_indices = @transform_9, window_bounds = array<i64: 1, 4>}, {transform_indices = @transform_10, window_bounds = array<i64: 1, 16, 16, 4>}]} {
    %c0_i32 = arith.constant 0 : i32
    %0 = arith.cmpi eq, %arg1, %c0_i32 : i32
    %1 = arith.extui %0 : i1 to i32
    %c0_i32_0 = arith.constant 0 : i32
    %2 = arith.cmpi ne, %1, %c0_i32_0 : i32
    scf.if %2 {
      %cst_30 = arith.constant 0.000000e+00 : bf16
      %79 = vector.broadcast %cst_30 : bf16 to vector<2x18x8xbf16>
      %c0_31 = arith.constant 0 : index
      %c0_32 = arith.constant 0 : index
      %c0_33 = arith.constant 0 : index
      %80 = vector.load %arg13[%c0_31, %c0_32, %c0_33] : memref<20x18x8xbf16, #tpu.memory_space<vmem>>, vector<2x18x8xbf16>
      tpu.vector_store %arg13[%c0_31, %c0_32, %c0_33], %79 {strides = array<i32>} : memref<20x18x8xbf16, #tpu.memory_space<vmem>>, vector<2x18x8xbf16>,
      %c18 = arith.constant 18 : index
      %c0_34 = arith.constant 0 : index
      %c0_35 = arith.constant 0 : index
      %81 = vector.load %arg13[%c18, %c0_34, %c0_35] : memref<20x18x8xbf16, #tpu.memory_space<vmem>>, vector<2x18x8xbf16>
      tpu.vector_store %arg13[%c18, %c0_34, %c0_35], %79 {strides = array<i32>} : memref<20x18x8xbf16, #tpu.memory_space<vmem>>, vector<2x18x8xbf16>,
      %cst_36 = arith.constant 0.000000e+00 : bf16
      %82 = vector.broadcast %cst_36 : bf16 to vector<20x1x8xbf16>
      %c0_37 = arith.constant 0 : index
      %c0_38 = arith.constant 0 : index
      %c0_39 = arith.constant 0 : index
      %83 = vector.load %arg13[%c0_37, %c0_38, %c0_39] : memref<20x18x8xbf16, #tpu.memory_space<vmem>>, vector<20x1x8xbf16>
      tpu.vector_store %arg13[%c0_37, %c0_38, %c0_39], %82 {strides = array<i32>} : memref<20x18x8xbf16, #tpu.memory_space<vmem>>, vector<20x1x8xbf16>,
      %c0_40 = arith.constant 0 : index
      %c17 = arith.constant 17 : index
      %c0_41 = arith.constant 0 : index
      %84 = vector.load %arg13[%c0_40, %c17, %c0_41] : memref<20x18x8xbf16, #tpu.memory_space<vmem>>, vector<20x1x8xbf16>
      tpu.vector_store %arg13[%c0_40, %c17, %c0_41], %82 {strides = array<i32>} : memref<20x18x8xbf16, #tpu.memory_space<vmem>>, vector<20x1x8xbf16>,
      %cst_42 = arith.constant 0.000000e+00 : bf16
      %85 = vector.broadcast %cst_42 : bf16 to vector<18x1x4xbf16>
      %c0_43 = arith.constant 0 : index
      %c0_44 = arith.constant 0 : index
      %c0_45 = arith.constant 0 : index
      %86 = vector.load %arg14[%c0_43, %c0_44, %c0_45] : memref<18x18x4xbf16, #tpu.memory_space<vmem>>, vector<18x1x4xbf16>
      tpu.vector_store %arg14[%c0_43, %c0_44, %c0_45], %85 {strides = array<i32>} : memref<18x18x4xbf16, #tpu.memory_space<vmem>>, vector<18x1x4xbf16>,
      %c0_46 = arith.constant 0 : index
      %c17_47 = arith.constant 17 : index
      %c0_48 = arith.constant 0 : index
      %87 = vector.load %arg14[%c0_46, %c17_47, %c0_48] : memref<18x18x4xbf16, #tpu.memory_space<vmem>>, vector<18x1x4xbf16>
      tpu.vector_store %arg14[%c0_46, %c17_47, %c0_48], %85 {strides = array<i32>} : memref<18x18x4xbf16, #tpu.memory_space<vmem>>, vector<18x1x4xbf16>,
      %88 = tpu.iota {dimensions = array<i32: 0>} : vector<16x1xi32>
      %c2_i32 = arith.constant 2 : i32
      %c0_i32_49 = arith.constant 0 : i32
      %89 = arith.cmpi eq, %c2_i32, %c0_i32_49 : i32
      %c1_i32 = arith.constant 1 : i32
      %90 = arith.select %89, %c1_i32, %c2_i32 : i32
      %91 = vector.broadcast %90 : i32 to vector<16x1xi32>
      %92 = arith.remsi %88, %91 : vector<16x1xi32>
      %c0_i32_50 = arith.constant 0 : i32
      %93 = vector.broadcast %c0_i32_50 : i32 to vector<16x1xi32>
      %94 = arith.cmpi ne, %92, %93 : vector<16x1xi32>
      %c0_i32_51 = arith.constant 0 : i32
      %95 = vector.broadcast %c0_i32_51 : i32 to vector<16x1xi32>
      %96 = arith.cmpi slt, %92, %95 : vector<16x1xi32>
      %c0_i32_52 = arith.constant 0 : i32
      %97 = arith.cmpi slt, %90, %c0_i32_52 : i32
      %98 = vector.broadcast %97 : i1 to vector<16x1xi1>
      %99 = vector.broadcast %98 : vector<16x1xi1> to vector<16x1xi1>
      %100 = arith.xori %96, %99 : vector<16x1xi1>
      %101 = arith.andi %100, %94 : vector<16x1xi1>
      %102 = vector.broadcast %90 : i32 to vector<16x1xi32>
      %103 = arith.addi %92, %102 : vector<16x1xi32>
      %104 = arith.select %101, %103, %92 : vector<16x1xi1>, vector<16x1xi32>
      %c0_i32_53 = arith.constant 0 : i32
      %c8_i32 = arith.constant 8 : i32
      %105 = arith.addi %c0_i32_53, %c8_i32 : i32
      %c1_i32_54 = arith.constant 1 : i32
      scf.for %arg15 = %c0_i32_53 to %105 step %c1_i32_54  : i32 {
        %c0_56 = arith.constant 0 : index
        %106 = arith.index_cast %arg15 : i32 to index
        %c0_57 = arith.constant 0 : index
        %c0_58 = arith.constant 0 : index
        %107 = vector.load %arg2[%c0_56, %106, %c0_57, %c0_58] : memref<1x8x16x8xbf16, #tpu.memory_space<vmem>>, vector<1x1x16x8xbf16>
        %108 = vector.shape_cast %107 : vector<1x1x16x8xbf16> to vector<16x8xbf16>
        %c0_59 = arith.constant 0 : index
        %c0_60 = arith.constant 0 : index
        %109 = vector.load %arg4[%c0_59, %c0_60] : memref<8x16xbf16, #tpu.memory_space<vmem>>, vector<8x16xbf16>
        %cst_61 = arith.constant dense<0.000000e+00> : vector<16x16xf32>
        %110 = tpu.matmul %108, %109, %cst_61 {dimension_numbers = #tpu.dot_dimension_numbers<[1], [0], [0], [1], [0, 0, 1, 1], [], []>} : vector<16x8xbf16>, vector<8x16xbf16>, vector<16x16xf32> -> vector<16x16xf32>
        %111 = vector.extract_strided_slice %110 {offsets = [0, 0], sizes = [16, 4], strides = [1, 1]} : vector<16x16xf32> to vector<16x4xf32>
        %112 = vector.extract_strided_slice %110 {offsets = [0, 4], sizes = [16, 4], strides = [1, 1]} : vector<16x16xf32> to vector<16x4xf32>
        %c0_i32_62 = arith.constant 0 : i32
        %113 = vector.broadcast %c0_i32_62 : i32 to vector<16x1xi32>
        %114 = arith.cmpi eq, %104, %113 : vector<16x1xi32>
        %115 = vector.shape_cast %114 : vector<16x1xi1> to vector<16x1xi1>
        %116 = vector.broadcast %115 : vector<16x1xi1> to vector<16x4xi1>
        %117 = arith.select %116, %111, %112 : vector<16x4xi1>, vector<16x4xf32>
        %c0_63 = arith.constant 0 : index
        %c0_64 = arith.constant 0 : index
        %118 = vector.load %arg5[%c0_63, %c0_64] : memref<1x4xf32, #tpu.memory_space<vmem>>, vector<1x4xf32>
        %119 = vector.broadcast %118 : vector<1x4xf32> to vector<16x4xf32>
        %120 = arith.addf %117, %119 : vector<16x4xf32>
        %c2_i32_65 = arith.constant 2 : i32
        %121 = arith.muli %c2_i32_65, %arg15 : i32
        %c0_i32_66 = arith.constant 0 : i32
        %122 = arith.addi %121, %c0_i32_66 : i32
        %c0_67 = arith.constant 0 : index
        %123 = arith.index_cast %122 : i32 to index
        %c0_68 = arith.constant 0 : index
        %c0_69 = arith.constant 0 : index
        %124 = vector.load %arg3[%c0_67, %123, %c0_68, %c0_69] : memref<1x16x16x4xbf16, #tpu.memory_space<vmem>>, vector<1x1x16x4xbf16>
        %125 = vector.shape_cast %124 : vector<1x1x16x4xbf16> to vector<16x4xbf16>
        %126 = arith.truncf %120 : vector<16x4xf32> to vector<16x4xbf16>
        %127 = tpu.concatenate %125, %126 in 1 : vector<16x4xbf16>, vector<16x4xbf16> -> vector<16x8xbf16>
        %c2_i32_70 = arith.constant 2 : i32
        %128 = arith.muli %c2_i32_70, %arg15 : i32
        %c2_i32_71 = arith.constant 2 : i32
        %129 = arith.addi %c2_i32_71, %128 : i32
        %c0_i32_72 = arith.constant 0 : i32
        %130 = arith.addi %129, %c0_i32_72 : i32
        %131 = arith.index_cast %130 : i32 to index
        %c1_73 = arith.constant 1 : index
        %c0_74 = arith.constant 0 : index
        %132 = vector.load %arg13[%131, %c1_73, %c0_74] : memref<20x18x8xbf16, #tpu.memory_space<vmem>>, vector<1x16x8xbf16>
        %133 = vector.shape_cast %132 : vector<1x16x8xbf16> to vector<16x8xbf16>
        %134 = vector.shape_cast %127 : vector<16x8xbf16> to vector<1x16x8xbf16>
        tpu.vector_store %arg13[%131, %c1_73, %c0_74], %134 {strides = array<i32>} : memref<20x18x8xbf16, #tpu.memory_space<vmem>>, vector<1x16x8xbf16>,
        %135 = vector.extract_strided_slice %110 {offsets = [0, 8], sizes = [16, 4], strides = [1, 1]} : vector<16x16xf32> to vector<16x4xf32>
        %136 = vector.extract_strided_slice %110 {offsets = [0, 12], sizes = [16, 4], strides = [1, 1]} : vector<16x16xf32> to vector<16x4xf32>
        %c0_i32_75 = arith.constant 0 : i32
        %137 = vector.broadcast %c0_i32_75 : i32 to vector<16x1xi32>
        %138 = arith.cmpi eq, %104, %137 : vector<16x1xi32>
        %139 = vector.shape_cast %138 : vector<16x1xi1> to vector<16x1xi1>
        %140 = vector.broadcast %139 : vector<16x1xi1> to vector<16x4xi1>
        %141 = arith.select %140, %135, %136 : vector<16x4xi1>, vector<16x4xf32>
        %c0_76 = arith.constant 0 : index
        %c0_77 = arith.constant 0 : index
        %142 = vector.load %arg5[%c0_76, %c0_77] : memref<1x4xf32, #tpu.memory_space<vmem>>, vector<1x4xf32>
        %143 = vector.broadcast %142 : vector<1x4xf32> to vector<16x4xf32>
        %144 = arith.addf %141, %143 : vector<16x4xf32>
        %c2_i32_78 = arith.constant 2 : i32
        %145 = arith.muli %c2_i32_78, %arg15 : i32
        %c1_i32_79 = arith.constant 1 : i32
        %146 = arith.addi %145, %c1_i32_79 : i32
        %c0_80 = arith.constant 0 : index
        %147 = arith.index_cast %146 : i32 to index
        %c0_81 = arith.constant 0 : index
        %c0_82 = arith.constant 0 : index
        %148 = vector.load %arg3[%c0_80, %147, %c0_81, %c0_82] : memref<1x16x16x4xbf16, #tpu.memory_space<vmem>>, vector<1x1x16x4xbf16>
        %149 = vector.shape_cast %148 : vector<1x1x16x4xbf16> to vector<16x4xbf16>
        %150 = arith.truncf %144 : vector<16x4xf32> to vector<16x4xbf16>
        %151 = tpu.concatenate %149, %150 in 1 : vector<16x4xbf16>, vector<16x4xbf16> -> vector<16x8xbf16>
        %c2_i32_83 = arith.constant 2 : i32
        %152 = arith.muli %c2_i32_83, %arg15 : i32
        %c2_i32_84 = arith.constant 2 : i32
        %153 = arith.addi %c2_i32_84, %152 : i32
        %c1_i32_85 = arith.constant 1 : i32
        %154 = arith.addi %153, %c1_i32_85 : i32
        %155 = arith.index_cast %154 : i32 to index
        %c1_86 = arith.constant 1 : index
        %c0_87 = arith.constant 0 : index
        %156 = vector.load %arg13[%155, %c1_86, %c0_87] : memref<20x18x8xbf16, #tpu.memory_space<vmem>>, vector<1x16x8xbf16>
        %157 = vector.shape_cast %156 : vector<1x16x8xbf16> to vector<16x8xbf16>
        %158 = vector.shape_cast %151 : vector<16x8xbf16> to vector<1x16x8xbf16>
        tpu.vector_store %arg13[%155, %c1_86, %c0_87], %158 {strides = array<i32>} : memref<20x18x8xbf16, #tpu.memory_space<vmem>>, vector<1x16x8xbf16>,
      }
      %c8_i32_55 = arith.constant 8 : i32
    } else {
    }
    %c16_i32 = arith.constant 16 : i32
    %3 = arith.muli %arg1, %c16_i32 : i32
    %4 = tpu.assume_multiple %3, 8 : i32
    %5 = arith.index_cast %4 : i32 to index
    %c0 = arith.constant 0 : index
    %c0_1 = arith.constant 0 : index
    %6 = vector.load %arg13[%5, %c0, %c0_1] : memref<20x18x8xbf16, #tpu.memory_space<vmem>>, vector<20x18x8xbf16>
    %c0_2 = arith.constant 0 : index
    %c0_3 = arith.constant 0 : index
    %7 = vector.load %arg6[%c0_2, %c0_3] : memref<72x4xbf16, #tpu.memory_space<vmem>>, vector<72x4xbf16>
    %c0_4 = arith.constant 0 : index
    %c0_5 = arith.constant 0 : index
    %8 = vector.load %arg7[%c0_4, %c0_5] : memref<1x4xf32, #tpu.memory_space<vmem>>, vector<1x4xf32>
    %c0_6 = arith.constant 0 : index
    %c0_7 = arith.constant 0 : index
    %9 = vector.load %arg8[%c0_6, %c0_7] : memref<1x4xf32, #tpu.memory_space<vmem>>, vector<1x4xf32>
    %10 = vector.extract_strided_slice %6 {offsets = [0, 0, 0], sizes = [18, 16, 8], strides = [1, 1, 1]} : vector<20x18x8xbf16> to vector<18x16x8xbf16>
    %11 = vector.shape_cast %10 : vector<18x16x8xbf16> to vector<288x8xbf16>
    %12 = vector.extract_strided_slice %6 {offsets = [0, 1, 0], sizes = [18, 16, 8], strides = [1, 1, 1]} : vector<20x18x8xbf16> to vector<18x16x8xbf16>
    %13 = vector.shape_cast %12 : vector<18x16x8xbf16> to vector<288x8xbf16>
    %14 = vector.extract_strided_slice %6 {offsets = [0, 2, 0], sizes = [18, 16, 8], strides = [1, 1, 1]} : vector<20x18x8xbf16> to vector<18x16x8xbf16>
    %15 = vector.shape_cast %14 : vector<18x16x8xbf16> to vector<288x8xbf16>
    %16 = vector.extract_strided_slice %6 {offsets = [1, 0, 0], sizes = [18, 16, 8], strides = [1, 1, 1]} : vector<20x18x8xbf16> to vector<18x16x8xbf16>
    %17 = vector.shape_cast %16 : vector<18x16x8xbf16> to vector<288x8xbf16>
    %18 = vector.extract_strided_slice %6 {offsets = [1, 1, 0], sizes = [18, 16, 8], strides = [1, 1, 1]} : vector<20x18x8xbf16> to vector<18x16x8xbf16>
    %19 = vector.shape_cast %18 : vector<18x16x8xbf16> to vector<288x8xbf16>
    %20 = vector.extract_strided_slice %6 {offsets = [1, 2, 0], sizes = [18, 16, 8], strides = [1, 1, 1]} : vector<20x18x8xbf16> to vector<18x16x8xbf16>
    %21 = vector.shape_cast %20 : vector<18x16x8xbf16> to vector<288x8xbf16>
    %22 = vector.extract_strided_slice %6 {offsets = [2, 0, 0], sizes = [18, 16, 8], strides = [1, 1, 1]} : vector<20x18x8xbf16> to vector<18x16x8xbf16>
    %23 = vector.shape_cast %22 : vector<18x16x8xbf16> to vector<288x8xbf16>
    %24 = vector.extract_strided_slice %6 {offsets = [2, 1, 0], sizes = [18, 16, 8], strides = [1, 1, 1]} : vector<20x18x8xbf16> to vector<18x16x8xbf16>
    %25 = vector.shape_cast %24 : vector<18x16x8xbf16> to vector<288x8xbf16>
    %26 = vector.extract_strided_slice %6 {offsets = [2, 2, 0], sizes = [18, 16, 8], strides = [1, 1, 1]} : vector<20x18x8xbf16> to vector<18x16x8xbf16>
    %27 = vector.shape_cast %26 : vector<18x16x8xbf16> to vector<288x8xbf16>
    %28 = tpu.concatenate %11, %13, %15, %17, %19, %21, %23, %25, %27 in 1 : vector<288x8xbf16>, vector<288x8xbf16>, vector<288x8xbf16>, vector<288x8xbf16>, vector<288x8xbf16>, vector<288x8xbf16>, vector<288x8xbf16>, vector<288x8xbf16>, vector<288x8xbf16> -> vector<288x72xbf16>
    %cst = arith.constant dense<0.000000e+00> : vector<288x4xf32>
    %29 = tpu.matmul %28, %7, %cst {dimension_numbers = #tpu.dot_dimension_numbers<[1], [0], [0], [1], [0, 0, 1, 1], [], []>} : vector<288x72xbf16>, vector<72x4xbf16>, vector<288x4xf32> -> vector<288x4xf32>
    %30 = vector.broadcast %8 : vector<1x4xf32> to vector<288x4xf32>
    %31 = arith.mulf %29, %30 : vector<288x4xf32>
    %32 = vector.broadcast %9 : vector<1x4xf32> to vector<288x4xf32>
    %33 = arith.addf %31, %32 : vector<288x4xf32>
    %cst_8 = arith.constant 0.000000e+00 : f32
    %34 = vector.broadcast %cst_8 : f32 to vector<288x4xf32>
    %35 = arith.maximumf %33, %34 : vector<288x4xf32>
    %36 = vector.shape_cast %35 : vector<288x4xf32> to vector<18x16x4xf32>
    %37 = arith.truncf %36 : vector<18x16x4xf32> to vector<18x16x4xbf16>
    %c0_9 = arith.constant 0 : index
    %c1 = arith.constant 1 : index
    %c0_10 = arith.constant 0 : index
    %38 = vector.load %arg14[%c0_9, %c1, %c0_10] : memref<18x18x4xbf16, #tpu.memory_space<vmem>>, vector<18x16x4xbf16>
    tpu.vector_store %arg14[%c0_9, %c1, %c0_10], %37 {strides = array<i32>} : memref<18x18x4xbf16, #tpu.memory_space<vmem>>, vector<18x16x4xbf16>,
    %c0_i32_11 = arith.constant 0 : i32
    %39 = arith.cmpi eq, %arg1, %c0_i32_11 : i32
    %40 = arith.extui %39 : i1 to i32
    %c0_i32_12 = arith.constant 0 : i32
    %41 = arith.cmpi ne, %40, %c0_i32_12 : i32
    scf.if %41 {
      %cst_30 = arith.constant 0.000000e+00 : bf16
      %79 = vector.broadcast %cst_30 : bf16 to vector<1x18x4xbf16>
      %c0_31 = arith.constant 0 : index
      %c0_32 = arith.constant 0 : index
      %c0_33 = arith.constant 0 : index
      %80 = vector.load %arg14[%c0_31, %c0_32, %c0_33] : memref<18x18x4xbf16, #tpu.memory_space<vmem>>, vector<1x18x4xbf16>
      tpu.vector_store %arg14[%c0_31, %c0_32, %c0_33], %79 {strides = array<i32>} : memref<18x18x4xbf16, #tpu.memory_space<vmem>>, vector<1x18x4xbf16>,
    } else {
    }
    %c0_i32_13 = arith.constant 0 : i32
    %42 = arith.cmpi eq, %arg1, %c0_i32_13 : i32
    %43 = arith.extui %42 : i1 to i32
    %c0_i32_14 = arith.constant 0 : i32
    %44 = arith.cmpi ne, %43, %c0_i32_14 : i32
    scf.if %44 {
      %cst_30 = arith.constant 0.000000e+00 : bf16
      %79 = vector.broadcast %cst_30 : bf16 to vector<1x18x4xbf16>
      %c17 = arith.constant 17 : index
      %c0_31 = arith.constant 0 : index
      %c0_32 = arith.constant 0 : index
      %80 = vector.load %arg14[%c17, %c0_31, %c0_32] : memref<18x18x4xbf16, #tpu.memory_space<vmem>>, vector<1x18x4xbf16>
      tpu.vector_store %arg14[%c17, %c0_31, %c0_32], %79 {strides = array<i32>} : memref<18x18x4xbf16, #tpu.memory_space<vmem>>, vector<1x18x4xbf16>,
    } else {
    }
    %c0_15 = arith.constant 0 : index
    %c0_16 = arith.constant 0 : index
    %c0_17 = arith.constant 0 : index
    %45 = vector.load %arg14[%c0_15, %c0_16, %c0_17] : memref<18x18x4xbf16, #tpu.memory_space<vmem>>, vector<18x18x4xbf16>
    %c0_18 = arith.constant 0 : index
    %c0_19 = arith.constant 0 : index
    %46 = vector.load %arg9[%c0_18, %c0_19] : memref<36x4xbf16, #tpu.memory_space<vmem>>, vector<36x4xbf16>
    %c0_20 = arith.constant 0 : index
    %c0_21 = arith.constant 0 : index
    %47 = vector.load %arg10[%c0_20, %c0_21] : memref<1x4xf32, #tpu.memory_space<vmem>>, vector<1x4xf32>
    %c0_22 = arith.constant 0 : index
    %c0_23 = arith.constant 0 : index
    %48 = vector.load %arg11[%c0_22, %c0_23] : memref<1x4xf32, #tpu.memory_space<vmem>>, vector<1x4xf32>
    %49 = vector.extract_strided_slice %45 {offsets = [0, 0, 0], sizes = [16, 16, 4], strides = [1, 1, 1]} : vector<18x18x4xbf16> to vector<16x16x4xbf16>
    %50 = vector.shape_cast %49 : vector<16x16x4xbf16> to vector<256x4xbf16>
    %51 = vector.extract_strided_slice %45 {offsets = [0, 1, 0], sizes = [16, 16, 4], strides = [1, 1, 1]} : vector<18x18x4xbf16> to vector<16x16x4xbf16>
    %52 = vector.shape_cast %51 : vector<16x16x4xbf16> to vector<256x4xbf16>
    %53 = vector.extract_strided_slice %45 {offsets = [0, 2, 0], sizes = [16, 16, 4], strides = [1, 1, 1]} : vector<18x18x4xbf16> to vector<16x16x4xbf16>
    %54 = vector.shape_cast %53 : vector<16x16x4xbf16> to vector<256x4xbf16>
    %55 = vector.extract_strided_slice %45 {offsets = [1, 0, 0], sizes = [16, 16, 4], strides = [1, 1, 1]} : vector<18x18x4xbf16> to vector<16x16x4xbf16>
    %56 = vector.shape_cast %55 : vector<16x16x4xbf16> to vector<256x4xbf16>
    %57 = vector.extract_strided_slice %45 {offsets = [1, 1, 0], sizes = [16, 16, 4], strides = [1, 1, 1]} : vector<18x18x4xbf16> to vector<16x16x4xbf16>
    %58 = vector.shape_cast %57 : vector<16x16x4xbf16> to vector<256x4xbf16>
    %59 = vector.extract_strided_slice %45 {offsets = [1, 2, 0], sizes = [16, 16, 4], strides = [1, 1, 1]} : vector<18x18x4xbf16> to vector<16x16x4xbf16>
    %60 = vector.shape_cast %59 : vector<16x16x4xbf16> to vector<256x4xbf16>
    %61 = vector.extract_strided_slice %45 {offsets = [2, 0, 0], sizes = [16, 16, 4], strides = [1, 1, 1]} : vector<18x18x4xbf16> to vector<16x16x4xbf16>
    %62 = vector.shape_cast %61 : vector<16x16x4xbf16> to vector<256x4xbf16>
    %63 = vector.extract_strided_slice %45 {offsets = [2, 1, 0], sizes = [16, 16, 4], strides = [1, 1, 1]} : vector<18x18x4xbf16> to vector<16x16x4xbf16>
    %64 = vector.shape_cast %63 : vector<16x16x4xbf16> to vector<256x4xbf16>
    %65 = vector.extract_strided_slice %45 {offsets = [2, 2, 0], sizes = [16, 16, 4], strides = [1, 1, 1]} : vector<18x18x4xbf16> to vector<16x16x4xbf16>
    %66 = vector.shape_cast %65 : vector<16x16x4xbf16> to vector<256x4xbf16>
    %67 = tpu.concatenate %50, %52, %54, %56, %58, %60, %62, %64, %66 in 1 : vector<256x4xbf16>, vector<256x4xbf16>, vector<256x4xbf16>, vector<256x4xbf16>, vector<256x4xbf16>, vector<256x4xbf16>, vector<256x4xbf16>, vector<256x4xbf16>, vector<256x4xbf16> -> vector<256x36xbf16>
    %cst_24 = arith.constant dense<0.000000e+00> : vector<256x4xf32>
    %68 = tpu.matmul %67, %46, %cst_24 {dimension_numbers = #tpu.dot_dimension_numbers<[1], [0], [0], [1], [0, 0, 1, 1], [], []>} : vector<256x36xbf16>, vector<36x4xbf16>, vector<256x4xf32> -> vector<256x4xf32>
    %69 = vector.broadcast %47 : vector<1x4xf32> to vector<256x4xf32>
    %70 = arith.mulf %68, %69 : vector<256x4xf32>
    %71 = vector.broadcast %48 : vector<1x4xf32> to vector<256x4xf32>
    %72 = arith.addf %70, %71 : vector<256x4xf32>
    %cst_25 = arith.constant 0.000000e+00 : f32
    %73 = vector.broadcast %cst_25 : f32 to vector<256x4xf32>
    %74 = arith.maximumf %72, %73 : vector<256x4xf32>
    %75 = vector.shape_cast %74 : vector<256x4xf32> to vector<16x16x4xf32>
    %c0_26 = arith.constant 0 : index
    %c0_27 = arith.constant 0 : index
    %c0_28 = arith.constant 0 : index
    %c0_29 = arith.constant 0 : index
    %76 = vector.load %arg12[%c0_26, %c0_27, %c0_28, %c0_29] : memref<1x16x16x4xf32, #tpu.memory_space<vmem>>, vector<1x16x16x4xf32>
    %77 = vector.shape_cast %76 : vector<1x16x16x4xf32> to vector<16x16x4xf32>
    %78 = vector.shape_cast %75 : vector<16x16x4xf32> to vector<1x16x16x4xf32>
    tpu.vector_store %arg12[%c0_26, %c0_27, %c0_28, %c0_29], %78 {strides = array<i32>} : memref<1x16x16x4xf32, #tpu.memory_space<vmem>>, vector<1x16x16x4xf32>,
    return
  }
  func.func @transform_0(%arg0: i32, %arg1: i32) -> (i32, i32, i32, i32) {
    %c0_i32 = arith.constant 0 : i32
    %c0_i32_0 = arith.constant 0 : i32
    %c0_i32_1 = arith.constant 0 : i32
    %c0_i32_2 = arith.constant 0 : i32
    return %arg0, %c0_i32, %c0_i32_0, %c0_i32_1 : i32, i32, i32, i32
  }
  func.func @transform_1(%arg0: i32, %arg1: i32) -> (i32, i32, i32, i32) {
    %c0_i32 = arith.constant 0 : i32
    %c0_i32_0 = arith.constant 0 : i32
    %c0_i32_1 = arith.constant 0 : i32
    %c0_i32_2 = arith.constant 0 : i32
    return %arg0, %c0_i32, %c0_i32_0, %c0_i32_1 : i32, i32, i32, i32
  }
  func.func @transform_2(%arg0: i32, %arg1: i32) -> (i32, i32) {
    %c0_i32 = arith.constant 0 : i32
    %c0_i32_0 = arith.constant 0 : i32
    %c0_i32_1 = arith.constant 0 : i32
    return %c0_i32, %c0_i32_0 : i32, i32
  }
  func.func @transform_3(%arg0: i32, %arg1: i32) -> (i32, i32) {
    %c0_i32 = arith.constant 0 : i32
    %c0_i32_0 = arith.constant 0 : i32
    %c0_i32_1 = arith.constant 0 : i32
    return %c0_i32, %c0_i32_0 : i32, i32
  }
  func.func @transform_4(%arg0: i32, %arg1: i32) -> (i32, i32) {
    %c0_i32 = arith.constant 0 : i32
    %c0_i32_0 = arith.constant 0 : i32
    %c0_i32_1 = arith.constant 0 : i32
    return %c0_i32, %c0_i32_0 : i32, i32
  }
  func.func @transform_5(%arg0: i32, %arg1: i32) -> (i32, i32) {
    %c0_i32 = arith.constant 0 : i32
    %c0_i32_0 = arith.constant 0 : i32
    %c0_i32_1 = arith.constant 0 : i32
    return %c0_i32, %c0_i32_0 : i32, i32
  }
  func.func @transform_6(%arg0: i32, %arg1: i32) -> (i32, i32) {
    %c0_i32 = arith.constant 0 : i32
    %c0_i32_0 = arith.constant 0 : i32
    %c0_i32_1 = arith.constant 0 : i32
    return %c0_i32, %c0_i32_0 : i32, i32
  }
  func.func @transform_7(%arg0: i32, %arg1: i32) -> (i32, i32) {
    %c0_i32 = arith.constant 0 : i32
    %c0_i32_0 = arith.constant 0 : i32
    %c0_i32_1 = arith.constant 0 : i32
    return %c0_i32, %c0_i32_0 : i32, i32
  }
  func.func @transform_8(%arg0: i32, %arg1: i32) -> (i32, i32) {
    %c0_i32 = arith.constant 0 : i32
    %c0_i32_0 = arith.constant 0 : i32
    %c0_i32_1 = arith.constant 0 : i32
    return %c0_i32, %c0_i32_0 : i32, i32
  }
  func.func @transform_9(%arg0: i32, %arg1: i32) -> (i32, i32) {
    %c0_i32 = arith.constant 0 : i32
    %c0_i32_0 = arith.constant 0 : i32
    %c0_i32_1 = arith.constant 0 : i32
    return %c0_i32, %c0_i32_0 : i32, i32
  }
  func.func @transform_10(%arg0: i32, %arg1: i32) -> (i32, i32, i32, i32) {
    %c0_i32 = arith.constant 0 : i32
    %c0_i32_0 = arith.constant 0 : i32
    %c0_i32_1 = arith.constant 0 : i32
    return %arg0, %arg1, %c0_i32, %c0_i32_0 : i32, i32, i32, i32
  }
}

</mosaic_0001>

<llo_original>
// kernel: up_forward.1
$region0: #{up_forward.1}
  #allocation0 [shape = 'u32[]', space=smem, size = 0x4, offset = 0x4, fixed_abs, tag = 'smem constant byte address 0x4 - core index']
  #allocation1 [shape = 'u32[144,128]{1,0:T(1,128)}', space=vmem, size = 0x12000, scoped, tag = 'internal scratch']
  #allocation2 [shape = 'bf16[20,18,8]{2,1,0:T(8,128)(2,1)}', space=vmem, size = 0x1e000, scoped, tag = 'scratch operand']
  #allocation3 [shape = 'bf16[18,18,4]{2,1,0:T(8,128)(2,1)}', space=vmem, size = 0x1b000, scoped, tag = 'scratch operand']
  %s0 = inlined_call_operand.vmem [shape: bf16[2,8,16,8], index: 0, kind: input, shape index: {}]
  %s1 = inlined_call_operand.vmem [shape: bf16[2,16,16,4], index: 1, kind: input, shape index: {}]
  %s2 = inlined_call_operand.vmem [shape: bf16[8,16], index: 2, kind: input, shape index: {}]
  %s3 = inlined_call_operand.vmem [shape: f32[1,4], index: 3, kind: input, shape index: {}]
  %s4 = inlined_call_operand.vmem [shape: bf16[72,4], index: 4, kind: input, shape index: {}]
  %s5 = inlined_call_operand.vmem [shape: f32[1,4], index: 5, kind: input, shape index: {}]
  %s6 = inlined_call_operand.vmem [shape: f32[1,4], index: 6, kind: input, shape index: {}]
  %s7 = inlined_call_operand.vmem [shape: bf16[36,4], index: 7, kind: input, shape index: {}]
  %s8 = inlined_call_operand.vmem [shape: f32[1,4], index: 8, kind: input, shape index: {}]
  %s9 = inlined_call_operand.vmem [shape: f32[1,4], index: 9, kind: input, shape index: {}]
  %s10 = inlined_call_operand.vmem [shape: f32[2,16,16,4], index: 10, kind: output, shape index: {}]
  %s11 = sld [smem:[#allocation0]]
  $region88: #{up_forward.1} parent=0
    _
  %s13 = ssub.s32 1, %s11
  %s14 = scalar_select 0, %s13, %s11
  loop: start=0, step=1, limit=4
  $region2: #{up_forward.1} parent=0 // loop_pre_header
    _
  $region3: #{up_forward.1} parent=0 // loop_header
    %s16 = sphi 0, %s20
    %p17 = scmp.ge.s32.totalorder %s16, 4
    %s23 = sphi 0, %s35
    %s24 = sphi 0, %s31
    %s25 = sphi 0, %s23
    %s26 = sphi 0, %s24
    %s27 = sphi 0, %s25
    %s28 = sphi 0, %s26
    %s38 = sphi 0, %s40
    %s41 = sphi 0, %s38
    %s42 = sphi 0, %s41
    %s58 = sphi 0, %s42
    %s64 = sphi 0, %s66
    %s67 = sphi 0, %s64
    %s68 = sphi 0, %s67
    %s84 = sphi 0, %s68
    %s88 = sphi 0, %s88
    %s90 = sphi 0, %s88
    %s91 = sphi 0, %s90
    %s105 = sphi 0, %s91
    %s109 = sphi 0, %s109
    %s111 = sphi 0, %s109
    %s112 = sphi 0, %s111
    %s126 = sphi 0, %s112
    %s130 = sphi 0, %s130
    %s132 = sphi 0, %s130
    %s133 = sphi 0, %s132
    %s147 = sphi 0, %s133
    %s151 = sphi 0, %s151
    %s153 = sphi 0, %s151
    %s154 = sphi 0, %s153
    %s168 = sphi 0, %s154
    %s172 = sphi 0, %s172
    %s174 = sphi 0, %s172
    %s175 = sphi 0, %s174
    %s189 = sphi 0, %s175
    %s193 = sphi 0, %s193
    %s195 = sphi 0, %s193
    %s196 = sphi 0, %s195
    %s210 = sphi 0, %s196
    %s214 = sphi 0, %s214
    %s216 = sphi 0, %s214
    %s217 = sphi 0, %s216
    %s231 = sphi 0, %s217
    %s235 = sphi 0, %s235
    %s237 = sphi 0, %s235
    %s238 = sphi 0, %s237
    %s252 = sphi 0, %s238
    %s260 = sphi 0, %s262
    %s263 = sphi 0, %s260
    %s264 = sphi 0, %s263
    %s280 = sphi 0, %s264
  $region4: #{up_forward.1} parent=0 // loop_header_branch
    %19 = sbr.rel (%p17) target = $region8
  $region5: #{up_forward.1} parent=0 // loop_body
    %s21 = ssub.s32 %s16, 1
    %s22 = ssub.s32 %s16, 2
    %s29 = sadd.s32 1, %s24
    %p30 = scmp.ge.s32.totalorder %s29, 1
    %s31 = scalar_select %p30, 0, %s29
    %s32 = sadd.s32 1, %s23
    %s33 = scalar_select %p30, %s32, %s23
    %p34 = scmp.ge.s32.totalorder %s33, 2
    %s35 = scalar_select %p34, 0, %s33
    %s36 = ssub.s32 %s23, %s35
    %p37 = scmp.eq.s32.totalorder %s36, 0
    %s39 = sadd.s32 %s38, 1
    %s40 = scalar_select %p37, %s38, %s39
    %p43 = pneg %p37
    %p44 = scmp.eq.s32.totalorder %s16, 1
    %p45 = por %p43, %p44
    %p46 = scmp.ne.s32.totalorder %s38, %s41
    %p47 = scmp.eq.s32.totalorder %s16, 0
    %p48 = por %p46, %p47
    %p49 = scmp.ne.s32.totalorder %s38, %s41
    %p50 = scmp.eq.s32.totalorder %s21, 1
    %p51 = por %p49, %p50
    %p52 = scmp.ne.s32.totalorder %s41, %s42
    %p53 = scmp.eq.s32.totalorder %s21, 0
    %p54 = por %p52, %p53
    %p55 = scmp.ne.s32.totalorder %s41, %s42
    %p56 = scmp.eq.s32.totalorder %s22, 1
    %p57 = por %p55, %p56
    %p59 = scmp.ne.s32.totalorder %s42, %s58
    %p60 = scmp.eq.s32.totalorder %s22, 0
    %p61 = por %p59, %p60
    %s62 = ssub.s32 %s23, %s35
    %p63 = scmp.eq.s32.totalorder %s62, 0
    %s65 = sadd.s32 %s64, 1
    %s66 = scalar_select %p63, %s64, %s65
    %p69 = pneg %p63
    %p70 = scmp.eq.s32.totalorder %s16, 1
    %p71 = por %p69, %p70
    %p72 = scmp.ne.s32.totalorder %s64, %s67
    %p73 = scmp.eq.s32.totalorder %s16, 0
    %p74 = por %p72, %p73
    %p75 = scmp.ne.s32.totalorder %s64, %s67
    %p76 = scmp.eq.s32.totalorder %s21, 1
    %p77 = por %p75, %p76
    %p78 = scmp.ne.s32.totalorder %s67, %s68
    %p79 = scmp.eq.s32.totalorder %s21, 0
    %p80 = por %p78, %p79
    %p81 = scmp.ne.s32.totalorder %s67, %s68
    %p82 = scmp.eq.s32.totalorder %s22, 1
    %p83 = por %p81, %p82
    %p85 = scmp.ne.s32.totalorder %s68, %s84
    %p86 = scmp.eq.s32.totalorder %s22, 0
    %p87 = por %p85, %p86
    %s89 = sadd.s32 %s88, 1
    %p92 = scmp.eq.s32.totalorder %s16, 1
    %p93 = scmp.ne.s32.totalorder %s88, %s90
    %p94 = scmp.eq.s32.totalorder %s16, 0
    %p95 = por %p93, %p94
    %p96 = scmp.ne.s32.totalorder %s88, %s90
    %p97 = scmp.eq.s32.totalorder %s21, 1
    %p98 = por %p96, %p97
    %p99 = scmp.ne.s32.totalorder %s90, %s91
    %p100 = scmp.eq.s32.totalorder %s21, 0
    %p101 = por %p99, %p100
    %p102 = scmp.ne.s32.totalorder %s90, %s91
    %p103 = scmp.eq.s32.totalorder %s22, 1
    %p104 = por %p102, %p103
    %p106 = scmp.ne.s32.totalorder %s91, %s105
    %p107 = scmp.eq.s32.totalorder %s22, 0
    %p108 = por %p106, %p107
    %s110 = sadd.s32 %s109, 1
    %p113 = scmp.eq.s32.totalorder %s16, 1
    %p114 = scmp.ne.s32.totalorder %s109, %s111
    %p115 = scmp.eq.s32.totalorder %s16, 0
    %p116 = por %p114, %p115
    %p117 = scmp.ne.s32.totalorder %s109, %s111
    %p118 = scmp.eq.s32.totalorder %s21, 1
    %p119 = por %p117, %p118
    %p120 = scmp.ne.s32.totalorder %s111, %s112
    %p121 = scmp.eq.s32.totalorder %s21, 0
    %p122 = por %p120, %p121
    %p123 = scmp.ne.s32.totalorder %s111, %s112
    %p124 = scmp.eq.s32.totalorder %s22, 1
    %p125 = por %p123, %p124
    %p127 = scmp.ne.s32.totalorder %s112, %s126
    %p128 = scmp.eq.s32.totalorder %s22, 0
    %p129 = por %p127, %p128
    %s131 = sadd.s32 %s130, 1
    %p134 = scmp.eq.s32.totalorder %s16, 1
    %p135 = scmp.ne.s32.totalorder %s130, %s132
    %p136 = scmp.eq.s32.totalorder %s16, 0
    %p137 = por %p135, %p136
    %p138 = scmp.ne.s32.totalorder %s130, %s132
    %p139 = scmp.eq.s32.totalorder %s21, 1
    %p140 = por %p138, %p139
    %p141 = scmp.ne.s32.totalorder %s132, %s133
    %p142 = scmp.eq.s32.totalorder %s21, 0
    %p143 = por %p141, %p142
    %p144 = scmp.ne.s32.totalorder %s132, %s133
    %p145 = scmp.eq.s32.totalorder %s22, 1
    %p146 = por %p144, %p145
    %p148 = scmp.ne.s32.totalorder %s133, %s147
    %p149 = scmp.eq.s32.totalorder %s22, 0
    %p150 = por %p148, %p149
    %s152 = sadd.s32 %s151, 1
    %p155 = scmp.eq.s32.totalorder %s16, 1
    %p156 = scmp.ne.s32.totalorder %s151, %s153
    %p157 = scmp.eq.s32.totalorder %s16, 0
    %p158 = por %p156, %p157
    %p159 = scmp.ne.s32.totalorder %s151, %s153
    %p160 = scmp.eq.s32.totalorder %s21, 1
    %p161 = por %p159, %p160
    %p162 = scmp.ne.s32.totalorder %s153, %s154
    %p163 = scmp.eq.s32.totalorder %s21, 0
    %p164 = por %p162, %p163
    %p165 = scmp.ne.s32.totalorder %s153, %s154
    %p166 = scmp.eq.s32.totalorder %s22, 1
    %p167 = por %p165, %p166
    %p169 = scmp.ne.s32.totalorder %s154, %s168
    %p170 = scmp.eq.s32.totalorder %s22, 0
    %p171 = por %p169, %p170
    %s173 = sadd.s32 %s172, 1
    %p176 = scmp.eq.s32.totalorder %s16, 1
    %p177 = scmp.ne.s32.totalorder %s172, %s174
    %p178 = scmp.eq.s32.totalorder %s16, 0
    %p179 = por %p177, %p178
    %p180 = scmp.ne.s32.totalorder %s172, %s174
    %p181 = scmp.eq.s32.totalorder %s21, 1
    %p182 = por %p180, %p181
    %p183 = scmp.ne.s32.totalorder %s174, %s175
    %p184 = scmp.eq.s32.totalorder %s21, 0
    %p185 = por %p183, %p184
    %p186 = scmp.ne.s32.totalorder %s174, %s175
    %p187 = scmp.eq.s32.totalorder %s22, 1
    %p188 = por %p186, %p187
    %p190 = scmp.ne.s32.totalorder %s175, %s189
    %p191 = scmp.eq.s32.totalorder %s22, 0
    %p192 = por %p190, %p191
    %s194 = sadd.s32 %s193, 1
    %p197 = scmp.eq.s32.totalorder %s16, 1
    %p198 = scmp.ne.s32.totalorder %s193, %s195
    %p199 = scmp.eq.s32.totalorder %s16, 0
    %p200 = por %p198, %p199
    %p201 = scmp.ne.s32.totalorder %s193, %s195
    %p202 = scmp.eq.s32.totalorder %s21, 1
    %p203 = por %p201, %p202
    %p204 = scmp.ne.s32.totalorder %s195, %s196
    %p205 = scmp.eq.s32.totalorder %s21, 0
    %p206 = por %p204, %p205
    %p207 = scmp.ne.s32.totalorder %s195, %s196
    %p208 = scmp.eq.s32.totalorder %s22, 1
    %p209 = por %p207, %p208
    %p211 = scmp.ne.s32.totalorder %s196, %s210
    %p212 = scmp.eq.s32.totalorder %s22, 0
    %p213 = por %p211, %p212
    %s215 = sadd.s32 %s214, 1
    %p218 = scmp.eq.s32.totalorder %s16, 1
    %p219 = scmp.ne.s32.totalorder %s214, %s216
    %p220 = scmp.eq.s32.totalorder %s16, 0
    %p221 = por %p219, %p220
    %p222 = scmp.ne.s32.totalorder %s214, %s216
    %p223 = scmp.eq.s32.totalorder %s21, 1
    %p224 = por %p222, %p223
    %p225 = scmp.ne.s32.totalorder %s216, %s217
    %p226 = scmp.eq.s32.totalorder %s21, 0
    %p227 = por %p225, %p226
    %p228 = scmp.ne.s32.totalorder %s216, %s217
    %p229 = scmp.eq.s32.totalorder %s22, 1
    %p230 = por %p228, %p229
    %p232 = scmp.ne.s32.totalorder %s217, %s231
    %p233 = scmp.eq.s32.totalorder %s22, 0
    %p234 = por %p232, %p233
    %s236 = sadd.s32 %s235, 1
    %p239 = scmp.eq.s32.totalorder %s16, 1
    %p240 = scmp.ne.s32.totalorder %s235, %s237
    %p241 = scmp.eq.s32.totalorder %s16, 0
    %p242 = por %p240, %p241
    %p243 = scmp.ne.s32.totalorder %s235, %s237
    %p244 = scmp.eq.s32.totalorder %s21, 1
    %p245 = por %p243, %p244
    %p246 = scmp.ne.s32.totalorder %s237, %s238
    %p247 = scmp.eq.s32.totalorder %s21, 0
    %p248 = por %p246, %p247
    %p249 = scmp.ne.s32.totalorder %s237, %s238
    %p250 = scmp.eq.s32.totalorder %s22, 1
    %p251 = por %p249, %p250
    %p253 = scmp.ne.s32.totalorder %s238, %s252
    %p254 = scmp.eq.s32.totalorder %s22, 0
    %p255 = por %p253, %p254
    %s256 = ssub.s32 %s23, %s35
    %s257 = ssub.s32 %s24, %s31
    %s258 = sor.u32 %s256, %s257
    %p259 = scmp.eq.s32.totalorder %s258, 0
    %s261 = sadd.s32 %s260, 1
    %s262 = scalar_select %p259, %s260, %s261
    %p265 = pneg %p259
    %p266 = scmp.eq.s32.totalorder %s16, 1
    %p267 = por %p265, %p266
    %p268 = scmp.ne.s32.totalorder %s260, %s263
    %p269 = scmp.eq.s32.totalorder %s16, 0
    %p270 = por %p268, %p269
    %p271 = scmp.ne.s32.totalorder %s260, %s263
    %p272 = scmp.eq.s32.totalorder %s21, 1
    %p273 = por %p271, %p272
    %p274 = scmp.ne.s32.totalorder %s263, %s264
    %p275 = scmp.eq.s32.totalorder %s21, 0
    %p276 = por %p274, %p275
    %p277 = scmp.ne.s32.totalorder %s263, %s264
    %p278 = scmp.eq.s32.totalorder %s22, 1
    %p279 = por %p277, %p278
    %p281 = scmp.ne.s32.totalorder %s264, %s280
    %p282 = scmp.eq.s32.totalorder %s22, 0
    %p283 = por %p281, %p282
    %p284 = scmp.le.s32.totalorder 1, %s16
    %p285 = scmp.lt.s32.totalorder %s16, 3
    %p286 = pnand %p284, %p285
    %p287 = pneg %p286
    // Predicated region
    $region9: #{up_forward.1} parent=5 // pred_check
      _
    $region10: #{up_forward.1} parent=5 // pred_check_branch
      %289 = sbr.rel (%p286) target = $region12
    $region11: #{up_forward.1} parent=5 // pred_region
      %s290 = ssub.s32 %s16, 1
      // Predicated region
      $region13: #{up_forward.1} parent=11 // pred_check
        %p291 = pneg %p101
      $region14: #{up_forward.1} parent=11 // pred_check_branch
        %293 = sbr.rel (%p291) target = $region16
      $region15: #{up_forward.1} parent=11 // pred_region
        _
      $region16: #{up_forward.1} parent=11 // pred_fallthru
        _
      // Predicated region
      $region17: #{up_forward.1} parent=11 // pred_check
        %p294 = pneg %p122
      $region18: #{up_forward.1} parent=11 // pred_check_branch
        %296 = sbr.rel (%p294) target = $region20
      $region19: #{up_forward.1} parent=11 // pred_region
        _
      $region20: #{up_forward.1} parent=11 // pred_fallthru
        _
      // Predicated region
      $region21: #{up_forward.1} parent=11 // pred_check
        %p297 = pneg %p143
      $region22: #{up_forward.1} parent=11 // pred_check_branch
        %299 = sbr.rel (%p297) target = $region24
      $region23: #{up_forward.1} parent=11 // pred_region
        _
      $region24: #{up_forward.1} parent=11 // pred_fallthru
        _
      // Predicated region
      $region25: #{up_forward.1} parent=11 // pred_check
        %p300 = pneg %p164
      $region26: #{up_forward.1} parent=11 // pred_check_branch
        %302 = sbr.rel (%p300) target = $region28
      $region27: #{up_forward.1} parent=11 // pred_region
        _
      $region28: #{up_forward.1} parent=11 // pred_fallthru
        _
      // Predicated region
      $region29: #{up_forward.1} parent=11 // pred_check
        %p303 = pneg %p185
      $region30: #{up_forward.1} parent=11 // pred_check_branch
        %305 = sbr.rel (%p303) target = $region32
      $region31: #{up_forward.1} parent=11 // pred_region
        _
      $region32: #{up_forward.1} parent=11 // pred_fallthru
        _
      // Predicated region
      $region33: #{up_forward.1} parent=11 // pred_check
        %p306 = pneg %p206
      $region34: #{up_forward.1} parent=11 // pred_check_branch
        %308 = sbr.rel (%p306) target = $region36
      $region35: #{up_forward.1} parent=11 // pred_region
        _
      $region36: #{up_forward.1} parent=11 // pred_fallthru
        _
      // Predicated region
      $region37: #{up_forward.1} parent=11 // pred_check
        %p309 = pneg %p227
      $region38: #{up_forward.1} parent=11 // pred_check_branch
        %311 = sbr.rel (%p309) target = $region40
      $region39: #{up_forward.1} parent=11 // pred_region
        _
      $region40: #{up_forward.1} parent=11 // pred_fallthru
        _
      // Predicated region
      $region41: #{up_forward.1} parent=11 // pred_check
        %p312 = pneg %p248
      $region42: #{up_forward.1} parent=11 // pred_check_branch
        %314 = sbr.rel (%p312) target = $region44
      $region43: #{up_forward.1} parent=11 // pred_region
        _
      $region44: #{up_forward.1} parent=11 // pred_fallthru
        _
    $region12: #{up_forward.1} parent=5 // pred_fallthru
      _
    %p315 = scmp.lt.s32.totalorder %s16, 2
    // Predicated region
    $region45: #{up_forward.1} parent=5 // pred_check
      %p316 = pneg %p315
    $region46: #{up_forward.1} parent=5 // pred_check_branch
      %318 = sbr.rel (%p316) target = $region48
    $region47: #{up_forward.1} parent=5 // pred_region
      // Predicated region
      $region49: #{up_forward.1} parent=47 // pred_check
        %p319 = pneg %p48
      $region50: #{up_forward.1} parent=47 // pred_check_branch
        %321 = sbr.rel (%p319) target = $region52
      $region51: #{up_forward.1} parent=47 // pred_region
        %p322 = scmp.lt.s32.totalorder %s23, 1
        %s323 = scalar_select %p322, %s23, 1
        %s324 = smul.addr %s323, 16
        %s325 = smul.addr %s324, 4
        %s326 = scalar_lea.vmem %s0, %s325
      $region52: #{up_forward.1} parent=47 // pred_fallthru
        _
      // Predicated region
      $region53: #{up_forward.1} parent=47 // pred_check
        %p327 = pneg %p74
      $region54: #{up_forward.1} parent=47 // pred_check_branch
        %329 = sbr.rel (%p327) target = $region56
      $region55: #{up_forward.1} parent=47 // pred_region
        %p330 = scmp.lt.s32.totalorder %s23, 1
        %s331 = scalar_select %p330, %s23, 1
        %s332 = smul.addr %s331, 32
        %s333 = smul.addr %s332, 4
        %s334 = scalar_lea.vmem %s1, %s333
      $region56: #{up_forward.1} parent=47 // pred_fallthru
        _
    $region48: #{up_forward.1} parent=5 // pred_fallthru
      _
    %p335 = scmp.le.s32.totalorder 1, %s16
    %p336 = scmp.lt.s32.totalorder %s16, 3
    %p337 = pnand %p335, %p336
    %p338 = pneg %p337
    // Predicated region
    $region57: #{up_forward.1} parent=5 // pred_check
      _
    $region58: #{up_forward.1} parent=5 // pred_check_branch
      %340 = sbr.rel (%p337) target = $region60
    $region59: #{up_forward.1} parent=5 // pred_region
      %s341 = ssub.s32 %s16, 1
      %p342 = scmp.lt.s32.totalorder %s25, 1
      %s343 = scalar_select %p342, %s25, 1
      %s344 = smul.addr %s343, 16
      %s345 = smul.addr %s344, 4
      %s346 = scalar_lea.vmem %s0, %s345
      %p347 = pneg %p54
      %p348 = pneg %p51
      %p349 = scmp.lt.s32.totalorder %s25, 1
      %s350 = scalar_select %p349, %s25, 1
      %s351 = smul.addr %s350, 32
      %s352 = smul.addr %s351, 4
      %s353 = scalar_lea.vmem %s1, %s352
      %p354 = pneg %p80
      %p355 = pneg %p77
      %p356 = pneg %p101
      %p357 = pneg %p98
      %p358 = pneg %p122
      %p359 = pneg %p119
      %p360 = pneg %p143
      %p361 = pneg %p140
      %p362 = pneg %p164
      %p363 = pneg %p161
      %p364 = pneg %p185
      %p365 = pneg %p182
      %p366 = pneg %p206
      %p367 = pneg %p203
      %p368 = pneg %p227
      %p369 = pneg %p224
      %p370 = pneg %p248
      %p371 = pneg %p245
      %p372 = pneg %p276
      %p373 = pneg %p273
      %s374 = smul.u32 16, %s26
      %p375 = scmp.lt.s32.totalorder %s25, 1
      %s376 = scalar_select %p375, %s25, 1
      %p377 = scmp.lt.s32.totalorder %s374, 15
      %s378 = scalar_select %p377, %s374, 15
      %s379 = smul.addr %s378, 2
      %s380 = smul.addr %s376, 32
      %s381 = sadd.s32 %s379, %s380
      %s382 = smul.addr %s381, 8
      %s383 = scalar_lea.vmem %s10, %s382
      %p384 = scmp.lt.s32.totalorder %s25, 1
      %s385 = scalar_select %p384, %s25, 1
      %s386 = smul.addr %s385, 16
      %s387 = smul.addr %s386, 4
      %s388 = scalar_lea.vmem %s0, %s387
      %p389 = scmp.lt.s32.totalorder %s25, 1
      %s390 = scalar_select %p389, %s25, 1
      %s391 = smul.addr %s390, 32
      %s392 = smul.addr %s391, 4
      %s393 = scalar_lea.vmem %s1, %s392
      %s394 = smul.u32 16, %s26
      %p395 = scmp.lt.s32.totalorder %s25, 1
      %s396 = scalar_select %p395, %s25, 1
      %p397 = scmp.lt.s32.totalorder %s394, 15
      %s398 = scalar_select %p397, %s394, 15
      %s399 = smul.addr %s398, 2
      %s400 = smul.addr %s396, 32
      %s401 = sadd.s32 %s399, %s400
      %s402 = smul.addr %s401, 8
      %s403 = scalar_lea.vmem %s10, %s402
      %s404 = smul.u32 16, %s26
      %p406 = scmp.eq.s32.totalorder %s26, 0
      // Predicated region
      $region61: #{up_forward.1} parent=59 // pred_check
        %p407 = pneg %p406
      $region62: #{up_forward.1} parent=59 // pred_check_branch
        %409 = sbr.rel (%p407) target = $region64
      $region63: #{up_forward.1} parent=59 // pred_region
        %vm410 = vcmask 60416
        %411 = vst.msk [vmem:[#allocation2] sm:$0xf] %vm410, 0
        %412 = vst.msk [vmem:[#allocation2 + $0x4] sm:$0xf] %vm410, 0
        %vm413 = vcmask 57344
        %414 = vst.msk [vmem:[#allocation2 + $0x8] sm:$0x1] %vm413, 0
        %415 = vst.msk [vmem:[#allocation2 + $0xc] sm:$0xf] %vm410, 0
        %416 = vst.msk [vmem:[#allocation2 + $0x10] sm:$0xf] %vm410, 0
        %417 = vst.msk [vmem:[#allocation2 + $0x14] sm:$0x1] %vm413, 0
        %s418 = scalar_lea.vmem [#allocation2], 216
        %419 = vst.msk [vmem:[%s418] sm:$0xf] %vm410, 0
        %420 = vst.msk [vmem:[%s418 + $0x4] sm:$0xf] %vm410, 0
        %421 = vst.msk [vmem:[%s418 + $0x8] sm:$0x1] %vm413, 0
        %422 = vst.msk [vmem:[%s418 + $0xc] sm:$0xf] %vm410, 0
        %423 = vst.msk [vmem:[%s418 + $0x10] sm:$0xf] %vm410, 0
        %424 = vst.msk [vmem:[%s418 + $0x14] sm:$0x1] %vm413, 0
        %vm425 = vcmask 57344
        %vm426 = vsmask.f32 256
        %vm427 = vmand %vm425, %vm426
        %v428 = vld [vmem:[#allocation2] sm:$0x1]
        %v429 = vsel %vm427, 0, %v428
        %430 = vst [vmem:[#allocation2] sm:$0x1] %v429
        %v431 = vld [vmem:[#allocation2 + $0xc] sm:$0x1]
        %v432 = vsel %vm427, 0, %v431
        %433 = vst [vmem:[#allocation2 + $0xc] sm:$0x1] %v432
        %v434 = vld [vmem:[#allocation2 + $0x18] sm:$0x1]
        %v435 = vsel %vm427, 0, %v434
        %436 = vst [vmem:[#allocation2 + $0x18] sm:$0x1] %v435
        %v437 = vld [vmem:[#allocation2 + $0x24] sm:$0x1]
        %v438 = vsel %vm427, 0, %v437
        %439 = vst [vmem:[#allocation2 + $0x24] sm:$0x1] %v438
        %v440 = vld [vmem:[#allocation2 + $0x30] sm:$0x1]
        %v441 = vsel %vm427, 0, %v440
        %442 = vst [vmem:[#allocation2 + $0x30] sm:$0x1] %v441
        %v443 = vld [vmem:[#allocation2 + $0x3c] sm:$0x1]
        %v444 = vsel %vm427, 0, %v443
        %445 = vst [vmem:[#allocation2 + $0x3c] sm:$0x1] %v444
        %v446 = vld [vmem:[#allocation2 + $0x48] sm:$0x1]
        %v447 = vsel %vm427, 0, %v446
        %448 = vst [vmem:[#allocation2 + $0x48] sm:$0x1] %v447
        %v449 = vld [vmem:[#allocation2 + $0x54] sm:$0x1]
        %v450 = vsel %vm427, 0, %v449
        %451 = vst [vmem:[#allocation2 + $0x54] sm:$0x1] %v450
        %v452 = vld [vmem:[#allocation2 + $0x60] sm:$0x1]
        %v453 = vsel %vm427, 0, %v452
        %454 = vst [vmem:[#allocation2 + $0x60] sm:$0x1] %v453
        %v455 = vld [vmem:[#allocation2 + $0x6c] sm:$0x1]
        %v456 = vsel %vm427, 0, %v455
        %457 = vst [vmem:[#allocation2 + $0x6c] sm:$0x1] %v456
        %v458 = vld [vmem:[#allocation2 + $0x78] sm:$0x1]
        %v459 = vsel %vm427, 0, %v458
        %460 = vst [vmem:[#allocation2 + $0x78] sm:$0x1] %v459
        %v461 = vld [vmem:[#allocation2 + $0x84] sm:$0x1]
        %v462 = vsel %vm427, 0, %v461
        %463 = vst [vmem:[#allocation2 + $0x84] sm:$0x1] %v462
        %v464 = vld [vmem:[#allocation2 + $0x90] sm:$0x1]
        %v465 = vsel %vm427, 0, %v464
        %466 = vst [vmem:[#allocation2 + $0x90] sm:$0x1] %v465
        %v467 = vld [vmem:[#allocation2 + $0x9c] sm:$0x1]
        %v468 = vsel %vm427, 0, %v467
        %469 = vst [vmem:[#allocation2 + $0x9c] sm:$0x1] %v468
        %v470 = vld [vmem:[#allocation2 + $0xa8] sm:$0x1]
        %v471 = vsel %vm427, 0, %v470
        %472 = vst [vmem:[#allocation2 + $0xa8] sm:$0x1] %v471
        %v473 = vld [vmem:[#allocation2 + $0xb4] sm:$0x1]
        %v474 = vsel %vm427, 0, %v473
        %475 = vst [vmem:[#allocation2 + $0xb4] sm:$0x1] %v474
        %v476 = vld [vmem:[#allocation2 + $0xc0] sm:$0x1]
        %v477 = vsel %vm427, 0, %v476
        %478 = vst [vmem:[#allocation2 + $0xc0] sm:$0x1] %v477
        %v479 = vld [vmem:[#allocation2 + $0xcc] sm:$0x1]
        %v480 = vsel %vm427, 0, %v479
        %481 = vst [vmem:[#allocation2 + $0xcc] sm:$0x1] %v480
        %v482 = vld [vmem:[#allocation2 + $0xd8] sm:$0x1]
        %v483 = vsel %vm427, 0, %v482
        %484 = vst [vmem:[#allocation2 + $0xd8] sm:$0x1] %v483
        %v485 = vld [vmem:[#allocation2 + $0xe4] sm:$0x1]
        %v486 = vsel %vm427, 0, %v485
        %487 = vst [vmem:[#allocation2 + $0xe4] sm:$0x1] %v486
        %vm488 = vsmask.f32 7938
        %vm489 = vmand %vm425, %vm488
        %v490 = vld [vmem:[#allocation2 + $0x8] sm:$0x1]
        %v491 = vsel %vm489, 0, %v490
        %492 = vst [vmem:[#allocation2 + $0x8] sm:$0x1] %v491
        %v493 = vld [vmem:[#allocation2 + $0x14] sm:$0x1]
        %v494 = vsel %vm489, 0, %v493
        %495 = vst [vmem:[#allocation2 + $0x14] sm:$0x1] %v494
        %v496 = vld [vmem:[#allocation2 + $0x20] sm:$0x1]
        %v497 = vsel %vm489, 0, %v496
        %498 = vst [vmem:[#allocation2 + $0x20] sm:$0x1] %v497
        %v499 = vld [vmem:[#allocation2 + $0x2c] sm:$0x1]
        %v500 = vsel %vm489, 0, %v499
        %501 = vst [vmem:[#allocation2 + $0x2c] sm:$0x1] %v500
        %v502 = vld [vmem:[#allocation2 + $0x38] sm:$0x1]
        %v503 = vsel %vm489, 0, %v502
        %504 = vst [vmem:[#allocation2 + $0x38] sm:$0x1] %v503
        %v505 = vld [vmem:[#allocation2 + $0x44] sm:$0x1]
        %v506 = vsel %vm489, 0, %v505
        %507 = vst [vmem:[#allocation2 + $0x44] sm:$0x1] %v506
        %v508 = vld [vmem:[#allocation2 + $0x50] sm:$0x1]
        %v509 = vsel %vm489, 0, %v508
        %510 = vst [vmem:[#allocation2 + $0x50] sm:$0x1] %v509
        %v511 = vld [vmem:[#allocation2 + $0x5c] sm:$0x1]
        %v512 = vsel %vm489, 0, %v511
        %513 = vst [vmem:[#allocation2 + $0x5c] sm:$0x1] %v512
        %v514 = vld [vmem:[#allocation2 + $0x68] sm:$0x1]
        %v515 = vsel %vm489, 0, %v514
        %516 = vst [vmem:[#allocation2 + $0x68] sm:$0x1] %v515
        %v517 = vld [vmem:[#allocation2 + $0x74] sm:$0x1]
        %v518 = vsel %vm489, 0, %v517
        %519 = vst [vmem:[#allocation2 + $0x74] sm:$0x1] %v518
        %v520 = vld [vmem:[#allocation2 + $0x80] sm:$0x1]
        %v521 = vsel %vm489, 0, %v520
        %522 = vst [vmem:[#allocation2 + $0x80] sm:$0x1] %v521
        %v523 = vld [vmem:[#allocation2 + $0x8c] sm:$0x1]
        %v524 = vsel %vm489, 0, %v523
        %525 = vst [vmem:[#allocation2 + $0x8c] sm:$0x1] %v524
        %v526 = vld [vmem:[#allocation2 + $0x98] sm:$0x1]
        %v527 = vsel %vm489, 0, %v526
        %528 = vst [vmem:[#allocation2 + $0x98] sm:$0x1] %v527
        %v529 = vld [vmem:[#allocation2 + $0xa4] sm:$0x1]
        %v530 = vsel %vm489, 0, %v529
        %531 = vst [vmem:[#allocation2 + $0xa4] sm:$0x1] %v530
        %v532 = vld [vmem:[#allocation2 + $0xb0] sm:$0x1]
        %v533 = vsel %vm489, 0, %v532
        %534 = vst [vmem:[#allocation2 + $0xb0] sm:$0x1] %v533
        %v535 = vld [vmem:[#allocation2 + $0xbc] sm:$0x1]
        %v536 = vsel %vm489, 0, %v535
        %537 = vst [vmem:[#allocation2 + $0xbc] sm:$0x1] %v536
        %v538 = vld [vmem:[#allocation2 + $0xc8] sm:$0x1]
        %v539 = vsel %vm489, 0, %v538
        %540 = vst [vmem:[#allocation2 + $0xc8] sm:$0x1] %v539
        %v541 = vld [vmem:[#allocation2 + $0xd4] sm:$0x1]
        %v542 = vsel %vm489, 0, %v541
        %543 = vst [vmem:[#allocation2 + $0xd4] sm:$0x1] %v542
        %v544 = vld [vmem:[#allocation2 + $0xe0] sm:$0x1]
        %v545 = vsel %vm489, 0, %v544
        %546 = vst [vmem:[#allocation2 + $0xe0] sm:$0x1] %v545
        %v547 = vld [vmem:[#allocation2 + $0xec] sm:$0x1]
        %v548 = vsel %vm489, 0, %v547
        %549 = vst [vmem:[#allocation2 + $0xec] sm:$0x1] %v548
        %vm550 = vcmask 24576
        %vm551 = vmand %vm550, %vm426
        %v552 = vld [vmem:[#allocation3] sm:$0x1]
        %v553 = vsel %vm551, 0, %v552
        %554 = vst [vmem:[#allocation3] sm:$0x1] %v553
        %v555 = vld [vmem:[#allocation3 + $0xc] sm:$0x1]
        %v556 = vsel %vm551, 0, %v555
        %557 = vst [vmem:[#allocation3 + $0xc] sm:$0x1] %v556
        %v558 = vld [vmem:[#allocation3 + $0x18] sm:$0x1]
        %v559 = vsel %vm551, 0, %v558
        %560 = vst [vmem:[#allocation3 + $0x18] sm:$0x1] %v559
        %v561 = vld [vmem:[#allocation3 + $0x24] sm:$0x1]
        %v562 = vsel %vm551, 0, %v561
        %563 = vst [vmem:[#allocation3 + $0x24] sm:$0x1] %v562
        %v564 = vld [vmem:[#allocation3 + $0x30] sm:$0x1]
        %v565 = vsel %vm551, 0, %v564
        %566 = vst [vmem:[#allocation3 + $0x30] sm:$0x1] %v565
        %v567 = vld [vmem:[#allocation3 + $0x3c] sm:$0x1]
        %v568 = vsel %vm551, 0, %v567
        %569 = vst [vmem:[#allocation3 + $0x3c] sm:$0x1] %v568
        %v570 = vld [vmem:[#allocation3 + $0x48] sm:$0x1]
        %v571 = vsel %vm551, 0, %v570
        %572 = vst [vmem:[#allocation3 + $0x48] sm:$0x1] %v571
        %v573 = vld [vmem:[#allocation3 + $0x54] sm:$0x1]
        %v574 = vsel %vm551, 0, %v573
        %575 = vst [vmem:[#allocation3 + $0x54] sm:$0x1] %v574
        %v576 = vld [vmem:[#allocation3 + $0x60] sm:$0x1]
        %v577 = vsel %vm551, 0, %v576
        %578 = vst [vmem:[#allocation3 + $0x60] sm:$0x1] %v577
        %v579 = vld [vmem:[#allocation3 + $0x6c] sm:$0x1]
        %v580 = vsel %vm551, 0, %v579
        %581 = vst [vmem:[#allocation3 + $0x6c] sm:$0x1] %v580
        %v582 = vld [vmem:[#allocation3 + $0x78] sm:$0x1]
        %v583 = vsel %vm551, 0, %v582
        %584 = vst [vmem:[#allocation3 + $0x78] sm:$0x1] %v583
        %v585 = vld [vmem:[#allocation3 + $0x84] sm:$0x1]
        %v586 = vsel %vm551, 0, %v585
        %587 = vst [vmem:[#allocation3 + $0x84] sm:$0x1] %v586
        %v588 = vld [vmem:[#allocation3 + $0x90] sm:$0x1]
        %v589 = vsel %vm551, 0, %v588
        %590 = vst [vmem:[#allocation3 + $0x90] sm:$0x1] %v589
        %v591 = vld [vmem:[#allocation3 + $0x9c] sm:$0x1]
        %v592 = vsel %vm551, 0, %v591
        %593 = vst [vmem:[#allocation3 + $0x9c] sm:$0x1] %v592
        %v594 = vld [vmem:[#allocation3 + $0xa8] sm:$0x1]
        %v595 = vsel %vm551, 0, %v594
        %596 = vst [vmem:[#allocation3 + $0xa8] sm:$0x1] %v595
        %v597 = vld [vmem:[#allocation3 + $0xb4] sm:$0x1]
        %v598 = vsel %vm551, 0, %v597
        %599 = vst [vmem:[#allocation3 + $0xb4] sm:$0x1] %v598
        %v600 = vld [vmem:[#allocation3 + $0xc0] sm:$0x1]
        %v601 = vsel %vm551, 0, %v600
        %602 = vst [vmem:[#allocation3 + $0xc0] sm:$0x1] %v601
        %v603 = vld [vmem:[#allocation3 + $0xcc] sm:$0x1]
        %v604 = vsel %vm551, 0, %v603
        %605 = vst [vmem:[#allocation3 + $0xcc] sm:$0x1] %v604
        %vm606 = vmand %vm550, %vm488
        %v607 = vld [vmem:[#allocation3 + $0x8] sm:$0x1]
        %v608 = vsel %vm606, 0, %v607
        %609 = vst [vmem:[#allocation3 + $0x8] sm:$0x1] %v608
        %v610 = vld [vmem:[#allocation3 + $0x14] sm:$0x1]
        %v611 = vsel %vm606, 0, %v610
        %612 = vst [vmem:[#allocation3 + $0x14] sm:$0x1] %v611
        %v613 = vld [vmem:[#allocation3 + $0x20] sm:$0x1]
        %v614 = vsel %vm606, 0, %v613
        %615 = vst [vmem:[#allocation3 + $0x20] sm:$0x1] %v614
        %v616 = vld [vmem:[#allocation3 + $0x2c] sm:$0x1]
        %v617 = vsel %vm606, 0, %v616
        %618 = vst [vmem:[#allocation3 + $0x2c] sm:$0x1] %v617
        %v619 = vld [vmem:[#allocation3 + $0x38] sm:$0x1]
        %v620 = vsel %vm606, 0, %v619
        %621 = vst [vmem:[#allocation3 + $0x38] sm:$0x1] %v620
        %v622 = vld [vmem:[#allocation3 + $0x44] sm:$0x1]
        %v623 = vsel %vm606, 0, %v622
        %624 = vst [vmem:[#allocation3 + $0x44] sm:$0x1] %v623
        %v625 = vld [vmem:[#allocation3 + $0x50] sm:$0x1]
        %v626 = vsel %vm606, 0, %v625
        %627 = vst [vmem:[#allocation3 + $0x50] sm:$0x1] %v626
        %v628 = vld [vmem:[#allocation3 + $0x5c] sm:$0x1]
        %v629 = vsel %vm606, 0, %v628
        %630 = vst [vmem:[#allocation3 + $0x5c] sm:$0x1] %v629
        %v631 = vld [vmem:[#allocation3 + $0x68] sm:$0x1]
        %v632 = vsel %vm606, 0, %v631
        %633 = vst [vmem:[#allocation3 + $0x68] sm:$0x1] %v632
        %v634 = vld [vmem:[#allocation3 + $0x74] sm:$0x1]
        %v635 = vsel %vm606, 0, %v634
        %636 = vst [vmem:[#allocation3 + $0x74] sm:$0x1] %v635
        %v637 = vld [vmem:[#allocation3 + $0x80] sm:$0x1]
        %v638 = vsel %vm606, 0, %v637
        %639 = vst [vmem:[#allocation3 + $0x80] sm:$0x1] %v638
        %v640 = vld [vmem:[#allocation3 + $0x8c] sm:$0x1]
        %v641 = vsel %vm606, 0, %v640
        %642 = vst [vmem:[#allocation3 + $0x8c] sm:$0x1] %v641
        %v643 = vld [vmem:[#allocation3 + $0x98] sm:$0x1]
        %v644 = vsel %vm606, 0, %v643
        %645 = vst [vmem:[#allocation3 + $0x98] sm:$0x1] %v644
        %v646 = vld [vmem:[#allocation3 + $0xa4] sm:$0x1]
        %v647 = vsel %vm606, 0, %v646
        %648 = vst [vmem:[#allocation3 + $0xa4] sm:$0x1] %v647
        %v649 = vld [vmem:[#allocation3 + $0xb0] sm:$0x1]
        %v650 = vsel %vm606, 0, %v649
        %651 = vst [vmem:[#allocation3 + $0xb0] sm:$0x1] %v650
        %v652 = vld [vmem:[#allocation3 + $0xbc] sm:$0x1]
        %v653 = vsel %vm606, 0, %v652
        %654 = vst [vmem:[#allocation3 + $0xbc] sm:$0x1] %v653
        %v655 = vld [vmem:[#allocation3 + $0xc8] sm:$0x1]
        %v656 = vsel %vm606, 0, %v655
        %657 = vst [vmem:[#allocation3 + $0xc8] sm:$0x1] %v656
        %v658 = vld [vmem:[#allocation3 + $0xd4] sm:$0x1]
        %v659 = vsel %vm606, 0, %v658
        %660 = vst [vmem:[#allocation3 + $0xd4] sm:$0x1] %v659
        %v661 = vlaneseq
        %v662 = vshrl.u32 %v661, 7
        %v663 = vadd.s32 %v662, 8
        %vm664 = vcmp.lt.s32.totalorder %v662, 0
        %v665 = vsub.s32 0, %v662
        %v666 = vsel %vm664, %v665, %v662
        %v667 = vshrl.u32 %v666, 1
        %v668 = vand.u32 %v666, 1
        %v669 = vsub.s32 0, %v668
        %v670 = vsel %vm664, %v669, %v668
        %vm671 = vcmp.lt.s32.totalorder %v663, 0
        %v672 = vsub.s32 0, %v663
        %v673 = vsel %vm671, %v672, %v663
        %v674 = vshrl.u32 %v673, 1
        %v675 = vand.u32 %v673, 1
        %v676 = vsub.s32 0, %v675
        %v677 = vsel %vm671, %v676, %v675
        %vm678 = vcmp.ne.s32.totalorder %v670, 0
        %vm679 = vcmp.ne.s32.totalorder %v677, 0
        %vm680 = vcmp.lt.s32.totalorder %v670, 0
        %vm681 = vcmp.lt.s32.totalorder %v677, 0
        %vm682 = vmand %vm680, %vm678
        %vm683 = vmand %vm681, %vm679
        %v684 = vadd.s32 %v670, 2
        %v685 = vadd.s32 %v677, 2
        %v686 = vsel %vm682, %v684, %v670
        %v687 = vsel %vm683, %v685, %v677
        loop: start=0, step=1, limit=8
        $region65: #{up_forward.1} parent=63 // loop_pre_header
          _
        $region66: #{up_forward.1} parent=63 // loop_header
          %s689 = sphi 0, %s693
          %p690 = scmp.ge.s32.totalorder %s689, 8
        $region67: #{up_forward.1} parent=63 // loop_header_branch
          %692 = sbr.rel (%p690) target = $region71
        $region68: #{up_forward.1} parent=63 // loop_body
          %s694 = smul.u32 %s689, 2
          %s695 = smul.addr %s694, 4
          %s696 = scalar_lea.vmem %s388, %s695
          %v697 = vld [vmem:[%s696] sm:$0xf]
          %v698 = vld [vmem:[%s696 + $0x4] sm:$0xf]
          %v699 = vld [vmem:[%s2] sm:$0xf]
          %v702 = vunpack.c.l.b16 %v697
          %v703 = vunpack.c.l.b16 %v698
          %v704 = vpack.c.b16 %v703, %v702
          %vm705 = vcmask 64512
          %v707 = vsel %vm705, %v704, 0
          %vm709 = vcmask 1043456
          %v711 = vsel %vm709, %v699, 0
          %713 = vmatprep.subr.bf16.mxu0 0
          %714 = vmatpush1.bf16.msra.mxu0 0
          %715 = vmatprep.subr.bf16.mxu0 0
          %716 = vmatpush1.bf16.msra.mxu0 0
          %717 = vmatprep.subr.bf16.mxu0 0
          %718 = vmatpush1.bf16.msra.mxu0 0
          %719 = vmatprep.subr.bf16.mxu0 0
          %720 = vmatpush1.bf16.msra.mxu0 0
          %721 = vmatprep.subr.bf16.mxu0 0
          %722 = vmatpush1.bf16.msra.mxu0 0
          %723 = vmatprep.subr.bf16.mxu0 0
          %724 = vmatpush1.bf16.msra.mxu0 0
          %725 = vmatprep.subr.bf16.mxu0 0
          %726 = vmatpush1.bf16.msra.mxu0 0
          %727 = vmatprep.subr.bf16.mxu0 0
          %728 = vmatpush1.bf16.msra.mxu0 %v711
          %729 = vmatprep.subr.bf16.mxu0 0
          %730 = vmatpush2.bf16.msra.mxu0 0
          %731 = vmatprep.subr.bf16.mxu0 0
          %732 = vmatpush2.bf16.msra.mxu0 0
          %733 = vmatprep.subr.bf16.mxu0 0
          %734 = vmatpush2.bf16.msra.mxu0 0
          %735 = vmatprep.subr.bf16.mxu0 0
          %736 = vmatpush2.bf16.msra.mxu0 0
          %737 = vmatprep.subr.bf16.mxu0 0
          %738 = vmatpush2.bf16.msra.mxu0 0
          %739 = vmatprep.subr.bf16.mxu0 0
          %740 = vmatpush2.bf16.msra.mxu0 0
          %741 = vmatprep.subr.bf16.mxu0 0
          %742 = vmatpush2.bf16.msra.mxu0 0
          %743 = vmatprep.subr.bf16.mxu0 0
          %744 = vmatpush2.bf16.msra.mxu0 0
          %745 = vmatprep.mubr.bf16.mxu0 0
          %746 = vmatmul.mubr.bf16.gmra.mxu0 %v707
          %v747 = vpop.f32.mrf.mxu0
          %v748 = vadd.f32 0.0, %v747
          %v749 = vpop.f32.mrf.mxu0
          %v750 = vpop.f32.mrf.mxu0
          %v751 = vadd.f32 0.0, %v750
          %v752 = vpop.f32.mrf.mxu0
          %753 = vdwg.mxu0
          %vm754 = vcmp.eq.s32.totalorder %v686, 0
          %vm755 = vcmp.eq.s32.totalorder %v687, 0
          %v756 = vsel %vm754, 1, 0
          %v757 = vsel %vm755, 1, 0
          %vm758 = vcmp.eq.s32.totalorder %v756, 1
          %vm759 = vcmp.eq.s32.totalorder %v757, 1
          %762 = vrot.lane.b32.xlu0 %v748, 124
          %v763 = vpop.permute.xlu0 %762
          %764 = vrot.lane.b32.xlu0 %v751, 124
          %v765 = vpop.permute.xlu0 %764
          %v768 = vsel %vm758, %v748, %v763
          %v769 = vsel %vm759, %v751, %v765
          %v770 = vld [vmem:[%s3] sm:$0x1]
          %v772 = vlaneseq
          %v773 = vshrl.u32 %v772, 7
          %v774 = vsub.s32 0, %v773
          %v775 = vrot.slane %v770, %v774
          %v777 = vadd.f32 %v768, %v775
          %v778 = vadd.f32 %v769, %v775
          %s779 = smul.u32 %s694, 2
          %s780 = smul.addr %s779, 4
          %s781 = scalar_lea.vmem %s393, %s780
          %v782 = vld [vmem:[%s781] sm:$0xf]
          %v783 = vld [vmem:[%s781 + $0x4] sm:$0xf]
          %v784 = vpack.c.bf16 %v778, %v777
          %v787 = vunpack.c.l.b16 %v782
          %v788 = vunpack.c.l.b16 %v783
          %v789 = vpack.c.b16 %v788, %v787
          %791 = vrot.lane.b32.xlu0 %v784, 4
          %v792 = vpop.permute.xlu0 %791
          %vm793 = vcmask 31744
          %v796 = vsel %vm793, %v789, %v792
          %s797 = sadd.s32 %s694, 2
          %v799 = vunpack.c.l.b16 %v796
          %v800 = vunpack.c.h.b16 %v796
          %v801 = vpack.c.b16 %v799, %v799
          %v802 = vpack.c.b16 %v800, %v800
          %vm803 = vsmask.f32 4368
          %vm804 = vmor %vm426, %vm803
          %v806 = vshrl.u32 %v801, 16
          %v808 = vrot.slane %v806, 7
          %v809 = vshll.u32 %v801, 16
          %v811 = vor.u32 %v808, %v809
          %v812 = vrot.slane %v808, 4
          %v814 = vshrl.u32 %v802, 16
          %v816 = vrot.slane %v814, 7
          %v817 = vshll.u32 %v802, 16
          %v819 = vor.u32 %v816, %v817
          %v820 = vsel %vm804, %v812, %v819
          %v821 = vrot.slane %v816, 4
          %s825 = smul.u32 %s797, 3
          %s826 = smul.addr %s825, 4
          %s827 = scalar_lea.vmem [#allocation2], %s826
          %vm828 = vcmask 60416
          %vm829 = vmand %vm828, %vm488
          %v830 = vld [vmem:[%s827] sm:$0xf]
          %v831 = vsel %vm829, %v811, %v830
          %832 = vst [vmem:[%s827] sm:$0xf] %v831
          %833 = vst.msk [vmem:[%s827 + $0x4] sm:$0xf] %vm410, %v820
          %v834 = vld [vmem:[%s827 + $0x8] sm:$0x1]
          %v835 = vsel %vm427, %v821, %v834
          %836 = vst [vmem:[%s827 + $0x8] sm:$0x1] %v835
          %v837 = vld [vmem:[%s3] sm:$0x1]
          %v839 = vlaneseq
          %v840 = vshrl.u32 %v839, 7
          %v841 = vsub.s32 0, %v840
          %v842 = vrot.slane %v837, %v841
          %843 = vrot.lane.b32.xlu0 %v842, 8
          %v844 = vpop.permute.xlu0 %843
          %v846 = vadd.f32 %v768, %v844
          %v847 = vadd.f32 %v769, %v844
          %s848 = sadd.s32 %s694, 1
          %s849 = smul.u32 %s848, 2
          %s850 = smul.addr %s849, 4
          %s851 = scalar_lea.vmem %s393, %s850
          %v852 = vld [vmem:[%s851] sm:$0xf]
          %v853 = vld [vmem:[%s851 + $0x4] sm:$0xf]
          %v854 = vpack.c.bf16 %v847, %v846
          %v857 = vunpack.c.l.b16 %v852
          %v858 = vunpack.c.l.b16 %v853
          %v859 = vpack.c.b16 %v858, %v857
          %861 = vrot.lane.b32.xlu0 %v854, 124
          %v862 = vpop.permute.xlu0 %861
          %v865 = vsel %vm793, %v859, %v862
          %s866 = sadd.s32 %s694, 3
          %v868 = vunpack.c.l.b16 %v865
          %v869 = vunpack.c.h.b16 %v865
          %v870 = vpack.c.b16 %v868, %v868
          %v871 = vpack.c.b16 %v869, %v869
          %v873 = vshrl.u32 %v870, 16
          %v875 = vrot.slane %v873, 7
          %v876 = vshll.u32 %v870, 16
          %v878 = vor.u32 %v875, %v876
          %v879 = vrot.slane %v875, 4
          %v881 = vshrl.u32 %v871, 16
          %v883 = vrot.slane %v881, 7
          %v884 = vshll.u32 %v871, 16
          %v886 = vor.u32 %v883, %v884
          %v887 = vsel %vm804, %v879, %v886
          %v888 = vrot.slane %v883, 4
          %s892 = smul.u32 %s866, 3
          %s893 = smul.addr %s892, 4
          %s894 = scalar_lea.vmem [#allocation2], %s893
          %v895 = vld [vmem:[%s894] sm:$0xf]
          %v896 = vsel %vm829, %v878, %v895
          %897 = vst [vmem:[%s894] sm:$0xf] %v896
          %898 = vst.msk [vmem:[%s894 + $0x4] sm:$0xf] %vm410, %v887
          %v899 = vld [vmem:[%s894 + $0x8] sm:$0x1]
          %v900 = vsel %vm427, %v888, %v899
          %901 = vst [vmem:[%s894 + $0x8] sm:$0x1] %v900
        $region69: #{up_forward.1} parent=63 // loop_footer
          %s693 = sadd.s32 1, %s689
        $region70: #{up_forward.1} parent=63 // loop_footer_branch
          %688 = sbr.rel target = $region66
        $region71: #{up_forward.1} parent=63 // loop_exit
          _
      $region64: #{up_forward.1} parent=59 // pred_fallthru
        _
      %s902 = smul.u32 %s26, 16
      %s903 = smul.u32 %s902, 3
      %s904 = smul.addr %s903, 4
      %s905 = scalar_lea.vmem [#allocation2], %s904
      %v906 = vld [vmem:[%s905] sm:$0xf]
      %v907 = vld [vmem:[%s905 + $0x4] sm:$0xf]
      %v908 = vld [vmem:[%s905 + $0x8] sm:$0x1]
      %v909 = vld [vmem:[%s905 + $0xc] sm:$0xf]
      %v910 = vld [vmem:[%s905 + $0x10] sm:$0xf]
      %v911 = vld [vmem:[%s905 + $0x14] sm:$0x1]
      %v912 = vld [vmem:[%s905 + $0x18] sm:$0xf]
      %v913 = vld [vmem:[%s905 + $0x1c] sm:$0xf]
      %v914 = vld [vmem:[%s905 + $0x20] sm:$0x1]
      %v915 = vld [vmem:[%s905 + $0x24] sm:$0xf]
      %v916 = vld [vmem:[%s905 + $0x28] sm:$0xf]
      %v917 = vld [vmem:[%s905 + $0x2c] sm:$0x1]
      %v918 = vld [vmem:[%s905 + $0x30] sm:$0xf]
      %v919 = vld [vmem:[%s905 + $0x34] sm:$0xf]
      %v920 = vld [vmem:[%s905 + $0x38] sm:$0x1]
      %v921 = vld [vmem:[%s905 + $0x3c] sm:$0xf]
      %v922 = vld [vmem:[%s905 + $0x40] sm:$0xf]
      %v923 = vld [vmem:[%s905 + $0x44] sm:$0x1]
      %v924 = vld [vmem:[%s905 + $0x48] sm:$0xf]
      %v925 = vld [vmem:[%s905 + $0x4c] sm:$0xf]
      %v926 = vld [vmem:[%s905 + $0x50] sm:$0x1]
      %v927 = vld [vmem:[%s905 + $0x54] sm:$0xf]
      %v928 = vld [vmem:[%s905 + $0x58] sm:$0xf]
      %v929 = vld [vmem:[%s905 + $0x5c] sm:$0x1]
      %v930 = vld [vmem:[%s905 + $0x60] sm:$0xf]
      %v931 = vld [vmem:[%s905 + $0x64] sm:$0xf]
      %v932 = vld [vmem:[%s905 + $0x68] sm:$0x1]
      %v933 = vld [vmem:[%s905 + $0x6c] sm:$0xf]
      %v934 = vld [vmem:[%s905 + $0x70] sm:$0xf]
      %v935 = vld [vmem:[%s905 + $0x74] sm:$0x1]
      %v936 = vld [vmem:[%s905 + $0x78] sm:$0xf]
      %v937 = vld [vmem:[%s905 + $0x7c] sm:$0xf]
      %v938 = vld [vmem:[%s905 + $0x80] sm:$0x1]
      %v939 = vld [vmem:[%s905 + $0x84] sm:$0xf]
      %v940 = vld [vmem:[%s905 + $0x88] sm:$0xf]
      %v941 = vld [vmem:[%s905 + $0x8c] sm:$0x1]
      %v942 = vld [vmem:[%s905 + $0x90] sm:$0xf]
      %v943 = vld [vmem:[%s905 + $0x94] sm:$0xf]
      %v944 = vld [vmem:[%s905 + $0x98] sm:$0x1]
      %v945 = vld [vmem:[%s905 + $0x9c] sm:$0xf]
      %v946 = vld [vmem:[%s905 + $0xa0] sm:$0xf]
      %v947 = vld [vmem:[%s905 + $0xa4] sm:$0x1]
      %v948 = vld [vmem:[%s905 + $0xa8] sm:$0xf]
      %v949 = vld [vmem:[%s905 + $0xac] sm:$0xf]
      %v950 = vld [vmem:[%s905 + $0xb0] sm:$0x1]
      %v951 = vld [vmem:[%s905 + $0xb4] sm:$0xf]
      %v952 = vld [vmem:[%s905 + $0xb8] sm:$0xf]
      %v953 = vld [vmem:[%s905 + $0xbc] sm:$0x1]
      %v954 = vld [vmem:[%s905 + $0xc0] sm:$0xf]
      %v955 = vld [vmem:[%s905 + $0xc4] sm:$0xf]
      %v956 = vld [vmem:[%s905 + $0xc8] sm:$0x1]
      %v957 = vld [vmem:[%s905 + $0xcc] sm:$0xf]
      %v958 = vld [vmem:[%s905 + $0xd0] sm:$0xf]
      %v959 = vld [vmem:[%s905 + $0xd4] sm:$0x1]
      %v960 = vld [vmem:[%s905 + $0xd8] sm:$0xf]
      %v961 = vld [vmem:[%s905 + $0xdc] sm:$0xf]
      %v962 = vld [vmem:[%s905 + $0xe0] sm:$0x1]
      %v963 = vld [vmem:[%s905 + $0xe4] sm:$0xf]
      %v964 = vld [vmem:[%s905 + $0xe8] sm:$0xf]
      %v965 = vld [vmem:[%s905 + $0xec] sm:$0x1]
      %v966 = vld [vmem:[%s4] sm:$0xf]
      %v967 = vld [vmem:[%s4 + $0x4] sm:$0xf]
      %v968 = vld [vmem:[%s4 + $0x8] sm:$0xf]
      %v969 = vld [vmem:[%s4 + $0xc] sm:$0xf]
      %v970 = vld [vmem:[%s4 + $0x10] sm:$0xf]
      %v971 = vld [vmem:[%s4 + $0x14] sm:$0xf]
      %v972 = vld [vmem:[%s4 + $0x18] sm:$0xf]
      %v973 = vld [vmem:[%s4 + $0x1c] sm:$0xf]
      %v974 = vld [vmem:[%s4 + $0x20] sm:$0xf]
      %v975 = vld [vmem:[%s5] sm:$0x1]
      %v976 = vld [vmem:[%s6] sm:$0x1]
      %vm977 = vsmask.f32 3328
      %vm978 = vsmask.f32 7440
      %vm979 = vmor %vm977, %vm978
      %v981 = vshrl.u32 %v906, 16
      %v983 = vrot.slane %v981, 4
      %v984 = vshll.u32 %v906, 16
      %v986 = vrot.slane %v984, 5
      %v987 = vor.u32 %v983, %v986
      %v988 = vrot.slane %v987, 4
      %v990 = vshll.u32 %v907, 16
      %v992 = vrot.slane %v990, 5
      %v993 = vsel %vm979, %v988, %v992
      %v994 = vshrl.u32 %v907, 16
      %v996 = vrot.slane %v994, 4
      %v997 = vor.u32 %v996, %v992
      %v998 = vrot.slane %v997, 4
      %v1000 = vshll.u32 %v908, 16
      %v1002 = vrot.slane %v1000, 5
      %v1003 = vsel %vm979, %v998, %v1002
      %v1005 = vshrl.u32 %v909, 16
      %v1007 = vrot.slane %v1005, 4
      %v1008 = vshll.u32 %v909, 16
      %v1010 = vrot.slane %v1008, 5
      %v1011 = vor.u32 %v1007, %v1010
      %v1012 = vrot.slane %v1011, 4
      %v1014 = vshll.u32 %v910, 16
      %v1016 = vrot.slane %v1014, 5
      %v1017 = vsel %vm979, %v1012, %v1016
      %v1018 = vshrl.u32 %v910, 16
      %v1020 = vrot.slane %v1018, 4
      %v1021 = vor.u32 %v1020, %v1016
      %v1022 = vrot.slane %v1021, 4
      %v1024 = vshll.u32 %v911, 16
      %v1026 = vrot.slane %v1024, 5
      %v1027 = vsel %vm979, %v1022, %v1026
      %v1029 = vshrl.u32 %v912, 16
      %v1031 = vrot.slane %v1029, 4
      %v1032 = vshll.u32 %v912, 16
      %v1034 = vrot.slane %v1032, 5
      %v1035 = vor.u32 %v1031, %v1034
      %v1036 = vrot.slane %v1035, 4
      %v1038 = vshll.u32 %v913, 16
      %v1040 = vrot.slane %v1038, 5
      %v1041 = vsel %vm979, %v1036, %v1040
      %v1042 = vshrl.u32 %v913, 16
      %v1044 = vrot.slane %v1042, 4
      %v1045 = vor.u32 %v1044, %v1040
      %v1046 = vrot.slane %v1045, 4
      %v1048 = vshll.u32 %v914, 16
      %v1050 = vrot.slane %v1048, 5
      %v1051 = vsel %vm979, %v1046, %v1050
      %v1053 = vshrl.u32 %v915, 16
      %v1055 = vrot.slane %v1053, 4
      %v1056 = vshll.u32 %v915, 16
      %v1058 = vrot.slane %v1056, 5
      %v1059 = vor.u32 %v1055, %v1058
      %v1060 = vrot.slane %v1059, 4
      %v1062 = vshll.u32 %v916, 16
      %v1064 = vrot.slane %v1062, 5
      %v1065 = vsel %vm979, %v1060, %v1064
      %v1066 = vshrl.u32 %v916, 16
      %v1068 = vrot.slane %v1066, 4
      %v1069 = vor.u32 %v1068, %v1064
      %v1070 = vrot.slane %v1069, 4
      %v1072 = vshll.u32 %v917, 16
      %v1074 = vrot.slane %v1072, 5
      %v1075 = vsel %vm979, %v1070, %v1074
      %v1077 = vshrl.u32 %v918, 16
      %v1079 = vrot.slane %v1077, 4
      %v1080 = vshll.u32 %v918, 16
      %v1082 = vrot.slane %v1080, 5
      %v1083 = vor.u32 %v1079, %v1082
      %v1084 = vrot.slane %v1083, 4
      %v1086 = vshll.u32 %v919, 16
      %v1088 = vrot.slane %v1086, 5
      %v1089 = vsel %vm979, %v1084, %v1088
      %v1090 = vshrl.u32 %v919, 16
      %v1092 = vrot.slane %v1090, 4
      %v1093 = vor.u32 %v1092, %v1088
      %v1094 = vrot.slane %v1093, 4
      %v1096 = vshll.u32 %v920, 16
      %v1098 = vrot.slane %v1096, 5
      %v1099 = vsel %vm979, %v1094, %v1098
      %v1101 = vshrl.u32 %v921, 16
      %v1103 = vrot.slane %v1101, 4
      %v1104 = vshll.u32 %v921, 16
      %v1106 = vrot.slane %v1104, 5
      %v1107 = vor.u32 %v1103, %v1106
      %v1108 = vrot.slane %v1107, 4
      %v1110 = vshll.u32 %v922, 16
      %v1112 = vrot.slane %v1110, 5
      %v1113 = vsel %vm979, %v1108, %v1112
      %v1114 = vshrl.u32 %v922, 16
      %v1116 = vrot.slane %v1114, 4
      %v1117 = vor.u32 %v1116, %v1112
      %v1118 = vrot.slane %v1117, 4
      %v1120 = vshll.u32 %v923, 16
      %v1122 = vrot.slane %v1120, 5
      %v1123 = vsel %vm979, %v1118, %v1122
      %v1125 = vshrl.u32 %v924, 16
      %v1127 = vrot.slane %v1125, 4
      %v1128 = vshll.u32 %v924, 16
      %v1130 = vrot.slane %v1128, 5
      %v1131 = vor.u32 %v1127, %v1130
      %v1132 = vrot.slane %v1131, 4
      %v1134 = vshll.u32 %v925, 16
      %v1136 = vrot.slane %v1134, 5
      %v1137 = vsel %vm979, %v1132, %v1136
      %v1138 = vshrl.u32 %v925, 16
      %v1140 = vrot.slane %v1138, 4
      %v1141 = vor.u32 %v1140, %v1136
      %v1142 = vrot.slane %v1141, 4
      %v1144 = vshll.u32 %v926, 16
      %v1146 = vrot.slane %v1144, 5
      %v1147 = vsel %vm979, %v1142, %v1146
      %v1149 = vshrl.u32 %v927, 16
      %v1151 = vrot.slane %v1149, 4
      %v1152 = vshll.u32 %v927, 16
      %v1154 = vrot.slane %v1152, 5
      %v1155 = vor.u32 %v1151, %v1154
      %v1156 = vrot.slane %v1155, 4
      %v1158 = vshll.u32 %v928, 16
      %v1160 = vrot.slane %v1158, 5
      %v1161 = vsel %vm979, %v1156, %v1160
      %v1162 = vshrl.u32 %v928, 16
      %v1164 = vrot.slane %v1162, 4
      %v1165 = vor.u32 %v1164, %v1160
      %v1166 = vrot.slane %v1165, 4
      %v1168 = vshll.u32 %v929, 16
      %v1170 = vrot.slane %v1168, 5
      %v1171 = vsel %vm979, %v1166, %v1170
      %v1173 = vshrl.u32 %v930, 16
      %v1175 = vrot.slane %v1173, 4
      %v1176 = vshll.u32 %v930, 16
      %v1178 = vrot.slane %v1176, 5
      %v1179 = vor.u32 %v1175, %v1178
      %v1180 = vrot.slane %v1179, 4
      %v1182 = vshll.u32 %v931, 16
      %v1184 = vrot.slane %v1182, 5
      %v1185 = vsel %vm979, %v1180, %v1184
      %v1186 = vshrl.u32 %v931, 16
      %v1188 = vrot.slane %v1186, 4
      %v1189 = vor.u32 %v1188, %v1184
      %v1190 = vrot.slane %v1189, 4
      %v1192 = vshll.u32 %v932, 16
      %v1194 = vrot.slane %v1192, 5
      %v1195 = vsel %vm979, %v1190, %v1194
      %v1197 = vshrl.u32 %v933, 16
      %v1199 = vrot.slane %v1197, 4
      %v1200 = vshll.u32 %v933, 16
      %v1202 = vrot.slane %v1200, 5
      %v1203 = vor.u32 %v1199, %v1202
      %v1204 = vrot.slane %v1203, 4
      %v1206 = vshll.u32 %v934, 16
      %v1208 = vrot.slane %v1206, 5
      %v1209 = vsel %vm979, %v1204, %v1208
      %v1210 = vshrl.u32 %v934, 16
      %v1212 = vrot.slane %v1210, 4
      %v1213 = vor.u32 %v1212, %v1208
      %v1214 = vrot.slane %v1213, 4
      %v1216 = vshll.u32 %v935, 16
      %v1218 = vrot.slane %v1216, 5
      %v1219 = vsel %vm979, %v1214, %v1218
      %v1221 = vshrl.u32 %v936, 16
      %v1223 = vrot.slane %v1221, 4
      %v1224 = vshll.u32 %v936, 16
      %v1226 = vrot.slane %v1224, 5
      %v1227 = vor.u32 %v1223, %v1226
      %v1228 = vrot.slane %v1227, 4
      %v1230 = vshll.u32 %v937, 16
      %v1232 = vrot.slane %v1230, 5
      %v1233 = vsel %vm979, %v1228, %v1232
      %v1234 = vshrl.u32 %v937, 16
      %v1236 = vrot.slane %v1234, 4
      %v1237 = vor.u32 %v1236, %v1232
      %v1238 = vrot.slane %v1237, 4
      %v1240 = vshll.u32 %v938, 16
      %v1242 = vrot.slane %v1240, 5
      %v1243 = vsel %vm979, %v1238, %v1242
      %v1245 = vshrl.u32 %v939, 16
      %v1247 = vrot.slane %v1245, 4
      %v1248 = vshll.u32 %v939, 16
      %v1250 = vrot.slane %v1248, 5
      %v1251 = vor.u32 %v1247, %v1250
      %v1252 = vrot.slane %v1251, 4
      %v1254 = vshll.u32 %v940, 16
      %v1256 = vrot.slane %v1254, 5
      %v1257 = vsel %vm979, %v1252, %v1256
      %v1258 = vshrl.u32 %v940, 16
      %v1260 = vrot.slane %v1258, 4
      %v1261 = vor.u32 %v1260, %v1256
      %v1262 = vrot.slane %v1261, 4
      %v1264 = vshll.u32 %v941, 16
      %v1266 = vrot.slane %v1264, 5
      %v1267 = vsel %vm979, %v1262, %v1266
      %v1269 = vshrl.u32 %v942, 16
      %v1271 = vrot.slane %v1269, 4
      %v1272 = vshll.u32 %v942, 16
      %v1274 = vrot.slane %v1272, 5
      %v1275 = vor.u32 %v1271, %v1274
      %v1276 = vrot.slane %v1275, 4
      %v1278 = vshll.u32 %v943, 16
      %v1280 = vrot.slane %v1278, 5
      %v1281 = vsel %vm979, %v1276, %v1280
      %v1282 = vshrl.u32 %v943, 16
      %v1284 = vrot.slane %v1282, 4
      %v1285 = vor.u32 %v1284, %v1280
      %v1286 = vrot.slane %v1285, 4
      %v1288 = vshll.u32 %v944, 16
      %v1290 = vrot.slane %v1288, 5
      %v1291 = vsel %vm979, %v1286, %v1290
      %v1293 = vshrl.u32 %v945, 16
      %v1295 = vrot.slane %v1293, 4
      %v1296 = vshll.u32 %v945, 16
      %v1298 = vrot.slane %v1296, 5
      %v1299 = vor.u32 %v1295, %v1298
      %v1300 = vrot.slane %v1299, 4
      %v1302 = vshll.u32 %v946, 16
      %v1304 = vrot.slane %v1302, 5
      %v1305 = vsel %vm979, %v1300, %v1304
      %v1306 = vshrl.u32 %v946, 16
      %v1308 = vrot.slane %v1306, 4
      %v1309 = vor.u32 %v1308, %v1304
      %v1310 = vrot.slane %v1309, 4
      %v1312 = vshll.u32 %v947, 16
      %v1314 = vrot.slane %v1312, 5
      %v1315 = vsel %vm979, %v1310, %v1314
      %v1317 = vshrl.u32 %v948, 16
      %v1319 = vrot.slane %v1317, 4
      %v1320 = vshll.u32 %v948, 16
      %v1322 = vrot.slane %v1320, 5
      %v1323 = vor.u32 %v1319, %v1322
      %v1324 = vrot.slane %v1323, 4
      %v1326 = vshll.u32 %v949, 16
      %v1328 = vrot.slane %v1326, 5
      %v1329 = vsel %vm979, %v1324, %v1328
      %v1330 = vshrl.u32 %v949, 16
      %v1332 = vrot.slane %v1330, 4
      %v1333 = vor.u32 %v1332, %v1328
      %v1334 = vrot.slane %v1333, 4
      %v1336 = vshll.u32 %v950, 16
      %v1338 = vrot.slane %v1336, 5
      %v1339 = vsel %vm979, %v1334, %v1338
      %v1341 = vshrl.u32 %v951, 16
      %v1343 = vrot.slane %v1341, 4
      %v1344 = vshll.u32 %v951, 16
      %v1346 = vrot.slane %v1344, 5
      %v1347 = vor.u32 %v1343, %v1346
      %v1348 = vrot.slane %v1347, 4
      %v1350 = vshll.u32 %v952, 16
      %v1352 = vrot.slane %v1350, 5
      %v1353 = vsel %vm979, %v1348, %v1352
      %v1354 = vshrl.u32 %v952, 16
      %v1356 = vrot.slane %v1354, 4
      %v1357 = vor.u32 %v1356, %v1352
      %v1358 = vrot.slane %v1357, 4
      %v1360 = vshll.u32 %v953, 16
      %v1362 = vrot.slane %v1360, 5
      %v1363 = vsel %vm979, %v1358, %v1362
      %v1365 = vshrl.u32 %v954, 16
      %v1367 = vrot.slane %v1365, 4
      %v1368 = vshll.u32 %v954, 16
      %v1370 = vrot.slane %v1368, 5
      %v1371 = vor.u32 %v1367, %v1370
      %v1372 = vrot.slane %v1371, 4
      %v1374 = vshll.u32 %v955, 16
      %v1376 = vrot.slane %v1374, 5
      %v1377 = vsel %vm979, %v1372, %v1376
      %v1378 = vshrl.u32 %v955, 16
      %v1380 = vrot.slane %v1378, 4
      %v1381 = vor.u32 %v1380, %v1376
      %v1382 = vrot.slane %v1381, 4
      %v1384 = vshll.u32 %v956, 16
      %v1386 = vrot.slane %v1384, 5
      %v1387 = vsel %vm979, %v1382, %v1386
      %v1389 = vshrl.u32 %v957, 16
      %v1391 = vrot.slane %v1389, 4
      %v1392 = vshll.u32 %v957, 16
      %v1394 = vrot.slane %v1392, 5
      %v1395 = vor.u32 %v1391, %v1394
      %v1396 = vrot.slane %v1395, 4
      %v1398 = vshll.u32 %v958, 16
      %v1400 = vrot.slane %v1398, 5
      %v1401 = vsel %vm979, %v1396, %v1400
      %v1402 = vshrl.u32 %v958, 16
      %v1404 = vrot.slane %v1402, 4
      %v1405 = vor.u32 %v1404, %v1400
      %v1406 = vrot.slane %v1405, 4
      %v1408 = vshll.u32 %v959, 16
      %v1410 = vrot.slane %v1408, 5
      %v1411 = vsel %vm979, %v1406, %v1410
      %vm1466 = vcmask 1042432
      %vm1467 = vcmask 1046532
      %vm1468 = vmor %vm1466, %vm1467
      %v1469 = vrot.slane %v906, 5
      %v1470 = vrot.slane %v1469, 4
      %v1471 = vrot.slane %v907, 5
      %v1472 = vsel %vm1468, %v1470, %v1471
      %v1473 = vrot.slane %v1471, 4
      %v1474 = vrot.slane %v908, 5
      %v1475 = vsel %vm1468, %v1473, %v1474
      %v1476 = vrot.slane %v909, 5
      %v1477 = vrot.slane %v1476, 4
      %v1478 = vrot.slane %v910, 5
      %v1479 = vsel %vm1468, %v1477, %v1478
      %v1480 = vrot.slane %v1478, 4
      %v1481 = vrot.slane %v911, 5
      %v1482 = vsel %vm1468, %v1480, %v1481
      %v1483 = vrot.slane %v912, 5
      %v1484 = vrot.slane %v1483, 4
      %v1485 = vrot.slane %v913, 5
      %v1486 = vsel %vm1468, %v1484, %v1485
      %v1487 = vrot.slane %v1485, 4
      %v1488 = vrot.slane %v914, 5
      %v1489 = vsel %vm1468, %v1487, %v1488
      %v1490 = vrot.slane %v915, 5
      %v1491 = vrot.slane %v1490, 4
      %v1492 = vrot.slane %v916, 5
      %v1493 = vsel %vm1468, %v1491, %v1492
      %v1494 = vrot.slane %v1492, 4
      %v1495 = vrot.slane %v917, 5
      %v1496 = vsel %vm1468, %v1494, %v1495
      %v1497 = vrot.slane %v918, 5
      %v1498 = vrot.slane %v1497, 4
      %v1499 = vrot.slane %v919, 5
      %v1500 = vsel %vm1468, %v1498, %v1499
      %v1501 = vrot.slane %v1499, 4
      %v1502 = vrot.slane %v920, 5
      %v1503 = vsel %vm1468, %v1501, %v1502
      %v1504 = vrot.slane %v921, 5
      %v1505 = vrot.slane %v1504, 4
      %v1506 = vrot.slane %v922, 5
      %v1507 = vsel %vm1468, %v1505, %v1506
      %v1508 = vrot.slane %v1506, 4
      %v1509 = vrot.slane %v923, 5
      %v1510 = vsel %vm1468, %v1508, %v1509
      %v1511 = vrot.slane %v924, 5
      %v1512 = vrot.slane %v1511, 4
      %v1513 = vrot.slane %v925, 5
      %v1514 = vsel %vm1468, %v1512, %v1513
      %v1515 = vrot.slane %v1513, 4
      %v1516 = vrot.slane %v926, 5
      %v1517 = vsel %vm1468, %v1515, %v1516
      %v1518 = vrot.slane %v927, 5
      %v1519 = vrot.slane %v1518, 4
      %v1520 = vrot.slane %v928, 5
      %v1521 = vsel %vm1468, %v1519, %v1520
      %v1522 = vrot.slane %v1520, 4
      %v1523 = vrot.slane %v929, 5
      %v1524 = vsel %vm1468, %v1522, %v1523
      %v1525 = vrot.slane %v930, 5
      %v1526 = vrot.slane %v1525, 4
      %v1527 = vrot.slane %v931, 5
      %v1528 = vsel %vm1468, %v1526, %v1527
      %v1529 = vrot.slane %v1527, 4
      %v1530 = vrot.slane %v932, 5
      %v1531 = vsel %vm1468, %v1529, %v1530
      %v1532 = vrot.slane %v933, 5
      %v1533 = vrot.slane %v1532, 4
      %v1534 = vrot.slane %v934, 5
      %v1535 = vsel %vm1468, %v1533, %v1534
      %v1536 = vrot.slane %v1534, 4
      %v1537 = vrot.slane %v935, 5
      %v1538 = vsel %vm1468, %v1536, %v1537
      %v1539 = vrot.slane %v936, 5
      %v1540 = vrot.slane %v1539, 4
      %v1541 = vrot.slane %v937, 5
      %v1542 = vsel %vm1468, %v1540, %v1541
      %v1543 = vrot.slane %v1541, 4
      %v1544 = vrot.slane %v938, 5
      %v1545 = vsel %vm1468, %v1543, %v1544
      %v1546 = vrot.slane %v939, 5
      %v1547 = vrot.slane %v1546, 4
      %v1548 = vrot.slane %v940, 5
      %v1549 = vsel %vm1468, %v1547, %v1548
      %v1550 = vrot.slane %v1548, 4
      %v1551 = vrot.slane %v941, 5
      %v1552 = vsel %vm1468, %v1550, %v1551
      %v1553 = vrot.slane %v942, 5
      %v1554 = vrot.slane %v1553, 4
      %v1555 = vrot.slane %v943, 5
      %v1556 = vsel %vm1468, %v1554, %v1555
      %v1557 = vrot.slane %v1555, 4
      %v1558 = vrot.slane %v944, 5
      %v1559 = vsel %vm1468, %v1557, %v1558
      %v1560 = vrot.slane %v945, 5
      %v1561 = vrot.slane %v1560, 4
      %v1562 = vrot.slane %v946, 5
      %v1563 = vsel %vm1468, %v1561, %v1562
      %v1564 = vrot.slane %v1562, 4
      %v1565 = vrot.slane %v947, 5
      %v1566 = vsel %vm1468, %v1564, %v1565
      %v1567 = vrot.slane %v948, 5
      %v1568 = vrot.slane %v1567, 4
      %v1569 = vrot.slane %v949, 5
      %v1570 = vsel %vm1468, %v1568, %v1569
      %v1571 = vrot.slane %v1569, 4
      %v1572 = vrot.slane %v950, 5
      %v1573 = vsel %vm1468, %v1571, %v1572
      %v1574 = vrot.slane %v951, 5
      %v1575 = vrot.slane %v1574, 4
      %v1576 = vrot.slane %v952, 5
      %v1577 = vsel %vm1468, %v1575, %v1576
      %v1578 = vrot.slane %v1576, 4
      %v1579 = vrot.slane %v953, 5
      %v1580 = vsel %vm1468, %v1578, %v1579
      %v1581 = vrot.slane %v954, 5
      %v1582 = vrot.slane %v1581, 4
      %v1583 = vrot.slane %v955, 5
      %v1584 = vsel %vm1468, %v1582, %v1583
      %v1585 = vrot.slane %v1583, 4
      %v1586 = vrot.slane %v956, 5
      %v1587 = vsel %vm1468, %v1585, %v1586
      %v1588 = vrot.slane %v957, 5
      %v1589 = vrot.slane %v1588, 4
      %v1590 = vrot.slane %v958, 5
      %v1591 = vsel %vm1468, %v1589, %v1590
      %v1592 = vrot.slane %v1590, 4
      %v1593 = vrot.slane %v959, 5
      %v1594 = vsel %vm1468, %v1592, %v1593
      %v1596 = vshrl.u32 %v960, 16
      %v1598 = vrot.slane %v1596, 4
      %v1599 = vshll.u32 %v960, 16
      %v1601 = vrot.slane %v1599, 5
      %v1602 = vor.u32 %v1598, %v1601
      %v1603 = vrot.slane %v1602, 4
      %v1605 = vshll.u32 %v961, 16
      %v1607 = vrot.slane %v1605, 5
      %v1608 = vsel %vm979, %v1603, %v1607
      %v1609 = vshrl.u32 %v961, 16
      %v1611 = vrot.slane %v1609, 4
      %v1612 = vor.u32 %v1611, %v1607
      %v1613 = vrot.slane %v1612, 4
      %v1615 = vshll.u32 %v962, 16
      %v1617 = vrot.slane %v1615, 5
      %v1618 = vsel %vm979, %v1613, %v1617
      %v1622 = vrot.slane %v960, 5
      %v1623 = vrot.slane %v1622, 4
      %v1624 = vrot.slane %v961, 5
      %v1625 = vsel %vm1468, %v1623, %v1624
      %v1626 = vrot.slane %v1624, 4
      %v1627 = vrot.slane %v962, 5
      %v1628 = vsel %vm1468, %v1626, %v1627
      %v1630 = vshrl.u32 %v963, 16
      %v1632 = vrot.slane %v1630, 4
      %v1633 = vshll.u32 %v963, 16
      %v1635 = vrot.slane %v1633, 5
      %v1636 = vor.u32 %v1632, %v1635
      %v1637 = vrot.slane %v1636, 4
      %v1639 = vshll.u32 %v964, 16
      %v1641 = vrot.slane %v1639, 5
      %v1642 = vsel %vm979, %v1637, %v1641
      %v1643 = vshrl.u32 %v964, 16
      %v1645 = vrot.slane %v1643, 4
      %v1646 = vor.u32 %v1645, %v1641
      %v1647 = vrot.slane %v1646, 4
      %v1649 = vshll.u32 %v965, 16
      %v1651 = vrot.slane %v1649, 5
      %v1652 = vsel %vm979, %v1647, %v1651
      %v1656 = vrot.slane %v963, 5
      %v1657 = vrot.slane %v1656, 4
      %v1658 = vrot.slane %v964, 5
      %v1659 = vsel %vm1468, %v1657, %v1658
      %v1660 = vrot.slane %v1658, 4
      %v1661 = vrot.slane %v965, 5
      %v1662 = vsel %vm1468, %v1660, %v1661
      %v1663 = vunpack.c.l.b16 %v906
      %v1664 = vunpack.c.l.b16 %v907
      %v1665 = vunpack.c.l.b16 %v909
      %v1666 = vunpack.c.l.b16 %v910
      %v1667 = vunpack.c.l.b16 %v912
      %v1668 = vunpack.c.l.b16 %v913
      %v1669 = vunpack.c.l.b16 %v915
      %v1670 = vunpack.c.l.b16 %v916
      %v1671 = vunpack.c.l.b16 %v918
      %v1672 = vunpack.c.l.b16 %v919
      %v1673 = vunpack.c.l.b16 %v921
      %v1674 = vunpack.c.l.b16 %v922
      %v1675 = vunpack.c.l.b16 %v924
      %v1676 = vunpack.c.l.b16 %v925
      %v1677 = vunpack.c.l.b16 %v927
      %v1678 = vunpack.c.l.b16 %v928
      %v1679 = vunpack.c.l.b16 %v930
      %v1680 = vunpack.c.l.b16 %v931
      %v1681 = vunpack.c.l.b16 %v933
      %v1682 = vunpack.c.l.b16 %v934
      %v1683 = vunpack.c.l.b16 %v936
      %v1684 = vunpack.c.l.b16 %v937
      %v1685 = vunpack.c.l.b16 %v939
      %v1686 = vunpack.c.l.b16 %v940
      %v1687 = vunpack.c.l.b16 %v942
      %v1688 = vunpack.c.l.b16 %v943
      %v1689 = vunpack.c.l.b16 %v945
      %v1690 = vunpack.c.l.b16 %v946
      %v1691 = vunpack.c.l.b16 %v948
      %v1692 = vunpack.c.l.b16 %v949
      %v1693 = vunpack.c.l.b16 %v951
      %v1694 = vunpack.c.l.b16 %v952
      %v1695 = vunpack.c.l.b16 %v954
      %v1696 = vunpack.c.l.b16 %v955
      %v1697 = vunpack.c.l.b16 %v957
      %v1698 = vunpack.c.l.b16 %v958
      %v1699 = vpack.c.b16 %v1664, %v1663
      %v1700 = vpack.c.b16 %v1666, %v1665
      %v1701 = vpack.c.b16 %v1668, %v1667
      %v1702 = vpack.c.b16 %v1670, %v1669
      %v1703 = vpack.c.b16 %v1672, %v1671
      %v1704 = vpack.c.b16 %v1674, %v1673
      %v1705 = vpack.c.b16 %v1676, %v1675
      %v1706 = vpack.c.b16 %v1678, %v1677
      %v1707 = vpack.c.b16 %v1680, %v1679
      %v1708 = vpack.c.b16 %v1682, %v1681
      %v1709 = vpack.c.b16 %v1684, %v1683
      %v1710 = vpack.c.b16 %v1686, %v1685
      %v1711 = vpack.c.b16 %v1688, %v1687
      %v1712 = vpack.c.b16 %v1690, %v1689
      %v1713 = vpack.c.b16 %v1692, %v1691
      %v1714 = vpack.c.b16 %v1694, %v1693
      %v1715 = vpack.c.b16 %v1696, %v1695
      %v1716 = vpack.c.b16 %v1698, %v1697
      %v1717 = vunpack.c.l.b16 %v993
      %v1718 = vunpack.c.l.b16 %v1003
      %v1719 = vunpack.c.l.b16 %v1017
      %v1720 = vunpack.c.l.b16 %v1027
      %v1721 = vunpack.c.l.b16 %v1041
      %v1722 = vunpack.c.l.b16 %v1051
      %v1723 = vunpack.c.l.b16 %v1065
      %v1724 = vunpack.c.l.b16 %v1075
      %v1725 = vunpack.c.l.b16 %v1089
      %v1726 = vunpack.c.l.b16 %v1099
      %v1727 = vunpack.c.l.b16 %v1113
      %v1728 = vunpack.c.l.b16 %v1123
      %v1729 = vunpack.c.l.b16 %v1137
      %v1730 = vunpack.c.l.b16 %v1147
      %v1731 = vunpack.c.l.b16 %v1161
      %v1732 = vunpack.c.l.b16 %v1171
      %v1733 = vunpack.c.l.b16 %v1185
      %v1734 = vunpack.c.l.b16 %v1195
      %v1735 = vunpack.c.l.b16 %v1209
      %v1736 = vunpack.c.l.b16 %v1219
      %v1737 = vunpack.c.l.b16 %v1233
      %v1738 = vunpack.c.l.b16 %v1243
      %v1739 = vunpack.c.l.b16 %v1257
      %v1740 = vunpack.c.l.b16 %v1267
      %v1741 = vunpack.c.l.b16 %v1281
      %v1742 = vunpack.c.l.b16 %v1291
      %v1743 = vunpack.c.l.b16 %v1305
      %v1744 = vunpack.c.l.b16 %v1315
      %v1745 = vunpack.c.l.b16 %v1329
      %v1746 = vunpack.c.l.b16 %v1339
      %v1747 = vunpack.c.l.b16 %v1353
      %v1748 = vunpack.c.l.b16 %v1363
      %v1749 = vunpack.c.l.b16 %v1377
      %v1750 = vunpack.c.l.b16 %v1387
      %v1751 = vunpack.c.l.b16 %v1401
      %v1752 = vunpack.c.l.b16 %v1411
      %v1753 = vpack.c.b16 %v1718, %v1717
      %v1754 = vpack.c.b16 %v1720, %v1719
      %v1755 = vpack.c.b16 %v1722, %v1721
      %v1756 = vpack.c.b16 %v1724, %v1723
      %v1757 = vpack.c.b16 %v1726, %v1725
      %v1758 = vpack.c.b16 %v1728, %v1727
      %v1759 = vpack.c.b16 %v1730, %v1729
      %v1760 = vpack.c.b16 %v1732, %v1731
      %v1761 = vpack.c.b16 %v1734, %v1733
      %v1762 = vpack.c.b16 %v1736, %v1735
      %v1763 = vpack.c.b16 %v1738, %v1737
      %v1764 = vpack.c.b16 %v1740, %v1739
      %v1765 = vpack.c.b16 %v1742, %v1741
      %v1766 = vpack.c.b16 %v1744, %v1743
      %v1767 = vpack.c.b16 %v1746, %v1745
      %v1768 = vpack.c.b16 %v1748, %v1747
      %v1769 = vpack.c.b16 %v1750, %v1749
      %v1770 = vpack.c.b16 %v1752, %v1751
      %1771 = vrot.lane.b32.xlu0 %v1753, 8
      %v1772 = vpop.permute.xlu0 %1771
      %1773 = vrot.lane.b32.xlu0 %v1754, 8
      %v1774 = vpop.permute.xlu0 %1773
      %1775 = vrot.lane.b32.xlu0 %v1755, 8
      %v1776 = vpop.permute.xlu0 %1775
      %1777 = vrot.lane.b32.xlu0 %v1756, 8
      %v1778 = vpop.permute.xlu0 %1777
      %1779 = vrot.lane.b32.xlu0 %v1757, 8
      %v1780 = vpop.permute.xlu0 %1779
      %1781 = vrot.lane.b32.xlu0 %v1758, 8
      %v1782 = vpop.permute.xlu0 %1781
      %1783 = vrot.lane.b32.xlu0 %v1759, 8
      %v1784 = vpop.permute.xlu0 %1783
      %1785 = vrot.lane.b32.xlu0 %v1760, 8
      %v1786 = vpop.permute.xlu0 %1785
      %1787 = vrot.lane.b32.xlu0 %v1761, 8
      %v1788 = vpop.permute.xlu0 %1787
      %1789 = vrot.lane.b32.xlu0 %v1762, 8
      %v1790 = vpop.permute.xlu0 %1789
      %1791 = vrot.lane.b32.xlu0 %v1763, 8
      %v1792 = vpop.permute.xlu0 %1791
      %1793 = vrot.lane.b32.xlu0 %v1764, 8
      %v1794 = vpop.permute.xlu0 %1793
      %1795 = vrot.lane.b32.xlu0 %v1765, 8
      %v1796 = vpop.permute.xlu0 %1795
      %1797 = vrot.lane.b32.xlu0 %v1766, 8
      %v1798 = vpop.permute.xlu0 %1797
      %1799 = vrot.lane.b32.xlu0 %v1767, 8
      %v1800 = vpop.permute.xlu0 %1799
      %1801 = vrot.lane.b32.xlu0 %v1768, 8
      %v1802 = vpop.permute.xlu0 %1801
      %1803 = vrot.lane.b32.xlu0 %v1769, 8
      %v1804 = vpop.permute.xlu0 %1803
      %1805 = vrot.lane.b32.xlu0 %v1770, 8
      %v1806 = vpop.permute.xlu0 %1805
      %v1807 = vunpack.c.l.b16 %v1472
      %v1808 = vunpack.c.l.b16 %v1475
      %v1809 = vunpack.c.l.b16 %v1479
      %v1810 = vunpack.c.l.b16 %v1482
      %v1811 = vunpack.c.l.b16 %v1486
      %v1812 = vunpack.c.l.b16 %v1489
      %v1813 = vunpack.c.l.b16 %v1493
      %v1814 = vunpack.c.l.b16 %v1496
      %v1815 = vunpack.c.l.b16 %v1500
      %v1816 = vunpack.c.l.b16 %v1503
      %v1817 = vunpack.c.l.b16 %v1507
      %v1818 = vunpack.c.l.b16 %v1510
      %v1819 = vunpack.c.l.b16 %v1514
      %v1820 = vunpack.c.l.b16 %v1517
      %v1821 = vunpack.c.l.b16 %v1521
      %v1822 = vunpack.c.l.b16 %v1524
      %v1823 = vunpack.c.l.b16 %v1528
      %v1824 = vunpack.c.l.b16 %v1531
      %v1825 = vunpack.c.l.b16 %v1535
      %v1826 = vunpack.c.l.b16 %v1538
      %v1827 = vunpack.c.l.b16 %v1542
      %v1828 = vunpack.c.l.b16 %v1545
      %v1829 = vunpack.c.l.b16 %v1549
      %v1830 = vunpack.c.l.b16 %v1552
      %v1831 = vunpack.c.l.b16 %v1556
      %v1832 = vunpack.c.l.b16 %v1559
      %v1833 = vunpack.c.l.b16 %v1563
      %v1834 = vunpack.c.l.b16 %v1566
      %v1835 = vunpack.c.l.b16 %v1570
      %v1836 = vunpack.c.l.b16 %v1573
      %v1837 = vunpack.c.l.b16 %v1577
      %v1838 = vunpack.c.l.b16 %v1580
      %v1839 = vunpack.c.l.b16 %v1584
      %v1840 = vunpack.c.l.b16 %v1587
      %v1841 = vunpack.c.l.b16 %v1591
      %v1842 = vunpack.c.l.b16 %v1594
      %v1843 = vpack.c.b16 %v1808, %v1807
      %v1844 = vpack.c.b16 %v1810, %v1809
      %v1845 = vpack.c.b16 %v1812, %v1811
      %v1846 = vpack.c.b16 %v1814, %v1813
      %v1847 = vpack.c.b16 %v1816, %v1815
      %v1848 = vpack.c.b16 %v1818, %v1817
      %v1849 = vpack.c.b16 %v1820, %v1819
      %v1850 = vpack.c.b16 %v1822, %v1821
      %v1851 = vpack.c.b16 %v1824, %v1823
      %v1852 = vpack.c.b16 %v1826, %v1825
      %v1853 = vpack.c.b16 %v1828, %v1827
      %v1854 = vpack.c.b16 %v1830, %v1829
      %v1855 = vpack.c.b16 %v1832, %v1831
      %v1856 = vpack.c.b16 %v1834, %v1833
      %v1857 = vpack.c.b16 %v1836, %v1835
      %v1858 = vpack.c.b16 %v1838, %v1837
      %v1859 = vpack.c.b16 %v1840, %v1839
      %v1860 = vpack.c.b16 %v1842, %v1841
      %1861 = vrot.lane.b32.xlu0 %v1843, 16
      %v1862 = vpop.permute.xlu0 %1861
      %1863 = vrot.lane.b32.xlu0 %v1844, 16
      %v1864 = vpop.permute.xlu0 %1863
      %1865 = vrot.lane.b32.xlu0 %v1845, 16
      %v1866 = vpop.permute.xlu0 %1865
      %1867 = vrot.lane.b32.xlu0 %v1846, 16
      %v1868 = vpop.permute.xlu0 %1867
      %1869 = vrot.lane.b32.xlu0 %v1847, 16
      %v1870 = vpop.permute.xlu0 %1869
      %1871 = vrot.lane.b32.xlu0 %v1848, 16
      %v1872 = vpop.permute.xlu0 %1871
      %1873 = vrot.lane.b32.xlu0 %v1849, 16
      %v1874 = vpop.permute.xlu0 %1873
      %1875 = vrot.lane.b32.xlu0 %v1850, 16
      %v1876 = vpop.permute.xlu0 %1875
      %1877 = vrot.lane.b32.xlu0 %v1851, 16
      %v1878 = vpop.permute.xlu0 %1877
      %1879 = vrot.lane.b32.xlu0 %v1852, 16
      %v1880 = vpop.permute.xlu0 %1879
      %1881 = vrot.lane.b32.xlu0 %v1853, 16
      %v1882 = vpop.permute.xlu0 %1881
      %1883 = vrot.lane.b32.xlu0 %v1854, 16
      %v1884 = vpop.permute.xlu0 %1883
      %1885 = vrot.lane.b32.xlu0 %v1855, 16
      %v1886 = vpop.permute.xlu0 %1885
      %1887 = vrot.lane.b32.xlu0 %v1856, 16
      %v1888 = vpop.permute.xlu0 %1887
      %1889 = vrot.lane.b32.xlu0 %v1857, 16
      %v1890 = vpop.permute.xlu0 %1889
      %1891 = vrot.lane.b32.xlu0 %v1858, 16
      %v1892 = vpop.permute.xlu0 %1891
      %1893 = vrot.lane.b32.xlu0 %v1859, 16
      %v1894 = vpop.permute.xlu0 %1893
      %1895 = vrot.lane.b32.xlu0 %v1860, 16
      %v1896 = vpop.permute.xlu0 %1895
      %v1897 = vunpack.c.l.b16 %v960
      %v1898 = vunpack.c.l.b16 %v961
      %v1899 = vpack.c.b16 %v1898, %v1897
      %1900 = vrot.lane.b32.xlu0 %v1700, 24
      %v1901 = vpop.permute.xlu0 %1900
      %1902 = vrot.lane.b32.xlu0 %v1701, 24
      %v1903 = vpop.permute.xlu0 %1902
      %1904 = vrot.lane.b32.xlu0 %v1702, 24
      %v1905 = vpop.permute.xlu0 %1904
      %1906 = vrot.lane.b32.xlu0 %v1703, 24
      %v1907 = vpop.permute.xlu0 %1906
      %1908 = vrot.lane.b32.xlu0 %v1704, 24
      %v1909 = vpop.permute.xlu0 %1908
      %1910 = vrot.lane.b32.xlu0 %v1705, 24
      %v1911 = vpop.permute.xlu0 %1910
      %1912 = vrot.lane.b32.xlu0 %v1706, 24
      %v1913 = vpop.permute.xlu0 %1912
      %1914 = vrot.lane.b32.xlu0 %v1707, 24
      %v1915 = vpop.permute.xlu0 %1914
      %1916 = vrot.lane.b32.xlu0 %v1708, 24
      %v1917 = vpop.permute.xlu0 %1916
      %1918 = vrot.lane.b32.xlu0 %v1709, 24
      %v1919 = vpop.permute.xlu0 %1918
      %1920 = vrot.lane.b32.xlu0 %v1710, 24
      %v1921 = vpop.permute.xlu0 %1920
      %1922 = vrot.lane.b32.xlu0 %v1711, 24
      %v1923 = vpop.permute.xlu0 %1922
      %1924 = vrot.lane.b32.xlu0 %v1712, 24
      %v1925 = vpop.permute.xlu0 %1924
      %1926 = vrot.lane.b32.xlu0 %v1713, 24
      %v1927 = vpop.permute.xlu0 %1926
      %1928 = vrot.lane.b32.xlu0 %v1714, 24
      %v1929 = vpop.permute.xlu0 %1928
      %1930 = vrot.lane.b32.xlu0 %v1715, 24
      %v1931 = vpop.permute.xlu0 %1930
      %1932 = vrot.lane.b32.xlu0 %v1716, 24
      %v1933 = vpop.permute.xlu0 %1932
      %1934 = vrot.lane.b32.xlu0 %v1899, 24
      %v1935 = vpop.permute.xlu0 %1934
      %v1936 = vunpack.c.l.b16 %v1608
      %v1937 = vunpack.c.l.b16 %v1618
      %v1938 = vpack.c.b16 %v1937, %v1936
      %1939 = vrot.lane.b32.xlu0 %v1754, 32
      %v1940 = vpop.permute.xlu0 %1939
      %1941 = vrot.lane.b32.xlu0 %v1755, 32
      %v1942 = vpop.permute.xlu0 %1941
      %1943 = vrot.lane.b32.xlu0 %v1756, 32
      %v1944 = vpop.permute.xlu0 %1943
      %1945 = vrot.lane.b32.xlu0 %v1757, 32
      %v1946 = vpop.permute.xlu0 %1945
      %1947 = vrot.lane.b32.xlu0 %v1758, 32
      %v1948 = vpop.permute.xlu0 %1947
      %1949 = vrot.lane.b32.xlu0 %v1759, 32
      %v1950 = vpop.permute.xlu0 %1949
      %1951 = vrot.lane.b32.xlu0 %v1760, 32
      %v1952 = vpop.permute.xlu0 %1951
      %1953 = vrot.lane.b32.xlu0 %v1761, 32
      %v1954 = vpop.permute.xlu0 %1953
      %1955 = vrot.lane.b32.xlu0 %v1762, 32
      %v1956 = vpop.permute.xlu0 %1955
      %1957 = vrot.lane.b32.xlu0 %v1763, 32
      %v1958 = vpop.permute.xlu0 %1957
      %1959 = vrot.lane.b32.xlu0 %v1764, 32
      %v1960 = vpop.permute.xlu0 %1959
      %1961 = vrot.lane.b32.xlu0 %v1765, 32
      %v1962 = vpop.permute.xlu0 %1961
      %1963 = vrot.lane.b32.xlu0 %v1766, 32
      %v1964 = vpop.permute.xlu0 %1963
      %1965 = vrot.lane.b32.xlu0 %v1767, 32
      %v1966 = vpop.permute.xlu0 %1965
      %1967 = vrot.lane.b32.xlu0 %v1768, 32
      %v1968 = vpop.permute.xlu0 %1967
      %1969 = vrot.lane.b32.xlu0 %v1769, 32
      %v1970 = vpop.permute.xlu0 %1969
      %1971 = vrot.lane.b32.xlu0 %v1770, 32
      %v1972 = vpop.permute.xlu0 %1971
      %1973 = vrot.lane.b32.xlu0 %v1938, 32
      %v1974 = vpop.permute.xlu0 %1973
      %v1975 = vunpack.c.l.b16 %v1625
      %v1976 = vunpack.c.l.b16 %v1628
      %v1977 = vpack.c.b16 %v1976, %v1975
      %1978 = vrot.lane.b32.xlu0 %v1844, 40
      %v1979 = vpop.permute.xlu0 %1978
      %1980 = vrot.lane.b32.xlu0 %v1845, 40
      %v1981 = vpop.permute.xlu0 %1980
      %1982 = vrot.lane.b32.xlu0 %v1846, 40
      %v1983 = vpop.permute.xlu0 %1982
      %1984 = vrot.lane.b32.xlu0 %v1847, 40
      %v1985 = vpop.permute.xlu0 %1984
      %1986 = vrot.lane.b32.xlu0 %v1848, 40
      %v1987 = vpop.permute.xlu0 %1986
      %1988 = vrot.lane.b32.xlu0 %v1849, 40
      %v1989 = vpop.permute.xlu0 %1988
      %1990 = vrot.lane.b32.xlu0 %v1850, 40
      %v1991 = vpop.permute.xlu0 %1990
      %1992 = vrot.lane.b32.xlu0 %v1851, 40
      %v1993 = vpop.permute.xlu0 %1992
      %1994 = vrot.lane.b32.xlu0 %v1852, 40
      %v1995 = vpop.permute.xlu0 %1994
      %1996 = vrot.lane.b32.xlu0 %v1853, 40
      %v1997 = vpop.permute.xlu0 %1996
      %1998 = vrot.lane.b32.xlu0 %v1854, 40
      %v1999 = vpop.permute.xlu0 %1998
      %2000 = vrot.lane.b32.xlu0 %v1855, 40
      %v2001 = vpop.permute.xlu0 %2000
      %2002 = vrot.lane.b32.xlu0 %v1856, 40
      %v2003 = vpop.permute.xlu0 %2002
      %2004 = vrot.lane.b32.xlu0 %v1857, 40
      %v2005 = vpop.permute.xlu0 %2004
      %2006 = vrot.lane.b32.xlu0 %v1858, 40
      %v2007 = vpop.permute.xlu0 %2006
      %2008 = vrot.lane.b32.xlu0 %v1859, 40
      %v2009 = vpop.permute.xlu0 %2008
      %2010 = vrot.lane.b32.xlu0 %v1860, 40
      %v2011 = vpop.permute.xlu0 %2010
      %2012 = vrot.lane.b32.xlu0 %v1977, 40
      %v2013 = vpop.permute.xlu0 %2012
      %v2014 = vunpack.c.l.b16 %v963
      %v2015 = vunpack.c.l.b16 %v964
      %v2016 = vpack.c.b16 %v2015, %v2014
      %2017 = vrot.lane.b32.xlu0 %v1701, 48
      %v2018 = vpop.permute.xlu0 %2017
      %2019 = vrot.lane.b32.xlu0 %v1702, 48
      %v2020 = vpop.permute.xlu0 %2019
      %2021 = vrot.lane.b32.xlu0 %v1703, 48
      %v2022 = vpop.permute.xlu0 %2021
      %2023 = vrot.lane.b32.xlu0 %v1704, 48
      %v2024 = vpop.permute.xlu0 %2023
      %2025 = vrot.lane.b32.xlu0 %v1705, 48
      %v2026 = vpop.permute.xlu0 %2025
      %2027 = vrot.lane.b32.xlu0 %v1706, 48
      %v2028 = vpop.permute.xlu0 %2027
      %2029 = vrot.lane.b32.xlu0 %v1707, 48
      %v2030 = vpop.permute.xlu0 %2029
      %2031 = vrot.lane.b32.xlu0 %v1708, 48
      %v2032 = vpop.permute.xlu0 %2031
      %2033 = vrot.lane.b32.xlu0 %v1709, 48
      %v2034 = vpop.permute.xlu0 %2033
      %2035 = vrot.lane.b32.xlu0 %v1710, 48
      %v2036 = vpop.permute.xlu0 %2035
      %2037 = vrot.lane.b32.xlu0 %v1711, 48
      %v2038 = vpop.permute.xlu0 %2037
      %2039 = vrot.lane.b32.xlu0 %v1712, 48
      %v2040 = vpop.permute.xlu0 %2039
      %2041 = vrot.lane.b32.xlu0 %v1713, 48
      %v2042 = vpop.permute.xlu0 %2041
      %2043 = vrot.lane.b32.xlu0 %v1714, 48
      %v2044 = vpop.permute.xlu0 %2043
      %2045 = vrot.lane.b32.xlu0 %v1715, 48
      %v2046 = vpop.permute.xlu0 %2045
      %2047 = vrot.lane.b32.xlu0 %v1716, 48
      %v2048 = vpop.permute.xlu0 %2047
      %2049 = vrot.lane.b32.xlu0 %v1899, 48
      %v2050 = vpop.permute.xlu0 %2049
      %2051 = vrot.lane.b32.xlu0 %v2016, 48
      %v2052 = vpop.permute.xlu0 %2051
      %v2053 = vunpack.c.l.b16 %v1642
      %v2054 = vunpack.c.l.b16 %v1652
      %v2055 = vpack.c.b16 %v2054, %v2053
      %2056 = vrot.lane.b32.xlu0 %v1755, 56
      %v2057 = vpop.permute.xlu0 %2056
      %2058 = vrot.lane.b32.xlu0 %v1756, 56
      %v2059 = vpop.permute.xlu0 %2058
      %2060 = vrot.lane.b32.xlu0 %v1757, 56
      %v2061 = vpop.permute.xlu0 %2060
      %2062 = vrot.lane.b32.xlu0 %v1758, 56
      %v2063 = vpop.permute.xlu0 %2062
      %2064 = vrot.lane.b32.xlu0 %v1759, 56
      %v2065 = vpop.permute.xlu0 %2064
      %2066 = vrot.lane.b32.xlu0 %v1760, 56
      %v2067 = vpop.permute.xlu0 %2066
      %2068 = vrot.lane.b32.xlu0 %v1761, 56
      %v2069 = vpop.permute.xlu0 %2068
      %2070 = vrot.lane.b32.xlu0 %v1762, 56
      %v2071 = vpop.permute.xlu0 %2070
      %2072 = vrot.lane.b32.xlu0 %v1763, 56
      %v2073 = vpop.permute.xlu0 %2072
      %2074 = vrot.lane.b32.xlu0 %v1764, 56
      %v2075 = vpop.permute.xlu0 %2074
      %2076 = vrot.lane.b32.xlu0 %v1765, 56
      %v2077 = vpop.permute.xlu0 %2076
      %2078 = vrot.lane.b32.xlu0 %v1766, 56
      %v2079 = vpop.permute.xlu0 %2078
      %2080 = vrot.lane.b32.xlu0 %v1767, 56
      %v2081 = vpop.permute.xlu0 %2080
      %2082 = vrot.lane.b32.xlu0 %v1768, 56
      %v2083 = vpop.permute.xlu0 %2082
      %2084 = vrot.lane.b32.xlu0 %v1769, 56
      %v2085 = vpop.permute.xlu0 %2084
      %2086 = vrot.lane.b32.xlu0 %v1770, 56
      %v2087 = vpop.permute.xlu0 %2086
      %2088 = vrot.lane.b32.xlu0 %v1938, 56
      %v2089 = vpop.permute.xlu0 %2088
      %2090 = vrot.lane.b32.xlu0 %v2055, 56
      %v2091 = vpop.permute.xlu0 %2090
      %v2092 = vunpack.c.l.b16 %v1659
      %v2093 = vunpack.c.l.b16 %v1662
      %v2094 = vpack.c.b16 %v2093, %v2092
      %2095 = vrot.lane.b32.xlu0 %v1845, 64
      %v2096 = vpop.permute.xlu0 %2095
      %2097 = vrot.lane.b32.xlu0 %v1846, 64
      %v2098 = vpop.permute.xlu0 %2097
      %2099 = vrot.lane.b32.xlu0 %v1847, 64
      %v2100 = vpop.permute.xlu0 %2099
      %2101 = vrot.lane.b32.xlu0 %v1848, 64
      %v2102 = vpop.permute.xlu0 %2101
      %2103 = vrot.lane.b32.xlu0 %v1849, 64
      %v2104 = vpop.permute.xlu0 %2103
      %2105 = vrot.lane.b32.xlu0 %v1850, 64
      %v2106 = vpop.permute.xlu0 %2105
      %2107 = vrot.lane.b32.xlu0 %v1851, 64
      %v2108 = vpop.permute.xlu0 %2107
      %2109 = vrot.lane.b32.xlu0 %v1852, 64
      %v2110 = vpop.permute.xlu0 %2109
      %2111 = vrot.lane.b32.xlu0 %v1853, 64
      %v2112 = vpop.permute.xlu0 %2111
      %2113 = vrot.lane.b32.xlu0 %v1854, 64
      %v2114 = vpop.permute.xlu0 %2113
      %2115 = vrot.lane.b32.xlu0 %v1855, 64
      %v2116 = vpop.permute.xlu0 %2115
      %2117 = vrot.lane.b32.xlu0 %v1856, 64
      %v2118 = vpop.permute.xlu0 %2117
      %2119 = vrot.lane.b32.xlu0 %v1857, 64
      %v2120 = vpop.permute.xlu0 %2119
      %2121 = vrot.lane.b32.xlu0 %v1858, 64
      %v2122 = vpop.permute.xlu0 %2121
      %2123 = vrot.lane.b32.xlu0 %v1859, 64
      %v2124 = vpop.permute.xlu0 %2123
      %2125 = vrot.lane.b32.xlu0 %v1860, 64
      %v2126 = vpop.permute.xlu0 %2125
      %2127 = vrot.lane.b32.xlu0 %v1977, 64
      %v2128 = vpop.permute.xlu0 %2127
      %2129 = vrot.lane.b32.xlu0 %v2094, 64
      %v2130 = vpop.permute.xlu0 %2129
      %vm2131 = vcmask 64512
      %v2134 = vsel %vm2131, %v1699, %v1772
      %v2137 = vsel %vm2131, %v1700, %v1774
      %v2140 = vsel %vm2131, %v1701, %v1776
      %v2143 = vsel %vm2131, %v1702, %v1778
      %v2146 = vsel %vm2131, %v1703, %v1780
      %v2149 = vsel %vm2131, %v1704, %v1782
      %v2152 = vsel %vm2131, %v1705, %v1784
      %v2155 = vsel %vm2131, %v1706, %v1786
      %v2158 = vsel %vm2131, %v1707, %v1788
      %v2161 = vsel %vm2131, %v1708, %v1790
      %v2164 = vsel %vm2131, %v1709, %v1792
      %v2167 = vsel %vm2131, %v1710, %v1794
      %v2170 = vsel %vm2131, %v1711, %v1796
      %v2173 = vsel %vm2131, %v1712, %v1798
      %v2176 = vsel %vm2131, %v1713, %v1800
      %v2179 = vsel %vm2131, %v1714, %v1802
      %v2182 = vsel %vm2131, %v1715, %v1804
      %v2185 = vsel %vm2131, %v1716, %v1806
      %vm2186 = vcmask 130048
      %v2188 = vsel %vm2186, %v2134, %v1862
      %v2190 = vsel %vm2186, %v2137, %v1864
      %v2192 = vsel %vm2186, %v2140, %v1866
      %v2194 = vsel %vm2186, %v2143, %v1868
      %v2196 = vsel %vm2186, %v2146, %v1870
      %v2198 = vsel %vm2186, %v2149, %v1872
      %v2200 = vsel %vm2186, %v2152, %v1874
      %v2202 = vsel %vm2186, %v2155, %v1876
      %v2204 = vsel %vm2186, %v2158, %v1878
      %v2206 = vsel %vm2186, %v2161, %v1880
      %v2208 = vsel %vm2186, %v2164, %v1882
      %v2210 = vsel %vm2186, %v2167, %v1884
      %v2212 = vsel %vm2186, %v2170, %v1886
      %v2214 = vsel %vm2186, %v2173, %v1888
      %v2216 = vsel %vm2186, %v2176, %v1890
      %v2218 = vsel %vm2186, %v2179, %v1892
      %v2220 = vsel %vm2186, %v2182, %v1894
      %v2222 = vsel %vm2186, %v2185, %v1896
      %vm2223 = vcmask 195584
      %v2225 = vsel %vm2223, %v2188, %v1901
      %v2227 = vsel %vm2223, %v2190, %v1903
      %v2229 = vsel %vm2223, %v2192, %v1905
      %v2231 = vsel %vm2223, %v2194, %v1907
      %v2233 = vsel %vm2223, %v2196, %v1909
      %v2235 = vsel %vm2223, %v2198, %v1911
      %v2237 = vsel %vm2223, %v2200, %v1913
      %v2239 = vsel %vm2223, %v2202, %v1915
      %v2241 = vsel %vm2223, %v2204, %v1917
      %v2243 = vsel %vm2223, %v2206, %v1919
      %v2245 = vsel %vm2223, %v2208, %v1921
      %v2247 = vsel %vm2223, %v2210, %v1923
      %v2249 = vsel %vm2223, %v2212, %v1925
      %v2251 = vsel %vm2223, %v2214, %v1927
      %v2253 = vsel %vm2223, %v2216, %v1929
      %v2255 = vsel %vm2223, %v2218, %v1931
      %v2257 = vsel %vm2223, %v2220, %v1933
      %v2259 = vsel %vm2223, %v2222, %v1935
      %vm2260 = vcmask 261120
      %v2262 = vsel %vm2260, %v2225, %v1940
      %v2264 = vsel %vm2260, %v2227, %v1942
      %v2266 = vsel %vm2260, %v2229, %v1944
      %v2268 = vsel %vm2260, %v2231, %v1946
      %v2270 = vsel %vm2260, %v2233, %v1948
      %v2272 = vsel %vm2260, %v2235, %v1950
      %v2274 = vsel %vm2260, %v2237, %v1952
      %v2276 = vsel %vm2260, %v2239, %v1954
      %v2278 = vsel %vm2260, %v2241, %v1956
      %v2280 = vsel %vm2260, %v2243, %v1958
      %v2282 = vsel %vm2260, %v2245, %v1960
      %v2284 = vsel %vm2260, %v2247, %v1962
      %v2286 = vsel %vm2260, %v2249, %v1964
      %v2288 = vsel %vm2260, %v2251, %v1966
      %v2290 = vsel %vm2260, %v2253, %v1968
      %v2292 = vsel %vm2260, %v2255, %v1970
      %v2294 = vsel %vm2260, %v2257, %v1972
      %v2296 = vsel %vm2260, %v2259, %v1974
      %vm2297 = vcmask 326656
      %v2299 = vsel %vm2297, %v2262, %v1979
      %v2301 = vsel %vm2297, %v2264, %v1981
      %v2303 = vsel %vm2297, %v2266, %v1983
      %v2305 = vsel %vm2297, %v2268, %v1985
      %v2307 = vsel %vm2297, %v2270, %v1987
      %v2309 = vsel %vm2297, %v2272, %v1989
      %v2311 = vsel %vm2297, %v2274, %v1991
      %v2313 = vsel %vm2297, %v2276, %v1993
      %v2315 = vsel %vm2297, %v2278, %v1995
      %v2317 = vsel %vm2297, %v2280, %v1997
      %v2319 = vsel %vm2297, %v2282, %v1999
      %v2321 = vsel %vm2297, %v2284, %v2001
      %v2323 = vsel %vm2297, %v2286, %v2003
      %v2325 = vsel %vm2297, %v2288, %v2005
      %v2327 = vsel %vm2297, %v2290, %v2007
      %v2329 = vsel %vm2297, %v2292, %v2009
      %v2331 = vsel %vm2297, %v2294, %v2011
      %v2333 = vsel %vm2297, %v2296, %v2013
      %vm2334 = vcmask 392192
      %v2336 = vsel %vm2334, %v2299, %v2018
      %v2338 = vsel %vm2334, %v2301, %v2020
      %v2340 = vsel %vm2334, %v2303, %v2022
      %v2342 = vsel %vm2334, %v2305, %v2024
      %v2344 = vsel %vm2334, %v2307, %v2026
      %v2346 = vsel %vm2334, %v2309, %v2028
      %v2348 = vsel %vm2334, %v2311, %v2030
      %v2350 = vsel %vm2334, %v2313, %v2032
      %v2352 = vsel %vm2334, %v2315, %v2034
      %v2354 = vsel %vm2334, %v2317, %v2036
      %v2356 = vsel %vm2334, %v2319, %v2038
      %v2358 = vsel %vm2334, %v2321, %v2040
      %v2360 = vsel %vm2334, %v2323, %v2042
      %v2362 = vsel %vm2334, %v2325, %v2044
      %v2364 = vsel %vm2334, %v2327, %v2046
      %v2366 = vsel %vm2334, %v2329, %v2048
      %v2368 = vsel %vm2334, %v2331, %v2050
      %v2370 = vsel %vm2334, %v2333, %v2052
      %vm2371 = vcmask 457728
      %v2373 = vsel %vm2371, %v2336, %v2057
      %v2375 = vsel %vm2371, %v2338, %v2059
      %v2377 = vsel %vm2371, %v2340, %v2061
      %v2379 = vsel %vm2371, %v2342, %v2063
      %v2381 = vsel %vm2371, %v2344, %v2065
      %v2383 = vsel %vm2371, %v2346, %v2067
      %v2385 = vsel %vm2371, %v2348, %v2069
      %v2387 = vsel %vm2371, %v2350, %v2071
      %v2389 = vsel %vm2371, %v2352, %v2073
      %v2391 = vsel %vm2371, %v2354, %v2075
      %v2393 = vsel %vm2371, %v2356, %v2077
      %v2395 = vsel %vm2371, %v2358, %v2079
      %v2397 = vsel %vm2371, %v2360, %v2081
      %v2399 = vsel %vm2371, %v2362, %v2083
      %v2401 = vsel %vm2371, %v2364, %v2085
      %v2403 = vsel %vm2371, %v2366, %v2087
      %v2405 = vsel %vm2371, %v2368, %v2089
      %v2407 = vsel %vm2371, %v2370, %v2091
      %vm2408 = vcmask 523264
      %v2410 = vsel %vm2408, %v2373, %v2096
      %v2412 = vsel %vm2408, %v2375, %v2098
      %v2414 = vsel %vm2408, %v2377, %v2100
      %v2416 = vsel %vm2408, %v2379, %v2102
      %v2418 = vsel %vm2408, %v2381, %v2104
      %v2420 = vsel %vm2408, %v2383, %v2106
      %v2422 = vsel %vm2408, %v2385, %v2108
      %v2424 = vsel %vm2408, %v2387, %v2110
      %v2426 = vsel %vm2408, %v2389, %v2112
      %v2428 = vsel %vm2408, %v2391, %v2114
      %v2430 = vsel %vm2408, %v2393, %v2116
      %v2432 = vsel %vm2408, %v2395, %v2118
      %v2434 = vsel %vm2408, %v2397, %v2120
      %v2436 = vsel %vm2408, %v2399, %v2122
      %v2438 = vsel %vm2408, %v2401, %v2124
      %v2440 = vsel %vm2408, %v2403, %v2126
      %v2442 = vsel %vm2408, %v2405, %v2128
      %v2444 = vsel %vm2408, %v2407, %v2130
      %v2454 = vunpack.c.l.b16 %v966
      %v2455 = vunpack.c.l.b16 %v967
      %v2456 = vunpack.c.l.b16 %v968
      %v2457 = vunpack.c.l.b16 %v969
      %v2458 = vunpack.c.l.b16 %v970
      %v2459 = vunpack.c.l.b16 %v971
      %v2460 = vunpack.c.l.b16 %v972
      %v2461 = vunpack.c.l.b16 %v973
      %v2462 = vunpack.c.l.b16 %v974
      %v2463 = vpack.c.b16 %v2455, %v2454
      %v2464 = vpack.c.b16 %v2457, %v2456
      %v2465 = vpack.c.b16 %v2459, %v2458
      %v2466 = vpack.c.b16 %v2461, %v2460
      %v2467 = vpack.c.b16 %v2462, %v2462
      %vm2472 = vcmask 588800
      %v2473 = vsel %vm2472, %v2410, 0
      %v2475 = vsel %vm2472, %v2412, 0
      %v2477 = vsel %vm2472, %v2414, 0
      %v2479 = vsel %vm2472, %v2416, 0
      %v2481 = vsel %vm2472, %v2418, 0
      %v2483 = vsel %vm2472, %v2420, 0
      %v2485 = vsel %vm2472, %v2422, 0
      %v2487 = vsel %vm2472, %v2424, 0
      %v2489 = vsel %vm2472, %v2426, 0
      %v2491 = vsel %vm2472, %v2428, 0
      %v2493 = vsel %vm2472, %v2430, 0
      %v2495 = vsel %vm2472, %v2432, 0
      %v2497 = vsel %vm2472, %v2434, 0
      %v2499 = vsel %vm2472, %v2436, 0
      %v2501 = vsel %vm2472, %v2438, 0
      %v2503 = vsel %vm2472, %v2440, 0
      %v2505 = vsel %vm2472, %v2442, 0
      %v2507 = vsel %vm2472, %v2444, 0
      %vm2509 = vcmask 1043456
      %v2511 = vsel %vm2509, %v2467, 0
      %2513 = vmatprep.subr.bf16.mxu0 0
      %2514 = vmatpush1.bf16.msra.mxu0 0
      %2515 = vmatprep.subr.bf16.mxu0 0
      %2516 = vmatpush1.bf16.msra.mxu0 0
      %2517 = vmatprep.subr.bf16.mxu0 0
      %2518 = vmatpush1.bf16.msra.mxu0 0
      %2519 = vmatprep.subr.bf16.mxu0 0
      %2520 = vmatpush1.bf16.msra.mxu0 %v2511
      %2521 = vmatprep.subr.bf16.mxu0 0
      %2522 = vmatpush1.bf16.msra.mxu0 %v2466
      %2523 = vmatprep.subr.bf16.mxu0 0
      %2524 = vmatpush1.bf16.msra.mxu0 %v2465
      %2525 = vmatprep.subr.bf16.mxu0 0
      %2526 = vmatpush1.bf16.msra.mxu0 %v2464
      %2527 = vmatprep.subr.bf16.mxu0 0
      %2528 = vmatpush1.bf16.msra.mxu0 %v2463
      %2529 = vmatprep.subr.bf16.mxu0 0
      %2530 = vmatpush2.bf16.msra.mxu0 0
      %2531 = vmatprep.subr.bf16.mxu0 0
      %2532 = vmatpush2.bf16.msra.mxu0 0
      %2533 = vmatprep.subr.bf16.mxu0 0
      %2534 = vmatpush2.bf16.msra.mxu0 0
      %2535 = vmatprep.subr.bf16.mxu0 0
      %2536 = vmatpush2.bf16.msra.mxu0 0
      %2537 = vmatprep.subr.bf16.mxu0 0
      %2538 = vmatpush2.bf16.msra.mxu0 0
      %2539 = vmatprep.subr.bf16.mxu0 0
      %2540 = vmatpush2.bf16.msra.mxu0 0
      %2541 = vmatprep.subr.bf16.mxu0 0
      %2542 = vmatpush2.bf16.msra.mxu0 0
      %2543 = vmatprep.subr.bf16.mxu0 0
      %2544 = vmatpush2.bf16.msra.mxu0 0
      %2545 = vmatprep.mubr.bf16.mxu0 0
      %2546 = vmatmul.mubr.bf16.gmra.mxu0 %v2473
      %v2547 = vpop.f32.mrf.mxu0
      %v2548 = vadd.f32 0.0, %v2547
      %v2549 = vpop.f32.mrf.mxu0
      %v2550 = vpop.f32.mrf.mxu0
      %v2551 = vadd.f32 0.0, %v2550
      %v2552 = vpop.f32.mrf.mxu0
      %2553 = vmatprep.mubr.bf16.mxu0 0
      %2554 = vmatmul.mubr.bf16.gmra.mxu0 %v2475
      %v2555 = vpop.f32.mrf.mxu0
      %v2556 = vadd.f32 0.0, %v2555
      %v2557 = vpop.f32.mrf.mxu0
      %v2558 = vpop.f32.mrf.mxu0
      %v2559 = vadd.f32 0.0, %v2558
      %v2560 = vpop.f32.mrf.mxu0
      %2561 = vmatprep.mubr.bf16.mxu0 0
      %2562 = vmatmul.mubr.bf16.gmra.mxu0 %v2477
      %v2563 = vpop.f32.mrf.mxu0
      %v2564 = vadd.f32 0.0, %v2563
      %v2565 = vpop.f32.mrf.mxu0
      %v2566 = vpop.f32.mrf.mxu0
      %v2567 = vadd.f32 0.0, %v2566
      %v2568 = vpop.f32.mrf.mxu0
      %2569 = vmatprep.mubr.bf16.mxu0 0
      %2570 = vmatmul.mubr.bf16.gmra.mxu0 %v2479
      %v2571 = vpop.f32.mrf.mxu0
      %v2572 = vadd.f32 0.0, %v2571
      %v2573 = vpop.f32.mrf.mxu0
      %v2574 = vpop.f32.mrf.mxu0
      %v2575 = vadd.f32 0.0, %v2574
      %v2576 = vpop.f32.mrf.mxu0
      %2577 = vmatprep.mubr.bf16.mxu0 0
      %2578 = vmatmul.mubr.bf16.gmra.mxu0 %v2481
      %v2579 = vpop.f32.mrf.mxu0
      %v2580 = vadd.f32 0.0, %v2579
      %v2581 = vpop.f32.mrf.mxu0
      %v2582 = vpop.f32.mrf.mxu0
      %v2583 = vadd.f32 0.0, %v2582
      %v2584 = vpop.f32.mrf.mxu0
      %2585 = vmatprep.mubr.bf16.mxu0 0
      %2586 = vmatmul.mubr.bf16.gmra.mxu0 %v2483
      %v2587 = vpop.f32.mrf.mxu0
      %v2588 = vadd.f32 0.0, %v2587
      %v2589 = vpop.f32.mrf.mxu0
      %v2590 = vpop.f32.mrf.mxu0
      %v2591 = vadd.f32 0.0, %v2590
      %v2592 = vpop.f32.mrf.mxu0
      %2593 = vmatprep.mubr.bf16.mxu0 0
      %2594 = vmatmul.mubr.bf16.gmra.mxu0 %v2485
      %v2595 = vpop.f32.mrf.mxu0
      %v2596 = vadd.f32 0.0, %v2595
      %v2597 = vpop.f32.mrf.mxu0
      %v2598 = vpop.f32.mrf.mxu0
      %v2599 = vadd.f32 0.0, %v2598
      %v2600 = vpop.f32.mrf.mxu0
      %2601 = vmatprep.mubr.bf16.mxu0 0
      %2602 = vmatmul.mubr.bf16.gmra.mxu0 %v2487
      %v2603 = vpop.f32.mrf.mxu0
      %v2604 = vadd.f32 0.0, %v2603
      %v2605 = vpop.f32.mrf.mxu0
      %v2606 = vpop.f32.mrf.mxu0
      %v2607 = vadd.f32 0.0, %v2606
      %v2608 = vpop.f32.mrf.mxu0
      %2609 = vmatprep.mubr.bf16.mxu0 0
      %2610 = vmatmul.mubr.bf16.gmra.mxu0 %v2489
      %v2611 = vpop.f32.mrf.mxu0
      %v2612 = vadd.f32 0.0, %v2611
      %v2613 = vpop.f32.mrf.mxu0
      %v2614 = vpop.f32.mrf.mxu0
      %v2615 = vadd.f32 0.0, %v2614
      %v2616 = vpop.f32.mrf.mxu0
      %2617 = vmatprep.mubr.bf16.mxu0 0
      %2618 = vmatmul.mubr.bf16.gmra.mxu0 %v2491
      %v2619 = vpop.f32.mrf.mxu0
      %v2620 = vadd.f32 0.0, %v2619
      %v2621 = vpop.f32.mrf.mxu0
      %v2622 = vpop.f32.mrf.mxu0
      %v2623 = vadd.f32 0.0, %v2622
      %v2624 = vpop.f32.mrf.mxu0
      %2625 = vmatprep.mubr.bf16.mxu0 0
      %2626 = vmatmul.mubr.bf16.gmra.mxu0 %v2493
      %v2627 = vpop.f32.mrf.mxu0
      %v2628 = vadd.f32 0.0, %v2627
      %v2629 = vpop.f32.mrf.mxu0
      %v2630 = vpop.f32.mrf.mxu0
      %v2631 = vadd.f32 0.0, %v2630
      %v2632 = vpop.f32.mrf.mxu0
      %2633 = vmatprep.mubr.bf16.mxu0 0
      %2634 = vmatmul.mubr.bf16.gmra.mxu0 %v2495
      %v2635 = vpop.f32.mrf.mxu0
      %v2636 = vadd.f32 0.0, %v2635
      %v2637 = vpop.f32.mrf.mxu0
      %v2638 = vpop.f32.mrf.mxu0
      %v2639 = vadd.f32 0.0, %v2638
      %v2640 = vpop.f32.mrf.mxu0
      %2641 = vmatprep.mubr.bf16.mxu0 0
      %2642 = vmatmul.mubr.bf16.gmra.mxu0 %v2497
      %v2643 = vpop.f32.mrf.mxu0
      %v2644 = vadd.f32 0.0, %v2643
      %v2645 = vpop.f32.mrf.mxu0
      %v2646 = vpop.f32.mrf.mxu0
      %v2647 = vadd.f32 0.0, %v2646
      %v2648 = vpop.f32.mrf.mxu0
      %2649 = vmatprep.mubr.bf16.mxu0 0
      %2650 = vmatmul.mubr.bf16.gmra.mxu0 %v2499
      %v2651 = vpop.f32.mrf.mxu0
      %v2652 = vadd.f32 0.0, %v2651
      %v2653 = vpop.f32.mrf.mxu0
      %v2654 = vpop.f32.mrf.mxu0
      %v2655 = vadd.f32 0.0, %v2654
      %v2656 = vpop.f32.mrf.mxu0
      %2657 = vmatprep.mubr.bf16.mxu0 0
      %2658 = vmatmul.mubr.bf16.gmra.mxu0 %v2501
      %v2659 = vpop.f32.mrf.mxu0
      %v2660 = vadd.f32 0.0, %v2659
      %v2661 = vpop.f32.mrf.mxu0
      %v2662 = vpop.f32.mrf.mxu0
      %v2663 = vadd.f32 0.0, %v2662
      %v2664 = vpop.f32.mrf.mxu0
      %2665 = vmatprep.mubr.bf16.mxu0 0
      %2666 = vmatmul.mubr.bf16.gmra.mxu0 %v2503
      %v2667 = vpop.f32.mrf.mxu0
      %v2668 = vadd.f32 0.0, %v2667
      %v2669 = vpop.f32.mrf.mxu0
      %v2670 = vpop.f32.mrf.mxu0
      %v2671 = vadd.f32 0.0, %v2670
      %v2672 = vpop.f32.mrf.mxu0
      %2673 = vmatprep.mubr.bf16.mxu0 0
      %2674 = vmatmul.mubr.bf16.gmra.mxu0 %v2505
      %v2675 = vpop.f32.mrf.mxu0
      %v2676 = vadd.f32 0.0, %v2675
      %v2677 = vpop.f32.mrf.mxu0
      %v2678 = vpop.f32.mrf.mxu0
      %v2679 = vadd.f32 0.0, %v2678
      %v2680 = vpop.f32.mrf.mxu0
      %2681 = vmatprep.mubr.bf16.mxu0 0
      %2682 = vmatmul.mubr.bf16.gmra.mxu0 %v2507
      %v2683 = vpop.f32.mrf.mxu0
      %v2684 = vadd.f32 0.0, %v2683
      %v2685 = vpop.f32.mrf.mxu0
      %v2686 = vpop.f32.mrf.mxu0
      %v2687 = vadd.f32 0.0, %v2686
      %v2688 = vpop.f32.mrf.mxu0
      %2689 = vdwg.mxu0
      %v2691 = vlaneseq
      %v2692 = vshrl.u32 %v2691, 7
      %v2693 = vsub.s32 0, %v2692
      %v2694 = vrot.slane %v975, %v2693
      %v2696 = vmul.f32 %v2548, %v2694
      %v2697 = vmul.f32 %v2551, %v2694
      %v2698 = vmul.f32 %v2556, %v2694
      %v2699 = vmul.f32 %v2559, %v2694
      %v2700 = vmul.f32 %v2564, %v2694
      %v2701 = vmul.f32 %v2567, %v2694
      %v2702 = vmul.f32 %v2572, %v2694
      %v2703 = vmul.f32 %v2575, %v2694
      %v2704 = vmul.f32 %v2580, %v2694
      %v2705 = vmul.f32 %v2583, %v2694
      %v2706 = vmul.f32 %v2588, %v2694
      %v2707 = vmul.f32 %v2591, %v2694
      %v2708 = vmul.f32 %v2596, %v2694
      %v2709 = vmul.f32 %v2599, %v2694
      %v2710 = vmul.f32 %v2604, %v2694
      %v2711 = vmul.f32 %v2607, %v2694
      %v2712 = vmul.f32 %v2612, %v2694
      %v2713 = vmul.f32 %v2615, %v2694
      %v2714 = vmul.f32 %v2620, %v2694
      %v2715 = vmul.f32 %v2623, %v2694
      %v2716 = vmul.f32 %v2628, %v2694
      %v2717 = vmul.f32 %v2631, %v2694
      %v2718 = vmul.f32 %v2636, %v2694
      %v2719 = vmul.f32 %v2639, %v2694
      %v2720 = vmul.f32 %v2644, %v2694
      %v2721 = vmul.f32 %v2647, %v2694
      %v2722 = vmul.f32 %v2652, %v2694
      %v2723 = vmul.f32 %v2655, %v2694
      %v2724 = vmul.f32 %v2660, %v2694
      %v2725 = vmul.f32 %v2663, %v2694
      %v2726 = vmul.f32 %v2668, %v2694
      %v2727 = vmul.f32 %v2671, %v2694
      %v2728 = vmul.f32 %v2676, %v2694
      %v2729 = vmul.f32 %v2679, %v2694
      %v2730 = vmul.f32 %v2684, %v2694
      %v2731 = vmul.f32 %v2687, %v2694
      %v2733 = vlaneseq
      %v2734 = vshrl.u32 %v2733, 7
      %v2735 = vsub.s32 0, %v2734
      %v2736 = vrot.slane %v976, %v2735
      %v2738 = vadd.f32 %v2696, %v2736
      %v2739 = vadd.f32 %v2697, %v2736
      %v2740 = vadd.f32 %v2698, %v2736
      %v2741 = vadd.f32 %v2699, %v2736
      %v2742 = vadd.f32 %v2700, %v2736
      %v2743 = vadd.f32 %v2701, %v2736
      %v2744 = vadd.f32 %v2702, %v2736
      %v2745 = vadd.f32 %v2703, %v2736
      %v2746 = vadd.f32 %v2704, %v2736
      %v2747 = vadd.f32 %v2705, %v2736
      %v2748 = vadd.f32 %v2706, %v2736
      %v2749 = vadd.f32 %v2707, %v2736
      %v2750 = vadd.f32 %v2708, %v2736
      %v2751 = vadd.f32 %v2709, %v2736
      %v2752 = vadd.f32 %v2710, %v2736
      %v2753 = vadd.f32 %v2711, %v2736
      %v2754 = vadd.f32 %v2712, %v2736
      %v2755 = vadd.f32 %v2713, %v2736
      %v2756 = vadd.f32 %v2714, %v2736
      %v2757 = vadd.f32 %v2715, %v2736
      %v2758 = vadd.f32 %v2716, %v2736
      %v2759 = vadd.f32 %v2717, %v2736
      %v2760 = vadd.f32 %v2718, %v2736
      %v2761 = vadd.f32 %v2719, %v2736
      %v2762 = vadd.f32 %v2720, %v2736
      %v2763 = vadd.f32 %v2721, %v2736
      %v2764 = vadd.f32 %v2722, %v2736
      %v2765 = vadd.f32 %v2723, %v2736
      %v2766 = vadd.f32 %v2724, %v2736
      %v2767 = vadd.f32 %v2725, %v2736
      %v2768 = vadd.f32 %v2726, %v2736
      %v2769 = vadd.f32 %v2727, %v2736
      %v2770 = vadd.f32 %v2728, %v2736
      %v2771 = vadd.f32 %v2729, %v2736
      %v2772 = vadd.f32 %v2730, %v2736
      %v2773 = vadd.f32 %v2731, %v2736
      %v2774 = vmax.f32 %v2738, 0.0
      %v2775 = vmax.f32 %v2739, 0.0
      %v2776 = vmax.f32 %v2740, 0.0
      %v2777 = vmax.f32 %v2741, 0.0
      %v2778 = vmax.f32 %v2742, 0.0
      %v2779 = vmax.f32 %v2743, 0.0
      %v2780 = vmax.f32 %v2744, 0.0
      %v2781 = vmax.f32 %v2745, 0.0
      %v2782 = vmax.f32 %v2746, 0.0
      %v2783 = vmax.f32 %v2747, 0.0
      %v2784 = vmax.f32 %v2748, 0.0
      %v2785 = vmax.f32 %v2749, 0.0
      %v2786 = vmax.f32 %v2750, 0.0
      %v2787 = vmax.f32 %v2751, 0.0
      %v2788 = vmax.f32 %v2752, 0.0
      %v2789 = vmax.f32 %v2753, 0.0
      %v2790 = vmax.f32 %v2754, 0.0
      %v2791 = vmax.f32 %v2755, 0.0
      %v2792 = vmax.f32 %v2756, 0.0
      %v2793 = vmax.f32 %v2757, 0.0
      %v2794 = vmax.f32 %v2758, 0.0
      %v2795 = vmax.f32 %v2759, 0.0
      %v2796 = vmax.f32 %v2760, 0.0
      %v2797 = vmax.f32 %v2761, 0.0
      %v2798 = vmax.f32 %v2762, 0.0
      %v2799 = vmax.f32 %v2763, 0.0
      %v2800 = vmax.f32 %v2764, 0.0
      %v2801 = vmax.f32 %v2765, 0.0
      %v2802 = vmax.f32 %v2766, 0.0
      %v2803 = vmax.f32 %v2767, 0.0
      %v2804 = vmax.f32 %v2768, 0.0
      %v2805 = vmax.f32 %v2769, 0.0
      %v2806 = vmax.f32 %v2770, 0.0
      %v2807 = vmax.f32 %v2771, 0.0
      %v2808 = vmax.f32 %v2772, 0.0
      %v2809 = vmax.f32 %v2773, 0.0
      %v2810 = vpack.c.bf16 %v2775, %v2774
      %v2811 = vpack.c.bf16 %v2777, %v2776
      %v2812 = vpack.c.bf16 %v2779, %v2778
      %v2813 = vpack.c.bf16 %v2781, %v2780
      %v2814 = vpack.c.bf16 %v2783, %v2782
      %v2815 = vpack.c.bf16 %v2785, %v2784
      %v2816 = vpack.c.bf16 %v2787, %v2786
      %v2817 = vpack.c.bf16 %v2789, %v2788
      %v2818 = vpack.c.bf16 %v2791, %v2790
      %v2819 = vpack.c.bf16 %v2793, %v2792
      %v2820 = vpack.c.bf16 %v2795, %v2794
      %v2821 = vpack.c.bf16 %v2797, %v2796
      %v2822 = vpack.c.bf16 %v2799, %v2798
      %v2823 = vpack.c.bf16 %v2801, %v2800
      %v2824 = vpack.c.bf16 %v2803, %v2802
      %v2825 = vpack.c.bf16 %v2805, %v2804
      %v2826 = vpack.c.bf16 %v2807, %v2806
      %v2827 = vpack.c.bf16 %v2809, %v2808
      %v2846 = vunpack.c.l.b16 %v2810
      %v2847 = vunpack.c.h.b16 %v2810
      %v2848 = vunpack.c.l.b16 %v2811
      %v2849 = vunpack.c.h.b16 %v2811
      %v2850 = vunpack.c.l.b16 %v2812
      %v2851 = vunpack.c.h.b16 %v2812
      %v2852 = vunpack.c.l.b16 %v2813
      %v2853 = vunpack.c.h.b16 %v2813
      %v2854 = vunpack.c.l.b16 %v2814
      %v2855 = vunpack.c.h.b16 %v2814
      %v2856 = vunpack.c.l.b16 %v2815
      %v2857 = vunpack.c.h.b16 %v2815
      %v2858 = vunpack.c.l.b16 %v2816
      %v2859 = vunpack.c.h.b16 %v2816
      %v2860 = vunpack.c.l.b16 %v2817
      %v2861 = vunpack.c.h.b16 %v2817
      %v2862 = vunpack.c.l.b16 %v2818
      %v2863 = vunpack.c.h.b16 %v2818
      %v2864 = vunpack.c.l.b16 %v2819
      %v2865 = vunpack.c.h.b16 %v2819
      %v2866 = vunpack.c.l.b16 %v2820
      %v2867 = vunpack.c.h.b16 %v2820
      %v2868 = vunpack.c.l.b16 %v2821
      %v2869 = vunpack.c.h.b16 %v2821
      %v2870 = vunpack.c.l.b16 %v2822
      %v2871 = vunpack.c.h.b16 %v2822
      %v2872 = vunpack.c.l.b16 %v2823
      %v2873 = vunpack.c.h.b16 %v2823
      %v2874 = vunpack.c.l.b16 %v2824
      %v2875 = vunpack.c.h.b16 %v2824
      %v2876 = vunpack.c.l.b16 %v2825
      %v2877 = vunpack.c.h.b16 %v2825
      %v2878 = vunpack.c.l.b16 %v2826
      %v2879 = vunpack.c.h.b16 %v2826
      %v2880 = vunpack.c.l.b16 %v2827
      %v2881 = vunpack.c.h.b16 %v2827
      %v2882 = vpack.c.b16 %v2846, %v2846
      %v2883 = vpack.c.b16 %v2847, %v2847
      %v2884 = vpack.c.b16 %v2848, %v2848
      %v2885 = vpack.c.b16 %v2849, %v2849
      %v2886 = vpack.c.b16 %v2850, %v2850
      %v2887 = vpack.c.b16 %v2851, %v2851
      %v2888 = vpack.c.b16 %v2852, %v2852
      %v2889 = vpack.c.b16 %v2853, %v2853
      %v2890 = vpack.c.b16 %v2854, %v2854
      %v2891 = vpack.c.b16 %v2855, %v2855
      %v2892 = vpack.c.b16 %v2856, %v2856
      %v2893 = vpack.c.b16 %v2857, %v2857
      %v2894 = vpack.c.b16 %v2858, %v2858
      %v2895 = vpack.c.b16 %v2859, %v2859
      %v2896 = vpack.c.b16 %v2860, %v2860
      %v2897 = vpack.c.b16 %v2861, %v2861
      %v2898 = vpack.c.b16 %v2862, %v2862
      %v2899 = vpack.c.b16 %v2863, %v2863
      %v2900 = vpack.c.b16 %v2864, %v2864
      %v2901 = vpack.c.b16 %v2865, %v2865
      %v2902 = vpack.c.b16 %v2866, %v2866
      %v2903 = vpack.c.b16 %v2867, %v2867
      %v2904 = vpack.c.b16 %v2868, %v2868
      %v2905 = vpack.c.b16 %v2869, %v2869
      %v2906 = vpack.c.b16 %v2870, %v2870
      %v2907 = vpack.c.b16 %v2871, %v2871
      %v2908 = vpack.c.b16 %v2872, %v2872
      %v2909 = vpack.c.b16 %v2873, %v2873
      %v2910 = vpack.c.b16 %v2874, %v2874
      %v2911 = vpack.c.b16 %v2875, %v2875
      %v2912 = vpack.c.b16 %v2876, %v2876
      %v2913 = vpack.c.b16 %v2877, %v2877
      %v2914 = vpack.c.b16 %v2878, %v2878
      %v2915 = vpack.c.b16 %v2879, %v2879
      %v2916 = vpack.c.b16 %v2880, %v2880
      %v2917 = vpack.c.b16 %v2881, %v2881
      %vm2918 = vsmask.f32 256
      %vm2919 = vsmask.f32 4368
      %vm2920 = vmor %vm2918, %vm2919
      %v2922 = vshrl.u32 %v2882, 16
      %v2924 = vrot.slane %v2922, 7
      %v2925 = vshll.u32 %v2882, 16
      %v2927 = vor.u32 %v2924, %v2925
      %v2928 = vrot.slane %v2924, 4
      %v2930 = vshrl.u32 %v2883, 16
      %v2932 = vrot.slane %v2930, 7
      %v2933 = vshll.u32 %v2883, 16
      %v2935 = vor.u32 %v2932, %v2933
      %v2936 = vsel %vm2920, %v2928, %v2935
      %v2937 = vrot.slane %v2932, 4
      %v2939 = vshrl.u32 %v2884, 16
      %v2941 = vrot.slane %v2939, 7
      %v2942 = vshll.u32 %v2884, 16
      %v2944 = vor.u32 %v2941, %v2942
      %v2945 = vrot.slane %v2941, 4
      %v2947 = vshrl.u32 %v2885, 16
      %v2949 = vrot.slane %v2947, 7
      %v2950 = vshll.u32 %v2885, 16
      %v2952 = vor.u32 %v2949, %v2950
      %v2953 = vsel %vm2920, %v2945, %v2952
      %v2954 = vrot.slane %v2949, 4
      %v2956 = vshrl.u32 %v2886, 16
      %v2958 = vrot.slane %v2956, 7
      %v2959 = vshll.u32 %v2886, 16
      %v2961 = vor.u32 %v2958, %v2959
      %v2962 = vrot.slane %v2958, 4
      %v2964 = vshrl.u32 %v2887, 16
      %v2966 = vrot.slane %v2964, 7
      %v2967 = vshll.u32 %v2887, 16
      %v2969 = vor.u32 %v2966, %v2967
      %v2970 = vsel %vm2920, %v2962, %v2969
      %v2971 = vrot.slane %v2966, 4
      %v2973 = vshrl.u32 %v2888, 16
      %v2975 = vrot.slane %v2973, 7
      %v2976 = vshll.u32 %v2888, 16
      %v2978 = vor.u32 %v2975, %v2976
      %v2979 = vrot.slane %v2975, 4
      %v2981 = vshrl.u32 %v2889, 16
      %v2983 = vrot.slane %v2981, 7
      %v2984 = vshll.u32 %v2889, 16
      %v2986 = vor.u32 %v2983, %v2984
      %v2987 = vsel %vm2920, %v2979, %v2986
      %v2988 = vrot.slane %v2983, 4
      %v2990 = vshrl.u32 %v2890, 16
      %v2992 = vrot.slane %v2990, 7
      %v2993 = vshll.u32 %v2890, 16
      %v2995 = vor.u32 %v2992, %v2993
      %v2996 = vrot.slane %v2992, 4
      %v2998 = vshrl.u32 %v2891, 16
      %v3000 = vrot.slane %v2998, 7
      %v3001 = vshll.u32 %v2891, 16
      %v3003 = vor.u32 %v3000, %v3001
      %v3004 = vsel %vm2920, %v2996, %v3003
      %v3005 = vrot.slane %v3000, 4
      %v3007 = vshrl.u32 %v2892, 16
      %v3009 = vrot.slane %v3007, 7
      %v3010 = vshll.u32 %v2892, 16
      %v3012 = vor.u32 %v3009, %v3010
      %v3013 = vrot.slane %v3009, 4
      %v3015 = vshrl.u32 %v2893, 16
      %v3017 = vrot.slane %v3015, 7
      %v3018 = vshll.u32 %v2893, 16
      %v3020 = vor.u32 %v3017, %v3018
      %v3021 = vsel %vm2920, %v3013, %v3020
      %v3022 = vrot.slane %v3017, 4
      %v3024 = vshrl.u32 %v2894, 16
      %v3026 = vrot.slane %v3024, 7
      %v3027 = vshll.u32 %v2894, 16
      %v3029 = vor.u32 %v3026, %v3027
      %v3030 = vrot.slane %v3026, 4
      %v3032 = vshrl.u32 %v2895, 16
      %v3034 = vrot.slane %v3032, 7
      %v3035 = vshll.u32 %v2895, 16
      %v3037 = vor.u32 %v3034, %v3035
      %v3038 = vsel %vm2920, %v3030, %v3037
      %v3039 = vrot.slane %v3034, 4
      %v3041 = vshrl.u32 %v2896, 16
      %v3043 = vrot.slane %v3041, 7
      %v3044 = vshll.u32 %v2896, 16
      %v3046 = vor.u32 %v3043, %v3044
      %v3047 = vrot.slane %v3043, 4
      %v3049 = vshrl.u32 %v2897, 16
      %v3051 = vrot.slane %v3049, 7
      %v3052 = vshll.u32 %v2897, 16
      %v3054 = vor.u32 %v3051, %v3052
      %v3055 = vsel %vm2920, %v3047, %v3054
      %v3056 = vrot.slane %v3051, 4
      %v3058 = vshrl.u32 %v2898, 16
      %v3060 = vrot.slane %v3058, 7
      %v3061 = vshll.u32 %v2898, 16
      %v3063 = vor.u32 %v3060, %v3061
      %v3064 = vrot.slane %v3060, 4
      %v3066 = vshrl.u32 %v2899, 16
      %v3068 = vrot.slane %v3066, 7
      %v3069 = vshll.u32 %v2899, 16
      %v3071 = vor.u32 %v3068, %v3069
      %v3072 = vsel %vm2920, %v3064, %v3071
      %v3073 = vrot.slane %v3068, 4
      %v3075 = vshrl.u32 %v2900, 16
      %v3077 = vrot.slane %v3075, 7
      %v3078 = vshll.u32 %v2900, 16
      %v3080 = vor.u32 %v3077, %v3078
      %v3081 = vrot.slane %v3077, 4
      %v3083 = vshrl.u32 %v2901, 16
      %v3085 = vrot.slane %v3083, 7
      %v3086 = vshll.u32 %v2901, 16
      %v3088 = vor.u32 %v3085, %v3086
      %v3089 = vsel %vm2920, %v3081, %v3088
      %v3090 = vrot.slane %v3085, 4
      %v3092 = vshrl.u32 %v2902, 16
      %v3094 = vrot.slane %v3092, 7
      %v3095 = vshll.u32 %v2902, 16
      %v3097 = vor.u32 %v3094, %v3095
      %v3098 = vrot.slane %v3094, 4
      %v3100 = vshrl.u32 %v2903, 16
      %v3102 = vrot.slane %v3100, 7
      %v3103 = vshll.u32 %v2903, 16
      %v3105 = vor.u32 %v3102, %v3103
      %v3106 = vsel %vm2920, %v3098, %v3105
      %v3107 = vrot.slane %v3102, 4
      %v3109 = vshrl.u32 %v2904, 16
      %v3111 = vrot.slane %v3109, 7
      %v3112 = vshll.u32 %v2904, 16
      %v3114 = vor.u32 %v3111, %v3112
      %v3115 = vrot.slane %v3111, 4
      %v3117 = vshrl.u32 %v2905, 16
      %v3119 = vrot.slane %v3117, 7
      %v3120 = vshll.u32 %v2905, 16
      %v3122 = vor.u32 %v3119, %v3120
      %v3123 = vsel %vm2920, %v3115, %v3122
      %v3124 = vrot.slane %v3119, 4
      %v3126 = vshrl.u32 %v2906, 16
      %v3128 = vrot.slane %v3126, 7
      %v3129 = vshll.u32 %v2906, 16
      %v3131 = vor.u32 %v3128, %v3129
      %v3132 = vrot.slane %v3128, 4
      %v3134 = vshrl.u32 %v2907, 16
      %v3136 = vrot.slane %v3134, 7
      %v3137 = vshll.u32 %v2907, 16
      %v3139 = vor.u32 %v3136, %v3137
      %v3140 = vsel %vm2920, %v3132, %v3139
      %v3141 = vrot.slane %v3136, 4
      %v3143 = vshrl.u32 %v2908, 16
      %v3145 = vrot.slane %v3143, 7
      %v3146 = vshll.u32 %v2908, 16
      %v3148 = vor.u32 %v3145, %v3146
      %v3149 = vrot.slane %v3145, 4
      %v3151 = vshrl.u32 %v2909, 16
      %v3153 = vrot.slane %v3151, 7
      %v3154 = vshll.u32 %v2909, 16
      %v3156 = vor.u32 %v3153, %v3154
      %v3157 = vsel %vm2920, %v3149, %v3156
      %v3158 = vrot.slane %v3153, 4
      %v3160 = vshrl.u32 %v2910, 16
      %v3162 = vrot.slane %v3160, 7
      %v3163 = vshll.u32 %v2910, 16
      %v3165 = vor.u32 %v3162, %v3163
      %v3166 = vrot.slane %v3162, 4
      %v3168 = vshrl.u32 %v2911, 16
      %v3170 = vrot.slane %v3168, 7
      %v3171 = vshll.u32 %v2911, 16
      %v3173 = vor.u32 %v3170, %v3171
      %v3174 = vsel %vm2920, %v3166, %v3173
      %v3175 = vrot.slane %v3170, 4
      %v3177 = vshrl.u32 %v2912, 16
      %v3179 = vrot.slane %v3177, 7
      %v3180 = vshll.u32 %v2912, 16
      %v3182 = vor.u32 %v3179, %v3180
      %v3183 = vrot.slane %v3179, 4
      %v3185 = vshrl.u32 %v2913, 16
      %v3187 = vrot.slane %v3185, 7
      %v3188 = vshll.u32 %v2913, 16
      %v3190 = vor.u32 %v3187, %v3188
      %v3191 = vsel %vm2920, %v3183, %v3190
      %v3192 = vrot.slane %v3187, 4
      %v3194 = vshrl.u32 %v2914, 16
      %v3196 = vrot.slane %v3194, 7
      %v3197 = vshll.u32 %v2914, 16
      %v3199 = vor.u32 %v3196, %v3197
      %v3200 = vrot.slane %v3196, 4
      %v3202 = vshrl.u32 %v2915, 16
      %v3204 = vrot.slane %v3202, 7
      %v3205 = vshll.u32 %v2915, 16
      %v3207 = vor.u32 %v3204, %v3205
      %v3208 = vsel %vm2920, %v3200, %v3207
      %v3209 = vrot.slane %v3204, 4
      %v3211 = vshrl.u32 %v2916, 16
      %v3213 = vrot.slane %v3211, 7
      %v3214 = vshll.u32 %v2916, 16
      %v3216 = vor.u32 %v3213, %v3214
      %v3217 = vrot.slane %v3213, 4
      %v3219 = vshrl.u32 %v2917, 16
      %v3221 = vrot.slane %v3219, 7
      %v3222 = vshll.u32 %v2917, 16
      %v3224 = vor.u32 %v3221, %v3222
      %v3225 = vsel %vm2920, %v3217, %v3224
      %v3226 = vrot.slane %v3221, 4
      %vm3281 = vcmask 27648
      %vm3282 = vsmask.f32 7938
      %vm3283 = vmand %vm3281, %vm3282
      %v3284 = vld [vmem:[#allocation3] sm:$0xf]
      %v3285 = vsel %vm3283, %v2927, %v3284
      %3286 = vst [vmem:[#allocation3] sm:$0xf] %v3285
      %vm3287 = vcmask 27648
      %3288 = vst.msk [vmem:[#allocation3 + $0x4] sm:$0xf] %vm3287, %v2936
      %vm3289 = vcmask 24576
      %vm3290 = vmand %vm3289, %vm2918
      %v3291 = vld [vmem:[#allocation3 + $0x8] sm:$0x1]
      %v3292 = vsel %vm3290, %v2937, %v3291
      %3293 = vst [vmem:[#allocation3 + $0x8] sm:$0x1] %v3292
      %v3294 = vld [vmem:[#allocation3 + $0xc] sm:$0xf]
      %v3295 = vsel %vm3283, %v2944, %v3294
      %3296 = vst [vmem:[#allocation3 + $0xc] sm:$0xf] %v3295
      %3297 = vst.msk [vmem:[#allocation3 + $0x10] sm:$0xf] %vm3287, %v2953
      %v3298 = vld [vmem:[#allocation3 + $0x14] sm:$0x1]
      %v3299 = vsel %vm3290, %v2954, %v3298
      %3300 = vst [vmem:[#allocation3 + $0x14] sm:$0x1] %v3299
      %v3301 = vld [vmem:[#allocation3 + $0x18] sm:$0xf]
      %v3302 = vsel %vm3283, %v2961, %v3301
      %3303 = vst [vmem:[#allocation3 + $0x18] sm:$0xf] %v3302
      %3304 = vst.msk [vmem:[#allocation3 + $0x1c] sm:$0xf] %vm3287, %v2970
      %v3305 = vld [vmem:[#allocation3 + $0x20] sm:$0x1]
      %v3306 = vsel %vm3290, %v2971, %v3305
      %3307 = vst [vmem:[#allocation3 + $0x20] sm:$0x1] %v3306
      %v3308 = vld [vmem:[#allocation3 + $0x24] sm:$0xf]
      %v3309 = vsel %vm3283, %v2978, %v3308
      %3310 = vst [vmem:[#allocation3 + $0x24] sm:$0xf] %v3309
      %3311 = vst.msk [vmem:[#allocation3 + $0x28] sm:$0xf] %vm3287, %v2987
      %v3312 = vld [vmem:[#allocation3 + $0x2c] sm:$0x1]
      %v3313 = vsel %vm3290, %v2988, %v3312
      %3314 = vst [vmem:[#allocation3 + $0x2c] sm:$0x1] %v3313
      %v3315 = vld [vmem:[#allocation3 + $0x30] sm:$0xf]
      %v3316 = vsel %vm3283, %v2995, %v3315
      %3317 = vst [vmem:[#allocation3 + $0x30] sm:$0xf] %v3316
      %3318 = vst.msk [vmem:[#allocation3 + $0x34] sm:$0xf] %vm3287, %v3004
      %v3319 = vld [vmem:[#allocation3 + $0x38] sm:$0x1]
      %v3320 = vsel %vm3290, %v3005, %v3319
      %3321 = vst [vmem:[#allocation3 + $0x38] sm:$0x1] %v3320
      %v3322 = vld [vmem:[#allocation3 + $0x3c] sm:$0xf]
      %v3323 = vsel %vm3283, %v3012, %v3322
      %3324 = vst [vmem:[#allocation3 + $0x3c] sm:$0xf] %v3323
      %3325 = vst.msk [vmem:[#allocation3 + $0x40] sm:$0xf] %vm3287, %v3021
      %v3326 = vld [vmem:[#allocation3 + $0x44] sm:$0x1]
      %v3327 = vsel %vm3290, %v3022, %v3326
      %3328 = vst [vmem:[#allocation3 + $0x44] sm:$0x1] %v3327
      %v3329 = vld [vmem:[#allocation3 + $0x48] sm:$0xf]
      %v3330 = vsel %vm3283, %v3029, %v3329
      %3331 = vst [vmem:[#allocation3 + $0x48] sm:$0xf] %v3330
      %3332 = vst.msk [vmem:[#allocation3 + $0x4c] sm:$0xf] %vm3287, %v3038
      %v3333 = vld [vmem:[#allocation3 + $0x50] sm:$0x1]
      %v3334 = vsel %vm3290, %v3039, %v3333
      %3335 = vst [vmem:[#allocation3 + $0x50] sm:$0x1] %v3334
      %v3336 = vld [vmem:[#allocation3 + $0x54] sm:$0xf]
      %v3337 = vsel %vm3283, %v3046, %v3336
      %3338 = vst [vmem:[#allocation3 + $0x54] sm:$0xf] %v3337
      %3339 = vst.msk [vmem:[#allocation3 + $0x58] sm:$0xf] %vm3287, %v3055
      %v3340 = vld [vmem:[#allocation3 + $0x5c] sm:$0x1]
      %v3341 = vsel %vm3290, %v3056, %v3340
      %3342 = vst [vmem:[#allocation3 + $0x5c] sm:$0x1] %v3341
      %v3343 = vld [vmem:[#allocation3 + $0x60] sm:$0xf]
      %v3344 = vsel %vm3283, %v3063, %v3343
      %3345 = vst [vmem:[#allocation3 + $0x60] sm:$0xf] %v3344
      %3346 = vst.msk [vmem:[#allocation3 + $0x64] sm:$0xf] %vm3287, %v3072
      %v3347 = vld [vmem:[#allocation3 + $0x68] sm:$0x1]
      %v3348 = vsel %vm3290, %v3073, %v3347
      %3349 = vst [vmem:[#allocation3 + $0x68] sm:$0x1] %v3348
      %v3350 = vld [vmem:[#allocation3 + $0x6c] sm:$0xf]
      %v3351 = vsel %vm3283, %v3080, %v3350
      %3352 = vst [vmem:[#allocation3 + $0x6c] sm:$0xf] %v3351
      %3353 = vst.msk [vmem:[#allocation3 + $0x70] sm:$0xf] %vm3287, %v3089
      %v3354 = vld [vmem:[#allocation3 + $0x74] sm:$0x1]
      %v3355 = vsel %vm3290, %v3090, %v3354
      %3356 = vst [vmem:[#allocation3 + $0x74] sm:$0x1] %v3355
      %v3357 = vld [vmem:[#allocation3 + $0x78] sm:$0xf]
      %v3358 = vsel %vm3283, %v3097, %v3357
      %3359 = vst [vmem:[#allocation3 + $0x78] sm:$0xf] %v3358
      %3360 = vst.msk [vmem:[#allocation3 + $0x7c] sm:$0xf] %vm3287, %v3106
      %v3361 = vld [vmem:[#allocation3 + $0x80] sm:$0x1]
      %v3362 = vsel %vm3290, %v3107, %v3361
      %3363 = vst [vmem:[#allocation3 + $0x80] sm:$0x1] %v3362
      %v3364 = vld [vmem:[#allocation3 + $0x84] sm:$0xf]
      %v3365 = vsel %vm3283, %v3114, %v3364
      %3366 = vst [vmem:[#allocation3 + $0x84] sm:$0xf] %v3365
      %3367 = vst.msk [vmem:[#allocation3 + $0x88] sm:$0xf] %vm3287, %v3123
      %v3368 = vld [vmem:[#allocation3 + $0x8c] sm:$0x1]
      %v3369 = vsel %vm3290, %v3124, %v3368
      %3370 = vst [vmem:[#allocation3 + $0x8c] sm:$0x1] %v3369
      %v3371 = vld [vmem:[#allocation3 + $0x90] sm:$0xf]
      %v3372 = vsel %vm3283, %v3131, %v3371
      %3373 = vst [vmem:[#allocation3 + $0x90] sm:$0xf] %v3372
      %3374 = vst.msk [vmem:[#allocation3 + $0x94] sm:$0xf] %vm3287, %v3140
      %v3375 = vld [vmem:[#allocation3 + $0x98] sm:$0x1]
      %v3376 = vsel %vm3290, %v3141, %v3375
      %3377 = vst [vmem:[#allocation3 + $0x98] sm:$0x1] %v3376
      %v3378 = vld [vmem:[#allocation3 + $0x9c] sm:$0xf]
      %v3379 = vsel %vm3283, %v3148, %v3378
      %3380 = vst [vmem:[#allocation3 + $0x9c] sm:$0xf] %v3379
      %3381 = vst.msk [vmem:[#allocation3 + $0xa0] sm:$0xf] %vm3287, %v3157
      %v3382 = vld [vmem:[#allocation3 + $0xa4] sm:$0x1]
      %v3383 = vsel %vm3290, %v3158, %v3382
      %3384 = vst [vmem:[#allocation3 + $0xa4] sm:$0x1] %v3383
      %v3385 = vld [vmem:[#allocation3 + $0xa8] sm:$0xf]
      %v3386 = vsel %vm3283, %v3165, %v3385
      %3387 = vst [vmem:[#allocation3 + $0xa8] sm:$0xf] %v3386
      %3388 = vst.msk [vmem:[#allocation3 + $0xac] sm:$0xf] %vm3287, %v3174
      %v3389 = vld [vmem:[#allocation3 + $0xb0] sm:$0x1]
      %v3390 = vsel %vm3290, %v3175, %v3389
      %3391 = vst [vmem:[#allocation3 + $0xb0] sm:$0x1] %v3390
      %v3392 = vld [vmem:[#allocation3 + $0xb4] sm:$0xf]
      %v3393 = vsel %vm3283, %v3182, %v3392
      %3394 = vst [vmem:[#allocation3 + $0xb4] sm:$0xf] %v3393
      %3395 = vst.msk [vmem:[#allocation3 + $0xb8] sm:$0xf] %vm3287, %v3191
      %v3396 = vld [vmem:[#allocation3 + $0xbc] sm:$0x1]
      %v3397 = vsel %vm3290, %v3192, %v3396
      %3398 = vst [vmem:[#allocation3 + $0xbc] sm:$0x1] %v3397
      %v3399 = vld [vmem:[#allocation3 + $0xc0] sm:$0xf]
      %v3400 = vsel %vm3283, %v3199, %v3399
      %3401 = vst [vmem:[#allocation3 + $0xc0] sm:$0xf] %v3400
      %3402 = vst.msk [vmem:[#allocation3 + $0xc4] sm:$0xf] %vm3287, %v3208
      %v3403 = vld [vmem:[#allocation3 + $0xc8] sm:$0x1]
      %v3404 = vsel %vm3290, %v3209, %v3403
      %3405 = vst [vmem:[#allocation3 + $0xc8] sm:$0x1] %v3404
      %v3406 = vld [vmem:[#allocation3 + $0xcc] sm:$0xf]
      %v3407 = vsel %vm3283, %v3216, %v3406
      %3408 = vst [vmem:[#allocation3 + $0xcc] sm:$0xf] %v3407
      %3409 = vst.msk [vmem:[#allocation3 + $0xd0] sm:$0xf] %vm3287, %v3225
      %v3410 = vld [vmem:[#allocation3 + $0xd4] sm:$0x1]
      %v3411 = vsel %vm3290, %v3226, %v3410
      %3412 = vst [vmem:[#allocation3 + $0xd4] sm:$0x1] %v3411
      // Predicated region
      $region72: #{up_forward.1} parent=59 // pred_check
        %p3413 = pneg %p406
      $region73: #{up_forward.1} parent=59 // pred_check_branch
        %3415 = sbr.rel (%p3413) target = $region75
      $region74: #{up_forward.1} parent=59 // pred_region
        %3416 = vst.msk [vmem:[#allocation3] sm:$0xf] %vm3287, 0
        %3417 = vst.msk [vmem:[#allocation3 + $0x4] sm:$0xf] %vm3287, 0
        %vm3418 = vcmask 24576
        %3419 = vst.msk [vmem:[#allocation3 + $0x8] sm:$0x1] %vm3418, 0
        %s3420 = scalar_lea.vmem [#allocation3], 204
        %3421 = vst.msk [vmem:[%s3420] sm:$0xf] %vm3287, 0
        %3422 = vst.msk [vmem:[%s3420 + $0x4] sm:$0xf] %vm3287, 0
        %3423 = vst.msk [vmem:[%s3420 + $0x8] sm:$0x1] %vm3418, 0
      $region75: #{up_forward.1} parent=59 // pred_fallthru
        _
      %v3424 = vld [vmem:[#allocation3] sm:$0xf]
      %v3425 = vld [vmem:[#allocation3 + $0x4] sm:$0xf]
      %v3426 = vld [vmem:[#allocation3 + $0x8] sm:$0x1]
      %v3427 = vld [vmem:[#allocation3 + $0xc] sm:$0xf]
      %v3428 = vld [vmem:[#allocation3 + $0x10] sm:$0xf]
      %v3429 = vld [vmem:[#allocation3 + $0x14] sm:$0x1]
      %v3430 = vld [vmem:[#allocation3 + $0x18] sm:$0xf]
      %v3431 = vld [vmem:[#allocation3 + $0x1c] sm:$0xf]
      %v3432 = vld [vmem:[#allocation3 + $0x20] sm:$0x1]
      %v3433 = vld [vmem:[#allocation3 + $0x24] sm:$0xf]
      %v3434 = vld [vmem:[#allocation3 + $0x28] sm:$0xf]
      %v3435 = vld [vmem:[#allocation3 + $0x2c] sm:$0x1]
      %v3436 = vld [vmem:[#allocation3 + $0x30] sm:$0xf]
      %v3437 = vld [vmem:[#allocation3 + $0x34] sm:$0xf]
      %v3438 = vld [vmem:[#allocation3 + $0x38] sm:$0x1]
      %v3439 = vld [vmem:[#allocation3 + $0x3c] sm:$0xf]
      %v3440 = vld [vmem:[#allocation3 + $0x40] sm:$0xf]
      %v3441 = vld [vmem:[#allocation3 + $0x44] sm:$0x1]
      %v3442 = vld [vmem:[#allocation3 + $0x48] sm:$0xf]
      %v3443 = vld [vmem:[#allocation3 + $0x4c] sm:$0xf]
      %v3444 = vld [vmem:[#allocation3 + $0x50] sm:$0x1]
      %v3445 = vld [vmem:[#allocation3 + $0x54] sm:$0xf]
      %v3446 = vld [vmem:[#allocation3 + $0x58] sm:$0xf]
      %v3447 = vld [vmem:[#allocation3 + $0x5c] sm:$0x1]
      %v3448 = vld [vmem:[#allocation3 + $0x60] sm:$0xf]
      %v3449 = vld [vmem:[#allocation3 + $0x64] sm:$0xf]
      %v3450 = vld [vmem:[#allocation3 + $0x68] sm:$0x1]
      %v3451 = vld [vmem:[#allocation3 + $0x6c] sm:$0xf]
      %v3452 = vld [vmem:[#allocation3 + $0x70] sm:$0xf]
      %v3453 = vld [vmem:[#allocation3 + $0x74] sm:$0x1]
      %v3454 = vld [vmem:[#allocation3 + $0x78] sm:$0xf]
      %v3455 = vld [vmem:[#allocation3 + $0x7c] sm:$0xf]
      %v3456 = vld [vmem:[#allocation3 + $0x80] sm:$0x1]
      %v3457 = vld [vmem:[#allocation3 + $0x84] sm:$0xf]
      %v3458 = vld [vmem:[#allocation3 + $0x88] sm:$0xf]
      %v3459 = vld [vmem:[#allocation3 + $0x8c] sm:$0x1]
      %v3460 = vld [vmem:[#allocation3 + $0x90] sm:$0xf]
      %v3461 = vld [vmem:[#allocation3 + $0x94] sm:$0xf]
      %v3462 = vld [vmem:[#allocation3 + $0x98] sm:$0x1]
      %v3463 = vld [vmem:[#allocation3 + $0x9c] sm:$0xf]
      %v3464 = vld [vmem:[#allocation3 + $0xa0] sm:$0xf]
      %v3465 = vld [vmem:[#allocation3 + $0xa4] sm:$0x1]
      %v3466 = vld [vmem:[#allocation3 + $0xa8] sm:$0xf]
      %v3467 = vld [vmem:[#allocation3 + $0xac] sm:$0xf]
      %v3468 = vld [vmem:[#allocation3 + $0xb0] sm:$0x1]
      %v3469 = vld [vmem:[#allocation3 + $0xb4] sm:$0xf]
      %v3470 = vld [vmem:[#allocation3 + $0xb8] sm:$0xf]
      %v3471 = vld [vmem:[#allocation3 + $0xbc] sm:$0x1]
      %v3472 = vld [vmem:[#allocation3 + $0xc0] sm:$0xf]
      %v3473 = vld [vmem:[#allocation3 + $0xc4] sm:$0xf]
      %v3474 = vld [vmem:[#allocation3 + $0xc8] sm:$0x1]
      %v3475 = vld [vmem:[#allocation3 + $0xcc] sm:$0xf]
      %v3476 = vld [vmem:[#allocation3 + $0xd0] sm:$0xf]
      %v3477 = vld [vmem:[#allocation3 + $0xd4] sm:$0x1]
      %v3478 = vld [vmem:[%s7] sm:$0xf]
      %v3479 = vld [vmem:[%s7 + $0x4] sm:$0xf]
      %v3480 = vld [vmem:[%s7 + $0x8] sm:$0xf]
      %v3481 = vld [vmem:[%s7 + $0xc] sm:$0xf]
      %v3482 = vld [vmem:[%s7 + $0x10] sm:$0x3]
      %v3483 = vld [vmem:[%s8] sm:$0x1]
      %v3484 = vld [vmem:[%s9] sm:$0x1]
      %v3486 = vshrl.u32 %v3424, 16
      %v3488 = vrot.slane %v3486, 4
      %v3489 = vshll.u32 %v3424, 16
      %v3491 = vrot.slane %v3489, 5
      %v3492 = vor.u32 %v3488, %v3491
      %v3493 = vrot.slane %v3492, 4
      %v3495 = vshll.u32 %v3425, 16
      %v3497 = vrot.slane %v3495, 5
      %v3498 = vsel %vm979, %v3493, %v3497
      %v3499 = vshrl.u32 %v3425, 16
      %v3501 = vrot.slane %v3499, 4
      %v3502 = vor.u32 %v3501, %v3497
      %v3503 = vrot.slane %v3502, 4
      %v3505 = vshll.u32 %v3426, 16
      %v3507 = vrot.slane %v3505, 5
      %v3508 = vsel %vm979, %v3503, %v3507
      %v3510 = vshrl.u32 %v3427, 16
      %v3512 = vrot.slane %v3510, 4
      %v3513 = vshll.u32 %v3427, 16
      %v3515 = vrot.slane %v3513, 5
      %v3516 = vor.u32 %v3512, %v3515
      %v3517 = vrot.slane %v3516, 4
      %v3519 = vshll.u32 %v3428, 16
      %v3521 = vrot.slane %v3519, 5
      %v3522 = vsel %vm979, %v3517, %v3521
      %v3523 = vshrl.u32 %v3428, 16
      %v3525 = vrot.slane %v3523, 4
      %v3526 = vor.u32 %v3525, %v3521
      %v3527 = vrot.slane %v3526, 4
      %v3529 = vshll.u32 %v3429, 16
      %v3531 = vrot.slane %v3529, 5
      %v3532 = vsel %vm979, %v3527, %v3531
      %v3534 = vshrl.u32 %v3430, 16
      %v3536 = vrot.slane %v3534, 4
      %v3537 = vshll.u32 %v3430, 16
      %v3539 = vrot.slane %v3537, 5
      %v3540 = vor.u32 %v3536, %v3539
      %v3541 = vrot.slane %v3540, 4
      %v3543 = vshll.u32 %v3431, 16
      %v3545 = vrot.slane %v3543, 5
      %v3546 = vsel %vm979, %v3541, %v3545
      %v3547 = vshrl.u32 %v3431, 16
      %v3549 = vrot.slane %v3547, 4
      %v3550 = vor.u32 %v3549, %v3545
      %v3551 = vrot.slane %v3550, 4
      %v3553 = vshll.u32 %v3432, 16
      %v3555 = vrot.slane %v3553, 5
      %v3556 = vsel %vm979, %v3551, %v3555
      %v3558 = vshrl.u32 %v3433, 16
      %v3560 = vrot.slane %v3558, 4
      %v3561 = vshll.u32 %v3433, 16
      %v3563 = vrot.slane %v3561, 5
      %v3564 = vor.u32 %v3560, %v3563
      %v3565 = vrot.slane %v3564, 4
      %v3567 = vshll.u32 %v3434, 16
      %v3569 = vrot.slane %v3567, 5
      %v3570 = vsel %vm979, %v3565, %v3569
      %v3571 = vshrl.u32 %v3434, 16
      %v3573 = vrot.slane %v3571, 4
      %v3574 = vor.u32 %v3573, %v3569
      %v3575 = vrot.slane %v3574, 4
      %v3577 = vshll.u32 %v3435, 16
      %v3579 = vrot.slane %v3577, 5
      %v3580 = vsel %vm979, %v3575, %v3579
      %v3582 = vshrl.u32 %v3436, 16
      %v3584 = vrot.slane %v3582, 4
      %v3585 = vshll.u32 %v3436, 16
      %v3587 = vrot.slane %v3585, 5
      %v3588 = vor.u32 %v3584, %v3587
      %v3589 = vrot.slane %v3588, 4
      %v3591 = vshll.u32 %v3437, 16
      %v3593 = vrot.slane %v3591, 5
      %v3594 = vsel %vm979, %v3589, %v3593
      %v3595 = vshrl.u32 %v3437, 16
      %v3597 = vrot.slane %v3595, 4
      %v3598 = vor.u32 %v3597, %v3593
      %v3599 = vrot.slane %v3598, 4
      %v3601 = vshll.u32 %v3438, 16
      %v3603 = vrot.slane %v3601, 5
      %v3604 = vsel %vm979, %v3599, %v3603
      %v3606 = vshrl.u32 %v3439, 16
      %v3608 = vrot.slane %v3606, 4
      %v3609 = vshll.u32 %v3439, 16
      %v3611 = vrot.slane %v3609, 5
      %v3612 = vor.u32 %v3608, %v3611
      %v3613 = vrot.slane %v3612, 4
      %v3615 = vshll.u32 %v3440, 16
      %v3617 = vrot.slane %v3615, 5
      %v3618 = vsel %vm979, %v3613, %v3617
      %v3619 = vshrl.u32 %v3440, 16
      %v3621 = vrot.slane %v3619, 4
      %v3622 = vor.u32 %v3621, %v3617
      %v3623 = vrot.slane %v3622, 4
      %v3625 = vshll.u32 %v3441, 16
      %v3627 = vrot.slane %v3625, 5
      %v3628 = vsel %vm979, %v3623, %v3627
      %v3630 = vshrl.u32 %v3442, 16
      %v3632 = vrot.slane %v3630, 4
      %v3633 = vshll.u32 %v3442, 16
      %v3635 = vrot.slane %v3633, 5
      %v3636 = vor.u32 %v3632, %v3635
      %v3637 = vrot.slane %v3636, 4
      %v3639 = vshll.u32 %v3443, 16
      %v3641 = vrot.slane %v3639, 5
      %v3642 = vsel %vm979, %v3637, %v3641
      %v3643 = vshrl.u32 %v3443, 16
      %v3645 = vrot.slane %v3643, 4
      %v3646 = vor.u32 %v3645, %v3641
      %v3647 = vrot.slane %v3646, 4
      %v3649 = vshll.u32 %v3444, 16
      %v3651 = vrot.slane %v3649, 5
      %v3652 = vsel %vm979, %v3647, %v3651
      %v3654 = vshrl.u32 %v3445, 16
      %v3656 = vrot.slane %v3654, 4
      %v3657 = vshll.u32 %v3445, 16
      %v3659 = vrot.slane %v3657, 5
      %v3660 = vor.u32 %v3656, %v3659
      %v3661 = vrot.slane %v3660, 4
      %v3663 = vshll.u32 %v3446, 16
      %v3665 = vrot.slane %v3663, 5
      %v3666 = vsel %vm979, %v3661, %v3665
      %v3667 = vshrl.u32 %v3446, 16
      %v3669 = vrot.slane %v3667, 4
      %v3670 = vor.u32 %v3669, %v3665
      %v3671 = vrot.slane %v3670, 4
      %v3673 = vshll.u32 %v3447, 16
      %v3675 = vrot.slane %v3673, 5
      %v3676 = vsel %vm979, %v3671, %v3675
      %v3678 = vshrl.u32 %v3448, 16
      %v3680 = vrot.slane %v3678, 4
      %v3681 = vshll.u32 %v3448, 16
      %v3683 = vrot.slane %v3681, 5
      %v3684 = vor.u32 %v3680, %v3683
      %v3685 = vrot.slane %v3684, 4
      %v3687 = vshll.u32 %v3449, 16
      %v3689 = vrot.slane %v3687, 5
      %v3690 = vsel %vm979, %v3685, %v3689
      %v3691 = vshrl.u32 %v3449, 16
      %v3693 = vrot.slane %v3691, 4
      %v3694 = vor.u32 %v3693, %v3689
      %v3695 = vrot.slane %v3694, 4
      %v3697 = vshll.u32 %v3450, 16
      %v3699 = vrot.slane %v3697, 5
      %v3700 = vsel %vm979, %v3695, %v3699
      %v3702 = vshrl.u32 %v3451, 16
      %v3704 = vrot.slane %v3702, 4
      %v3705 = vshll.u32 %v3451, 16
      %v3707 = vrot.slane %v3705, 5
      %v3708 = vor.u32 %v3704, %v3707
      %v3709 = vrot.slane %v3708, 4
      %v3711 = vshll.u32 %v3452, 16
      %v3713 = vrot.slane %v3711, 5
      %v3714 = vsel %vm979, %v3709, %v3713
      %v3715 = vshrl.u32 %v3452, 16
      %v3717 = vrot.slane %v3715, 4
      %v3718 = vor.u32 %v3717, %v3713
      %v3719 = vrot.slane %v3718, 4
      %v3721 = vshll.u32 %v3453, 16
      %v3723 = vrot.slane %v3721, 5
      %v3724 = vsel %vm979, %v3719, %v3723
      %v3726 = vshrl.u32 %v3454, 16
      %v3728 = vrot.slane %v3726, 4
      %v3729 = vshll.u32 %v3454, 16
      %v3731 = vrot.slane %v3729, 5
      %v3732 = vor.u32 %v3728, %v3731
      %v3733 = vrot.slane %v3732, 4
      %v3735 = vshll.u32 %v3455, 16
      %v3737 = vrot.slane %v3735, 5
      %v3738 = vsel %vm979, %v3733, %v3737
      %v3739 = vshrl.u32 %v3455, 16
      %v3741 = vrot.slane %v3739, 4
      %v3742 = vor.u32 %v3741, %v3737
      %v3743 = vrot.slane %v3742, 4
      %v3745 = vshll.u32 %v3456, 16
      %v3747 = vrot.slane %v3745, 5
      %v3748 = vsel %vm979, %v3743, %v3747
      %v3750 = vshrl.u32 %v3457, 16
      %v3752 = vrot.slane %v3750, 4
      %v3753 = vshll.u32 %v3457, 16
      %v3755 = vrot.slane %v3753, 5
      %v3756 = vor.u32 %v3752, %v3755
      %v3757 = vrot.slane %v3756, 4
      %v3759 = vshll.u32 %v3458, 16
      %v3761 = vrot.slane %v3759, 5
      %v3762 = vsel %vm979, %v3757, %v3761
      %v3763 = vshrl.u32 %v3458, 16
      %v3765 = vrot.slane %v3763, 4
      %v3766 = vor.u32 %v3765, %v3761
      %v3767 = vrot.slane %v3766, 4
      %v3769 = vshll.u32 %v3459, 16
      %v3771 = vrot.slane %v3769, 5
      %v3772 = vsel %vm979, %v3767, %v3771
      %v3774 = vshrl.u32 %v3460, 16
      %v3776 = vrot.slane %v3774, 4
      %v3777 = vshll.u32 %v3460, 16
      %v3779 = vrot.slane %v3777, 5
      %v3780 = vor.u32 %v3776, %v3779
      %v3781 = vrot.slane %v3780, 4
      %v3783 = vshll.u32 %v3461, 16
      %v3785 = vrot.slane %v3783, 5
      %v3786 = vsel %vm979, %v3781, %v3785
      %v3787 = vshrl.u32 %v3461, 16
      %v3789 = vrot.slane %v3787, 4
      %v3790 = vor.u32 %v3789, %v3785
      %v3791 = vrot.slane %v3790, 4
      %v3793 = vshll.u32 %v3462, 16
      %v3795 = vrot.slane %v3793, 5
      %v3796 = vsel %vm979, %v3791, %v3795
      %v3798 = vshrl.u32 %v3463, 16
      %v3800 = vrot.slane %v3798, 4
      %v3801 = vshll.u32 %v3463, 16
      %v3803 = vrot.slane %v3801, 5
      %v3804 = vor.u32 %v3800, %v3803
      %v3805 = vrot.slane %v3804, 4
      %v3807 = vshll.u32 %v3464, 16
      %v3809 = vrot.slane %v3807, 5
      %v3810 = vsel %vm979, %v3805, %v3809
      %v3811 = vshrl.u32 %v3464, 16
      %v3813 = vrot.slane %v3811, 4
      %v3814 = vor.u32 %v3813, %v3809
      %v3815 = vrot.slane %v3814, 4
      %v3817 = vshll.u32 %v3465, 16
      %v3819 = vrot.slane %v3817, 5
      %v3820 = vsel %vm979, %v3815, %v3819
      %v3822 = vshrl.u32 %v3466, 16
      %v3824 = vrot.slane %v3822, 4
      %v3825 = vshll.u32 %v3466, 16
      %v3827 = vrot.slane %v3825, 5
      %v3828 = vor.u32 %v3824, %v3827
      %v3829 = vrot.slane %v3828, 4
      %v3831 = vshll.u32 %v3467, 16
      %v3833 = vrot.slane %v3831, 5
      %v3834 = vsel %vm979, %v3829, %v3833
      %v3835 = vshrl.u32 %v3467, 16
      %v3837 = vrot.slane %v3835, 4
      %v3838 = vor.u32 %v3837, %v3833
      %v3839 = vrot.slane %v3838, 4
      %v3841 = vshll.u32 %v3468, 16
      %v3843 = vrot.slane %v3841, 5
      %v3844 = vsel %vm979, %v3839, %v3843
      %v3846 = vshrl.u32 %v3469, 16
      %v3848 = vrot.slane %v3846, 4
      %v3849 = vshll.u32 %v3469, 16
      %v3851 = vrot.slane %v3849, 5
      %v3852 = vor.u32 %v3848, %v3851
      %v3853 = vrot.slane %v3852, 4
      %v3855 = vshll.u32 %v3470, 16
      %v3857 = vrot.slane %v3855, 5
      %v3858 = vsel %vm979, %v3853, %v3857
      %v3859 = vshrl.u32 %v3470, 16
      %v3861 = vrot.slane %v3859, 4
      %v3862 = vor.u32 %v3861, %v3857
      %v3863 = vrot.slane %v3862, 4
      %v3865 = vshll.u32 %v3471, 16
      %v3867 = vrot.slane %v3865, 5
      %v3868 = vsel %vm979, %v3863, %v3867
      %v3917 = vrot.slane %v3424, 5
      %v3918 = vrot.slane %v3917, 4
      %v3919 = vrot.slane %v3425, 5
      %v3920 = vsel %vm1468, %v3918, %v3919
      %v3921 = vrot.slane %v3919, 4
      %v3922 = vrot.slane %v3426, 5
      %v3923 = vsel %vm1468, %v3921, %v3922
      %v3924 = vrot.slane %v3427, 5
      %v3925 = vrot.slane %v3924, 4
      %v3926 = vrot.slane %v3428, 5
      %v3927 = vsel %vm1468, %v3925, %v3926
      %v3928 = vrot.slane %v3926, 4
      %v3929 = vrot.slane %v3429, 5
      %v3930 = vsel %vm1468, %v3928, %v3929
      %v3931 = vrot.slane %v3430, 5
      %v3932 = vrot.slane %v3931, 4
      %v3933 = vrot.slane %v3431, 5
      %v3934 = vsel %vm1468, %v3932, %v3933
      %v3935 = vrot.slane %v3933, 4
      %v3936 = vrot.slane %v3432, 5
      %v3937 = vsel %vm1468, %v3935, %v3936
      %v3938 = vrot.slane %v3433, 5
      %v3939 = vrot.slane %v3938, 4
      %v3940 = vrot.slane %v3434, 5
      %v3941 = vsel %vm1468, %v3939, %v3940
      %v3942 = vrot.slane %v3940, 4
      %v3943 = vrot.slane %v3435, 5
      %v3944 = vsel %vm1468, %v3942, %v3943
      %v3945 = vrot.slane %v3436, 5
      %v3946 = vrot.slane %v3945, 4
      %v3947 = vrot.slane %v3437, 5
      %v3948 = vsel %vm1468, %v3946, %v3947
      %v3949 = vrot.slane %v3947, 4
      %v3950 = vrot.slane %v3438, 5
      %v3951 = vsel %vm1468, %v3949, %v3950
      %v3952 = vrot.slane %v3439, 5
      %v3953 = vrot.slane %v3952, 4
      %v3954 = vrot.slane %v3440, 5
      %v3955 = vsel %vm1468, %v3953, %v3954
      %v3956 = vrot.slane %v3954, 4
      %v3957 = vrot.slane %v3441, 5
      %v3958 = vsel %vm1468, %v3956, %v3957
      %v3959 = vrot.slane %v3442, 5
      %v3960 = vrot.slane %v3959, 4
      %v3961 = vrot.slane %v3443, 5
      %v3962 = vsel %vm1468, %v3960, %v3961
      %v3963 = vrot.slane %v3961, 4
      %v3964 = vrot.slane %v3444, 5
      %v3965 = vsel %vm1468, %v3963, %v3964
      %v3966 = vrot.slane %v3445, 5
      %v3967 = vrot.slane %v3966, 4
      %v3968 = vrot.slane %v3446, 5
      %v3969 = vsel %vm1468, %v3967, %v3968
      %v3970 = vrot.slane %v3968, 4
      %v3971 = vrot.slane %v3447, 5
      %v3972 = vsel %vm1468, %v3970, %v3971
      %v3973 = vrot.slane %v3448, 5
      %v3974 = vrot.slane %v3973, 4
      %v3975 = vrot.slane %v3449, 5
      %v3976 = vsel %vm1468, %v3974, %v3975
      %v3977 = vrot.slane %v3975, 4
      %v3978 = vrot.slane %v3450, 5
      %v3979 = vsel %vm1468, %v3977, %v3978
      %v3980 = vrot.slane %v3451, 5
      %v3981 = vrot.slane %v3980, 4
      %v3982 = vrot.slane %v3452, 5
      %v3983 = vsel %vm1468, %v3981, %v3982
      %v3984 = vrot.slane %v3982, 4
      %v3985 = vrot.slane %v3453, 5
      %v3986 = vsel %vm1468, %v3984, %v3985
      %v3987 = vrot.slane %v3454, 5
      %v3988 = vrot.slane %v3987, 4
      %v3989 = vrot.slane %v3455, 5
      %v3990 = vsel %vm1468, %v3988, %v3989
      %v3991 = vrot.slane %v3989, 4
      %v3992 = vrot.slane %v3456, 5
      %v3993 = vsel %vm1468, %v3991, %v3992
      %v3994 = vrot.slane %v3457, 5
      %v3995 = vrot.slane %v3994, 4
      %v3996 = vrot.slane %v3458, 5
      %v3997 = vsel %vm1468, %v3995, %v3996
      %v3998 = vrot.slane %v3996, 4
      %v3999 = vrot.slane %v3459, 5
      %v4000 = vsel %vm1468, %v3998, %v3999
      %v4001 = vrot.slane %v3460, 5
      %v4002 = vrot.slane %v4001, 4
      %v4003 = vrot.slane %v3461, 5
      %v4004 = vsel %vm1468, %v4002, %v4003
      %v4005 = vrot.slane %v4003, 4
      %v4006 = vrot.slane %v3462, 5
      %v4007 = vsel %vm1468, %v4005, %v4006
      %v4008 = vrot.slane %v3463, 5
      %v4009 = vrot.slane %v4008, 4
      %v4010 = vrot.slane %v3464, 5
      %v4011 = vsel %vm1468, %v4009, %v4010
      %v4012 = vrot.slane %v4010, 4
      %v4013 = vrot.slane %v3465, 5
      %v4014 = vsel %vm1468, %v4012, %v4013
      %v4015 = vrot.slane %v3466, 5
      %v4016 = vrot.slane %v4015, 4
      %v4017 = vrot.slane %v3467, 5
      %v4018 = vsel %vm1468, %v4016, %v4017
      %v4019 = vrot.slane %v4017, 4
      %v4020 = vrot.slane %v3468, 5
      %v4021 = vsel %vm1468, %v4019, %v4020
      %v4022 = vrot.slane %v3469, 5
      %v4023 = vrot.slane %v4022, 4
      %v4024 = vrot.slane %v3470, 5
      %v4025 = vsel %vm1468, %v4023, %v4024
      %v4026 = vrot.slane %v4024, 4
      %v4027 = vrot.slane %v3471, 5
      %v4028 = vsel %vm1468, %v4026, %v4027
      %v4030 = vshrl.u32 %v3472, 16
      %v4032 = vrot.slane %v4030, 4
      %v4033 = vshll.u32 %v3472, 16
      %v4035 = vrot.slane %v4033, 5
      %v4036 = vor.u32 %v4032, %v4035
      %v4037 = vrot.slane %v4036, 4
      %v4039 = vshll.u32 %v3473, 16
      %v4041 = vrot.slane %v4039, 5
      %v4042 = vsel %vm979, %v4037, %v4041
      %v4043 = vshrl.u32 %v3473, 16
      %v4045 = vrot.slane %v4043, 4
      %v4046 = vor.u32 %v4045, %v4041
      %v4047 = vrot.slane %v4046, 4
      %v4049 = vshll.u32 %v3474, 16
      %v4051 = vrot.slane %v4049, 5
      %v4052 = vsel %vm979, %v4047, %v4051
      %v4056 = vrot.slane %v3472, 5
      %v4057 = vrot.slane %v4056, 4
      %v4058 = vrot.slane %v3473, 5
      %v4059 = vsel %vm1468, %v4057, %v4058
      %v4060 = vrot.slane %v4058, 4
      %v4061 = vrot.slane %v3474, 5
      %v4062 = vsel %vm1468, %v4060, %v4061
      %v4064 = vshrl.u32 %v3475, 16
      %v4066 = vrot.slane %v4064, 4
      %v4067 = vshll.u32 %v3475, 16
      %v4069 = vrot.slane %v4067, 5
      %v4070 = vor.u32 %v4066, %v4069
      %v4071 = vrot.slane %v4070, 4
      %v4073 = vshll.u32 %v3476, 16
      %v4075 = vrot.slane %v4073, 5
      %v4076 = vsel %vm979, %v4071, %v4075
      %v4077 = vshrl.u32 %v3476, 16
      %v4079 = vrot.slane %v4077, 4
      %v4080 = vor.u32 %v4079, %v4075
      %v4081 = vrot.slane %v4080, 4
      %v4083 = vshll.u32 %v3477, 16
      %v4085 = vrot.slane %v4083, 5
      %v4086 = vsel %vm979, %v4081, %v4085
      %v4090 = vrot.slane %v3475, 5
      %v4091 = vrot.slane %v4090, 4
      %v4092 = vrot.slane %v3476, 5
      %v4093 = vsel %vm1468, %v4091, %v4092
      %v4094 = vrot.slane %v4092, 4
      %v4095 = vrot.slane %v3477, 5
      %v4096 = vsel %vm1468, %v4094, %v4095
      %v4097 = vunpack.c.l.b16 %v3424
      %v4098 = vunpack.c.l.b16 %v3425
      %v4099 = vunpack.c.l.b16 %v3427
      %v4100 = vunpack.c.l.b16 %v3428
      %v4101 = vunpack.c.l.b16 %v3430
      %v4102 = vunpack.c.l.b16 %v3431
      %v4103 = vunpack.c.l.b16 %v3433
      %v4104 = vunpack.c.l.b16 %v3434
      %v4105 = vunpack.c.l.b16 %v3436
      %v4106 = vunpack.c.l.b16 %v3437
      %v4107 = vunpack.c.l.b16 %v3439
      %v4108 = vunpack.c.l.b16 %v3440
      %v4109 = vunpack.c.l.b16 %v3442
      %v4110 = vunpack.c.l.b16 %v3443
      %v4111 = vunpack.c.l.b16 %v3445
      %v4112 = vunpack.c.l.b16 %v3446
      %v4113 = vunpack.c.l.b16 %v3448
      %v4114 = vunpack.c.l.b16 %v3449
      %v4115 = vunpack.c.l.b16 %v3451
      %v4116 = vunpack.c.l.b16 %v3452
      %v4117 = vunpack.c.l.b16 %v3454
      %v4118 = vunpack.c.l.b16 %v3455
      %v4119 = vunpack.c.l.b16 %v3457
      %v4120 = vunpack.c.l.b16 %v3458
      %v4121 = vunpack.c.l.b16 %v3460
      %v4122 = vunpack.c.l.b16 %v3461
      %v4123 = vunpack.c.l.b16 %v3463
      %v4124 = vunpack.c.l.b16 %v3464
      %v4125 = vunpack.c.l.b16 %v3466
      %v4126 = vunpack.c.l.b16 %v3467
      %v4127 = vunpack.c.l.b16 %v3469
      %v4128 = vunpack.c.l.b16 %v3470
      %v4129 = vpack.c.b16 %v4098, %v4097
      %v4130 = vpack.c.b16 %v4100, %v4099
      %v4131 = vpack.c.b16 %v4102, %v4101
      %v4132 = vpack.c.b16 %v4104, %v4103
      %v4133 = vpack.c.b16 %v4106, %v4105
      %v4134 = vpack.c.b16 %v4108, %v4107
      %v4135 = vpack.c.b16 %v4110, %v4109
      %v4136 = vpack.c.b16 %v4112, %v4111
      %v4137 = vpack.c.b16 %v4114, %v4113
      %v4138 = vpack.c.b16 %v4116, %v4115
      %v4139 = vpack.c.b16 %v4118, %v4117
      %v4140 = vpack.c.b16 %v4120, %v4119
      %v4141 = vpack.c.b16 %v4122, %v4121
      %v4142 = vpack.c.b16 %v4124, %v4123
      %v4143 = vpack.c.b16 %v4126, %v4125
      %v4144 = vpack.c.b16 %v4128, %v4127
      %v4145 = vunpack.c.l.b16 %v3498
      %v4146 = vunpack.c.l.b16 %v3508
      %v4147 = vunpack.c.l.b16 %v3522
      %v4148 = vunpack.c.l.b16 %v3532
      %v4149 = vunpack.c.l.b16 %v3546
      %v4150 = vunpack.c.l.b16 %v3556
      %v4151 = vunpack.c.l.b16 %v3570
      %v4152 = vunpack.c.l.b16 %v3580
      %v4153 = vunpack.c.l.b16 %v3594
      %v4154 = vunpack.c.l.b16 %v3604
      %v4155 = vunpack.c.l.b16 %v3618
      %v4156 = vunpack.c.l.b16 %v3628
      %v4157 = vunpack.c.l.b16 %v3642
      %v4158 = vunpack.c.l.b16 %v3652
      %v4159 = vunpack.c.l.b16 %v3666
      %v4160 = vunpack.c.l.b16 %v3676
      %v4161 = vunpack.c.l.b16 %v3690
      %v4162 = vunpack.c.l.b16 %v3700
      %v4163 = vunpack.c.l.b16 %v3714
      %v4164 = vunpack.c.l.b16 %v3724
      %v4165 = vunpack.c.l.b16 %v3738
      %v4166 = vunpack.c.l.b16 %v3748
      %v4167 = vunpack.c.l.b16 %v3762
      %v4168 = vunpack.c.l.b16 %v3772
      %v4169 = vunpack.c.l.b16 %v3786
      %v4170 = vunpack.c.l.b16 %v3796
      %v4171 = vunpack.c.l.b16 %v3810
      %v4172 = vunpack.c.l.b16 %v3820
      %v4173 = vunpack.c.l.b16 %v3834
      %v4174 = vunpack.c.l.b16 %v3844
      %v4175 = vunpack.c.l.b16 %v3858
      %v4176 = vunpack.c.l.b16 %v3868
      %v4177 = vpack.c.b16 %v4146, %v4145
      %v4178 = vpack.c.b16 %v4148, %v4147
      %v4179 = vpack.c.b16 %v4150, %v4149
      %v4180 = vpack.c.b16 %v4152, %v4151
      %v4181 = vpack.c.b16 %v4154, %v4153
      %v4182 = vpack.c.b16 %v4156, %v4155
      %v4183 = vpack.c.b16 %v4158, %v4157
      %v4184 = vpack.c.b16 %v4160, %v4159
      %v4185 = vpack.c.b16 %v4162, %v4161
      %v4186 = vpack.c.b16 %v4164, %v4163
      %v4187 = vpack.c.b16 %v4166, %v4165
      %v4188 = vpack.c.b16 %v4168, %v4167
      %v4189 = vpack.c.b16 %v4170, %v4169
      %v4190 = vpack.c.b16 %v4172, %v4171
      %v4191 = vpack.c.b16 %v4174, %v4173
      %v4192 = vpack.c.b16 %v4176, %v4175
      %4193 = vrot.lane.b32.xlu0 %v4177, 4
      %v4194 = vpop.permute.xlu0 %4193
      %4195 = vrot.lane.b32.xlu0 %v4178, 4
      %v4196 = vpop.permute.xlu0 %4195
      %4197 = vrot.lane.b32.xlu0 %v4179, 4
      %v4198 = vpop.permute.xlu0 %4197
      %4199 = vrot.lane.b32.xlu0 %v4180, 4
      %v4200 = vpop.permute.xlu0 %4199
      %4201 = vrot.lane.b32.xlu0 %v4181, 4
      %v4202 = vpop.permute.xlu0 %4201
      %4203 = vrot.lane.b32.xlu0 %v4182, 4
      %v4204 = vpop.permute.xlu0 %4203
      %4205 = vrot.lane.b32.xlu0 %v4183, 4
      %v4206 = vpop.permute.xlu0 %4205
      %4207 = vrot.lane.b32.xlu0 %v4184, 4
      %v4208 = vpop.permute.xlu0 %4207
      %4209 = vrot.lane.b32.xlu0 %v4185, 4
      %v4210 = vpop.permute.xlu0 %4209
      %4211 = vrot.lane.b32.xlu0 %v4186, 4
      %v4212 = vpop.permute.xlu0 %4211
      %4213 = vrot.lane.b32.xlu0 %v4187, 4
      %v4214 = vpop.permute.xlu0 %4213
      %4215 = vrot.lane.b32.xlu0 %v4188, 4
      %v4216 = vpop.permute.xlu0 %4215
      %4217 = vrot.lane.b32.xlu0 %v4189, 4
      %v4218 = vpop.permute.xlu0 %4217
      %4219 = vrot.lane.b32.xlu0 %v4190, 4
      %v4220 = vpop.permute.xlu0 %4219
      %4221 = vrot.lane.b32.xlu0 %v4191, 4
      %v4222 = vpop.permute.xlu0 %4221
      %4223 = vrot.lane.b32.xlu0 %v4192, 4
      %v4224 = vpop.permute.xlu0 %4223
      %v4225 = vunpack.c.l.b16 %v3920
      %v4226 = vunpack.c.l.b16 %v3923
      %v4227 = vunpack.c.l.b16 %v3927
      %v4228 = vunpack.c.l.b16 %v3930
      %v4229 = vunpack.c.l.b16 %v3934
      %v4230 = vunpack.c.l.b16 %v3937
      %v4231 = vunpack.c.l.b16 %v3941
      %v4232 = vunpack.c.l.b16 %v3944
      %v4233 = vunpack.c.l.b16 %v3948
      %v4234 = vunpack.c.l.b16 %v3951
      %v4235 = vunpack.c.l.b16 %v3955
      %v4236 = vunpack.c.l.b16 %v3958
      %v4237 = vunpack.c.l.b16 %v3962
      %v4238 = vunpack.c.l.b16 %v3965
      %v4239 = vunpack.c.l.b16 %v3969
      %v4240 = vunpack.c.l.b16 %v3972
      %v4241 = vunpack.c.l.b16 %v3976
      %v4242 = vunpack.c.l.b16 %v3979
      %v4243 = vunpack.c.l.b16 %v3983
      %v4244 = vunpack.c.l.b16 %v3986
      %v4245 = vunpack.c.l.b16 %v3990
      %v4246 = vunpack.c.l.b16 %v3993
      %v4247 = vunpack.c.l.b16 %v3997
      %v4248 = vunpack.c.l.b16 %v4000
      %v4249 = vunpack.c.l.b16 %v4004
      %v4250 = vunpack.c.l.b16 %v4007
      %v4251 = vunpack.c.l.b16 %v4011
      %v4252 = vunpack.c.l.b16 %v4014
      %v4253 = vunpack.c.l.b16 %v4018
      %v4254 = vunpack.c.l.b16 %v4021
      %v4255 = vunpack.c.l.b16 %v4025
      %v4256 = vunpack.c.l.b16 %v4028
      %v4257 = vpack.c.b16 %v4226, %v4225
      %v4258 = vpack.c.b16 %v4228, %v4227
      %v4259 = vpack.c.b16 %v4230, %v4229
      %v4260 = vpack.c.b16 %v4232, %v4231
      %v4261 = vpack.c.b16 %v4234, %v4233
      %v4262 = vpack.c.b16 %v4236, %v4235
      %v4263 = vpack.c.b16 %v4238, %v4237
      %v4264 = vpack.c.b16 %v4240, %v4239
      %v4265 = vpack.c.b16 %v4242, %v4241
      %v4266 = vpack.c.b16 %v4244, %v4243
      %v4267 = vpack.c.b16 %v4246, %v4245
      %v4268 = vpack.c.b16 %v4248, %v4247
      %v4269 = vpack.c.b16 %v4250, %v4249
      %v4270 = vpack.c.b16 %v4252, %v4251
      %v4271 = vpack.c.b16 %v4254, %v4253
      %v4272 = vpack.c.b16 %v4256, %v4255
      %4273 = vrot.lane.b32.xlu0 %v4257, 8
      %v4274 = vpop.permute.xlu0 %4273
      %4275 = vrot.lane.b32.xlu0 %v4258, 8
      %v4276 = vpop.permute.xlu0 %4275
      %4277 = vrot.lane.b32.xlu0 %v4259, 8
      %v4278 = vpop.permute.xlu0 %4277
      %4279 = vrot.lane.b32.xlu0 %v4260, 8
      %v4280 = vpop.permute.xlu0 %4279
      %4281 = vrot.lane.b32.xlu0 %v4261, 8
      %v4282 = vpop.permute.xlu0 %4281
      %4283 = vrot.lane.b32.xlu0 %v4262, 8
      %v4284 = vpop.permute.xlu0 %4283
      %4285 = vrot.lane.b32.xlu0 %v4263, 8
      %v4286 = vpop.permute.xlu0 %4285
      %4287 = vrot.lane.b32.xlu0 %v4264, 8
      %v4288 = vpop.permute.xlu0 %4287
      %4289 = vrot.lane.b32.xlu0 %v4265, 8
      %v4290 = vpop.permute.xlu0 %4289
      %4291 = vrot.lane.b32.xlu0 %v4266, 8
      %v4292 = vpop.permute.xlu0 %4291
      %4293 = vrot.lane.b32.xlu0 %v4267, 8
      %v4294 = vpop.permute.xlu0 %4293
      %4295 = vrot.lane.b32.xlu0 %v4268, 8
      %v4296 = vpop.permute.xlu0 %4295
      %4297 = vrot.lane.b32.xlu0 %v4269, 8
      %v4298 = vpop.permute.xlu0 %4297
      %4299 = vrot.lane.b32.xlu0 %v4270, 8
      %v4300 = vpop.permute.xlu0 %4299
      %4301 = vrot.lane.b32.xlu0 %v4271, 8
      %v4302 = vpop.permute.xlu0 %4301
      %4303 = vrot.lane.b32.xlu0 %v4272, 8
      %v4304 = vpop.permute.xlu0 %4303
      %v4305 = vunpack.c.l.b16 %v3472
      %v4306 = vunpack.c.l.b16 %v3473
      %v4307 = vpack.c.b16 %v4306, %v4305
      %4308 = vrot.lane.b32.xlu0 %v4130, 12
      %v4309 = vpop.permute.xlu0 %4308
      %4310 = vrot.lane.b32.xlu0 %v4131, 12
      %v4311 = vpop.permute.xlu0 %4310
      %4312 = vrot.lane.b32.xlu0 %v4132, 12
      %v4313 = vpop.permute.xlu0 %4312
      %4314 = vrot.lane.b32.xlu0 %v4133, 12
      %v4315 = vpop.permute.xlu0 %4314
      %4316 = vrot.lane.b32.xlu0 %v4134, 12
      %v4317 = vpop.permute.xlu0 %4316
      %4318 = vrot.lane.b32.xlu0 %v4135, 12
      %v4319 = vpop.permute.xlu0 %4318
      %4320 = vrot.lane.b32.xlu0 %v4136, 12
      %v4321 = vpop.permute.xlu0 %4320
      %4322 = vrot.lane.b32.xlu0 %v4137, 12
      %v4323 = vpop.permute.xlu0 %4322
      %4324 = vrot.lane.b32.xlu0 %v4138, 12
      %v4325 = vpop.permute.xlu0 %4324
      %4326 = vrot.lane.b32.xlu0 %v4139, 12
      %v4327 = vpop.permute.xlu0 %4326
      %4328 = vrot.lane.b32.xlu0 %v4140, 12
      %v4329 = vpop.permute.xlu0 %4328
      %4330 = vrot.lane.b32.xlu0 %v4141, 12
      %v4331 = vpop.permute.xlu0 %4330
      %4332 = vrot.lane.b32.xlu0 %v4142, 12
      %v4333 = vpop.permute.xlu0 %4332
      %4334 = vrot.lane.b32.xlu0 %v4143, 12
      %v4335 = vpop.permute.xlu0 %4334
      %4336 = vrot.lane.b32.xlu0 %v4144, 12
      %v4337 = vpop.permute.xlu0 %4336
      %4338 = vrot.lane.b32.xlu0 %v4307, 12
      %v4339 = vpop.permute.xlu0 %4338
      %v4340 = vunpack.c.l.b16 %v4042
      %v4341 = vunpack.c.l.b16 %v4052
      %v4342 = vpack.c.b16 %v4341, %v4340
      %4343 = vrot.lane.b32.xlu0 %v4178, 16
      %v4344 = vpop.permute.xlu0 %4343
      %4345 = vrot.lane.b32.xlu0 %v4179, 16
      %v4346 = vpop.permute.xlu0 %4345
      %4347 = vrot.lane.b32.xlu0 %v4180, 16
      %v4348 = vpop.permute.xlu0 %4347
      %4349 = vrot.lane.b32.xlu0 %v4181, 16
      %v4350 = vpop.permute.xlu0 %4349
      %4351 = vrot.lane.b32.xlu0 %v4182, 16
      %v4352 = vpop.permute.xlu0 %4351
      %4353 = vrot.lane.b32.xlu0 %v4183, 16
      %v4354 = vpop.permute.xlu0 %4353
      %4355 = vrot.lane.b32.xlu0 %v4184, 16
      %v4356 = vpop.permute.xlu0 %4355
      %4357 = vrot.lane.b32.xlu0 %v4185, 16
      %v4358 = vpop.permute.xlu0 %4357
      %4359 = vrot.lane.b32.xlu0 %v4186, 16
      %v4360 = vpop.permute.xlu0 %4359
      %4361 = vrot.lane.b32.xlu0 %v4187, 16
      %v4362 = vpop.permute.xlu0 %4361
      %4363 = vrot.lane.b32.xlu0 %v4188, 16
      %v4364 = vpop.permute.xlu0 %4363
      %4365 = vrot.lane.b32.xlu0 %v4189, 16
      %v4366 = vpop.permute.xlu0 %4365
      %4367 = vrot.lane.b32.xlu0 %v4190, 16
      %v4368 = vpop.permute.xlu0 %4367
      %4369 = vrot.lane.b32.xlu0 %v4191, 16
      %v4370 = vpop.permute.xlu0 %4369
      %4371 = vrot.lane.b32.xlu0 %v4192, 16
      %v4372 = vpop.permute.xlu0 %4371
      %4373 = vrot.lane.b32.xlu0 %v4342, 16
      %v4374 = vpop.permute.xlu0 %4373
      %v4375 = vunpack.c.l.b16 %v4059
      %v4376 = vunpack.c.l.b16 %v4062
      %v4377 = vpack.c.b16 %v4376, %v4375
      %4378 = vrot.lane.b32.xlu0 %v4258, 20
      %v4379 = vpop.permute.xlu0 %4378
      %4380 = vrot.lane.b32.xlu0 %v4259, 20
      %v4381 = vpop.permute.xlu0 %4380
      %4382 = vrot.lane.b32.xlu0 %v4260, 20
      %v4383 = vpop.permute.xlu0 %4382
      %4384 = vrot.lane.b32.xlu0 %v4261, 20
      %v4385 = vpop.permute.xlu0 %4384
      %4386 = vrot.lane.b32.xlu0 %v4262, 20
      %v4387 = vpop.permute.xlu0 %4386
      %4388 = vrot.lane.b32.xlu0 %v4263, 20
      %v4389 = vpop.permute.xlu0 %4388
      %4390 = vrot.lane.b32.xlu0 %v4264, 20
      %v4391 = vpop.permute.xlu0 %4390
      %4392 = vrot.lane.b32.xlu0 %v4265, 20
      %v4393 = vpop.permute.xlu0 %4392
      %4394 = vrot.lane.b32.xlu0 %v4266, 20
      %v4395 = vpop.permute.xlu0 %4394
      %4396 = vrot.lane.b32.xlu0 %v4267, 20
      %v4397 = vpop.permute.xlu0 %4396
      %4398 = vrot.lane.b32.xlu0 %v4268, 20
      %v4399 = vpop.permute.xlu0 %4398
      %4400 = vrot.lane.b32.xlu0 %v4269, 20
      %v4401 = vpop.permute.xlu0 %4400
      %4402 = vrot.lane.b32.xlu0 %v4270, 20
      %v4403 = vpop.permute.xlu0 %4402
      %4404 = vrot.lane.b32.xlu0 %v4271, 20
      %v4405 = vpop.permute.xlu0 %4404
      %4406 = vrot.lane.b32.xlu0 %v4272, 20
      %v4407 = vpop.permute.xlu0 %4406
      %4408 = vrot.lane.b32.xlu0 %v4377, 20
      %v4409 = vpop.permute.xlu0 %4408
      %v4410 = vunpack.c.l.b16 %v3475
      %v4411 = vunpack.c.l.b16 %v3476
      %v4412 = vpack.c.b16 %v4411, %v4410
      %4413 = vrot.lane.b32.xlu0 %v4131, 24
      %v4414 = vpop.permute.xlu0 %4413
      %4415 = vrot.lane.b32.xlu0 %v4132, 24
      %v4416 = vpop.permute.xlu0 %4415
      %4417 = vrot.lane.b32.xlu0 %v4133, 24
      %v4418 = vpop.permute.xlu0 %4417
      %4419 = vrot.lane.b32.xlu0 %v4134, 24
      %v4420 = vpop.permute.xlu0 %4419
      %4421 = vrot.lane.b32.xlu0 %v4135, 24
      %v4422 = vpop.permute.xlu0 %4421
      %4423 = vrot.lane.b32.xlu0 %v4136, 24
      %v4424 = vpop.permute.xlu0 %4423
      %4425 = vrot.lane.b32.xlu0 %v4137, 24
      %v4426 = vpop.permute.xlu0 %4425
      %4427 = vrot.lane.b32.xlu0 %v4138, 24
      %v4428 = vpop.permute.xlu0 %4427
      %4429 = vrot.lane.b32.xlu0 %v4139, 24
      %v4430 = vpop.permute.xlu0 %4429
      %4431 = vrot.lane.b32.xlu0 %v4140, 24
      %v4432 = vpop.permute.xlu0 %4431
      %4433 = vrot.lane.b32.xlu0 %v4141, 24
      %v4434 = vpop.permute.xlu0 %4433
      %4435 = vrot.lane.b32.xlu0 %v4142, 24
      %v4436 = vpop.permute.xlu0 %4435
      %4437 = vrot.lane.b32.xlu0 %v4143, 24
      %v4438 = vpop.permute.xlu0 %4437
      %4439 = vrot.lane.b32.xlu0 %v4144, 24
      %v4440 = vpop.permute.xlu0 %4439
      %4441 = vrot.lane.b32.xlu0 %v4307, 24
      %v4442 = vpop.permute.xlu0 %4441
      %4443 = vrot.lane.b32.xlu0 %v4412, 24
      %v4444 = vpop.permute.xlu0 %4443
      %v4445 = vunpack.c.l.b16 %v4076
      %v4446 = vunpack.c.l.b16 %v4086
      %v4447 = vpack.c.b16 %v4446, %v4445
      %4448 = vrot.lane.b32.xlu0 %v4179, 28
      %v4449 = vpop.permute.xlu0 %4448
      %4450 = vrot.lane.b32.xlu0 %v4180, 28
      %v4451 = vpop.permute.xlu0 %4450
      %4452 = vrot.lane.b32.xlu0 %v4181, 28
      %v4453 = vpop.permute.xlu0 %4452
      %4454 = vrot.lane.b32.xlu0 %v4182, 28
      %v4455 = vpop.permute.xlu0 %4454
      %4456 = vrot.lane.b32.xlu0 %v4183, 28
      %v4457 = vpop.permute.xlu0 %4456
      %4458 = vrot.lane.b32.xlu0 %v4184, 28
      %v4459 = vpop.permute.xlu0 %4458
      %4460 = vrot.lane.b32.xlu0 %v4185, 28
      %v4461 = vpop.permute.xlu0 %4460
      %4462 = vrot.lane.b32.xlu0 %v4186, 28
      %v4463 = vpop.permute.xlu0 %4462
      %4464 = vrot.lane.b32.xlu0 %v4187, 28
      %v4465 = vpop.permute.xlu0 %4464
      %4466 = vrot.lane.b32.xlu0 %v4188, 28
      %v4467 = vpop.permute.xlu0 %4466
      %4468 = vrot.lane.b32.xlu0 %v4189, 28
      %v4469 = vpop.permute.xlu0 %4468
      %4470 = vrot.lane.b32.xlu0 %v4190, 28
      %v4471 = vpop.permute.xlu0 %4470
      %4472 = vrot.lane.b32.xlu0 %v4191, 28
      %v4473 = vpop.permute.xlu0 %4472
      %4474 = vrot.lane.b32.xlu0 %v4192, 28
      %v4475 = vpop.permute.xlu0 %4474
      %4476 = vrot.lane.b32.xlu0 %v4342, 28
      %v4477 = vpop.permute.xlu0 %4476
      %4478 = vrot.lane.b32.xlu0 %v4447, 28
      %v4479 = vpop.permute.xlu0 %4478
      %v4480 = vunpack.c.l.b16 %v4093
      %v4481 = vunpack.c.l.b16 %v4096
      %v4482 = vpack.c.b16 %v4481, %v4480
      %4483 = vrot.lane.b32.xlu0 %v4259, 32
      %v4484 = vpop.permute.xlu0 %4483
      %4485 = vrot.lane.b32.xlu0 %v4260, 32
      %v4486 = vpop.permute.xlu0 %4485
      %4487 = vrot.lane.b32.xlu0 %v4261, 32
      %v4488 = vpop.permute.xlu0 %4487
      %4489 = vrot.lane.b32.xlu0 %v4262, 32
      %v4490 = vpop.permute.xlu0 %4489
      %4491 = vrot.lane.b32.xlu0 %v4263, 32
      %v4492 = vpop.permute.xlu0 %4491
      %4493 = vrot.lane.b32.xlu0 %v4264, 32
      %v4494 = vpop.permute.xlu0 %4493
      %4495 = vrot.lane.b32.xlu0 %v4265, 32
      %v4496 = vpop.permute.xlu0 %4495
      %4497 = vrot.lane.b32.xlu0 %v4266, 32
      %v4498 = vpop.permute.xlu0 %4497
      %4499 = vrot.lane.b32.xlu0 %v4267, 32
      %v4500 = vpop.permute.xlu0 %4499
      %4501 = vrot.lane.b32.xlu0 %v4268, 32
      %v4502 = vpop.permute.xlu0 %4501
      %4503 = vrot.lane.b32.xlu0 %v4269, 32
      %v4504 = vpop.permute.xlu0 %4503
      %4505 = vrot.lane.b32.xlu0 %v4270, 32
      %v4506 = vpop.permute.xlu0 %4505
      %4507 = vrot.lane.b32.xlu0 %v4271, 32
      %v4508 = vpop.permute.xlu0 %4507
      %4509 = vrot.lane.b32.xlu0 %v4272, 32
      %v4510 = vpop.permute.xlu0 %4509
      %4511 = vrot.lane.b32.xlu0 %v4377, 32
      %v4512 = vpop.permute.xlu0 %4511
      %4513 = vrot.lane.b32.xlu0 %v4482, 32
      %v4514 = vpop.permute.xlu0 %4513
      %vm4515 = vcmask 31744
      %v4518 = vsel %vm4515, %v4129, %v4194
      %v4521 = vsel %vm4515, %v4130, %v4196
      %v4524 = vsel %vm4515, %v4131, %v4198
      %v4527 = vsel %vm4515, %v4132, %v4200
      %v4530 = vsel %vm4515, %v4133, %v4202
      %v4533 = vsel %vm4515, %v4134, %v4204
      %v4536 = vsel %vm4515, %v4135, %v4206
      %v4539 = vsel %vm4515, %v4136, %v4208
      %v4542 = vsel %vm4515, %v4137, %v4210
      %v4545 = vsel %vm4515, %v4138, %v4212
      %v4548 = vsel %vm4515, %v4139, %v4214
      %v4551 = vsel %vm4515, %v4140, %v4216
      %v4554 = vsel %vm4515, %v4141, %v4218
      %v4557 = vsel %vm4515, %v4142, %v4220
      %v4560 = vsel %vm4515, %v4143, %v4222
      %v4563 = vsel %vm4515, %v4144, %v4224
      %v4565 = vsel %vm2131, %v4518, %v4274
      %v4567 = vsel %vm2131, %v4521, %v4276
      %v4569 = vsel %vm2131, %v4524, %v4278
      %v4571 = vsel %vm2131, %v4527, %v4280
      %v4573 = vsel %vm2131, %v4530, %v4282
      %v4575 = vsel %vm2131, %v4533, %v4284
      %v4577 = vsel %vm2131, %v4536, %v4286
      %v4579 = vsel %vm2131, %v4539, %v4288
      %v4581 = vsel %vm2131, %v4542, %v4290
      %v4583 = vsel %vm2131, %v4545, %v4292
      %v4585 = vsel %vm2131, %v4548, %v4294
      %v4587 = vsel %vm2131, %v4551, %v4296
      %v4589 = vsel %vm2131, %v4554, %v4298
      %v4591 = vsel %vm2131, %v4557, %v4300
      %v4593 = vsel %vm2131, %v4560, %v4302
      %v4595 = vsel %vm2131, %v4563, %v4304
      %vm4596 = vcmask 97280
      %v4598 = vsel %vm4596, %v4565, %v4309
      %v4600 = vsel %vm4596, %v4567, %v4311
      %v4602 = vsel %vm4596, %v4569, %v4313
      %v4604 = vsel %vm4596, %v4571, %v4315
      %v4606 = vsel %vm4596, %v4573, %v4317
      %v4608 = vsel %vm4596, %v4575, %v4319
      %v4610 = vsel %vm4596, %v4577, %v4321
      %v4612 = vsel %vm4596, %v4579, %v4323
      %v4614 = vsel %vm4596, %v4581, %v4325
      %v4616 = vsel %vm4596, %v4583, %v4327
      %v4618 = vsel %vm4596, %v4585, %v4329
      %v4620 = vsel %vm4596, %v4587, %v4331
      %v4622 = vsel %vm4596, %v4589, %v4333
      %v4624 = vsel %vm4596, %v4591, %v4335
      %v4626 = vsel %vm4596, %v4593, %v4337
      %v4628 = vsel %vm4596, %v4595, %v4339
      %v4630 = vsel %vm2186, %v4598, %v4344
      %v4632 = vsel %vm2186, %v4600, %v4346
      %v4634 = vsel %vm2186, %v4602, %v4348
      %v4636 = vsel %vm2186, %v4604, %v4350
      %v4638 = vsel %vm2186, %v4606, %v4352
      %v4640 = vsel %vm2186, %v4608, %v4354
      %v4642 = vsel %vm2186, %v4610, %v4356
      %v4644 = vsel %vm2186, %v4612, %v4358
      %v4646 = vsel %vm2186, %v4614, %v4360
      %v4648 = vsel %vm2186, %v4616, %v4362
      %v4650 = vsel %vm2186, %v4618, %v4364
      %v4652 = vsel %vm2186, %v4620, %v4366
      %v4654 = vsel %vm2186, %v4622, %v4368
      %v4656 = vsel %vm2186, %v4624, %v4370
      %v4658 = vsel %vm2186, %v4626, %v4372
      %v4660 = vsel %vm2186, %v4628, %v4374
      %vm4661 = vcmask 162816
      %v4663 = vsel %vm4661, %v4630, %v4379
      %v4665 = vsel %vm4661, %v4632, %v4381
      %v4667 = vsel %vm4661, %v4634, %v4383
      %v4669 = vsel %vm4661, %v4636, %v4385
      %v4671 = vsel %vm4661, %v4638, %v4387
      %v4673 = vsel %vm4661, %v4640, %v4389
      %v4675 = vsel %vm4661, %v4642, %v4391
      %v4677 = vsel %vm4661, %v4644, %v4393
      %v4679 = vsel %vm4661, %v4646, %v4395
      %v4681 = vsel %vm4661, %v4648, %v4397
      %v4683 = vsel %vm4661, %v4650, %v4399
      %v4685 = vsel %vm4661, %v4652, %v4401
      %v4687 = vsel %vm4661, %v4654, %v4403
      %v4689 = vsel %vm4661, %v4656, %v4405
      %v4691 = vsel %vm4661, %v4658, %v4407
      %v4693 = vsel %vm4661, %v4660, %v4409
      %v4695 = vsel %vm2223, %v4663, %v4414
      %v4697 = vsel %vm2223, %v4665, %v4416
      %v4699 = vsel %vm2223, %v4667, %v4418
      %v4701 = vsel %vm2223, %v4669, %v4420
      %v4703 = vsel %vm2223, %v4671, %v4422
      %v4705 = vsel %vm2223, %v4673, %v4424
      %v4707 = vsel %vm2223, %v4675, %v4426
      %v4709 = vsel %vm2223, %v4677, %v4428
      %v4711 = vsel %vm2223, %v4679, %v4430
      %v4713 = vsel %vm2223, %v4681, %v4432
      %v4715 = vsel %vm2223, %v4683, %v4434
      %v4717 = vsel %vm2223, %v4685, %v4436
      %v4719 = vsel %vm2223, %v4687, %v4438
      %v4721 = vsel %vm2223, %v4689, %v4440
      %v4723 = vsel %vm2223, %v4691, %v4442
      %v4725 = vsel %vm2223, %v4693, %v4444
      %vm4726 = vcmask 228352
      %v4728 = vsel %vm4726, %v4695, %v4449
      %v4730 = vsel %vm4726, %v4697, %v4451
      %v4732 = vsel %vm4726, %v4699, %v4453
      %v4734 = vsel %vm4726, %v4701, %v4455
      %v4736 = vsel %vm4726, %v4703, %v4457
      %v4738 = vsel %vm4726, %v4705, %v4459
      %v4740 = vsel %vm4726, %v4707, %v4461
      %v4742 = vsel %vm4726, %v4709, %v4463
      %v4744 = vsel %vm4726, %v4711, %v4465
      %v4746 = vsel %vm4726, %v4713, %v4467
      %v4748 = vsel %vm4726, %v4715, %v4469
      %v4750 = vsel %vm4726, %v4717, %v4471
      %v4752 = vsel %vm4726, %v4719, %v4473
      %v4754 = vsel %vm4726, %v4721, %v4475
      %v4756 = vsel %vm4726, %v4723, %v4477
      %v4758 = vsel %vm4726, %v4725, %v4479
      %v4760 = vsel %vm2260, %v4728, %v4484
      %v4762 = vsel %vm2260, %v4730, %v4486
      %v4764 = vsel %vm2260, %v4732, %v4488
      %v4766 = vsel %vm2260, %v4734, %v4490
      %v4768 = vsel %vm2260, %v4736, %v4492
      %v4770 = vsel %vm2260, %v4738, %v4494
      %v4772 = vsel %vm2260, %v4740, %v4496
      %v4774 = vsel %vm2260, %v4742, %v4498
      %v4776 = vsel %vm2260, %v4744, %v4500
      %v4778 = vsel %vm2260, %v4746, %v4502
      %v4780 = vsel %vm2260, %v4748, %v4504
      %v4782 = vsel %vm2260, %v4750, %v4506
      %v4784 = vsel %vm2260, %v4752, %v4508
      %v4786 = vsel %vm2260, %v4754, %v4510
      %v4788 = vsel %vm2260, %v4756, %v4512
      %v4790 = vsel %vm2260, %v4758, %v4514
      %v4796 = vunpack.c.l.b16 %v3478
      %v4797 = vunpack.c.l.b16 %v3479
      %v4798 = vunpack.c.l.b16 %v3480
      %v4799 = vunpack.c.l.b16 %v3481
      %v4800 = vunpack.c.l.b16 %v3482
      %v4801 = vpack.c.b16 %v4797, %v4796
      %v4802 = vpack.c.b16 %v4799, %v4798
      %v4803 = vpack.c.b16 %v4800, %v4800
      %vm4806 = vcmask 293888
      %v4807 = vsel %vm4806, %v4760, 0
      %v4809 = vsel %vm4806, %v4762, 0
      %v4811 = vsel %vm4806, %v4764, 0
      %v4813 = vsel %vm4806, %v4766, 0
      %v4815 = vsel %vm4806, %v4768, 0
      %v4817 = vsel %vm4806, %v4770, 0
      %v4819 = vsel %vm4806, %v4772, 0
      %v4821 = vsel %vm4806, %v4774, 0
      %v4823 = vsel %vm4806, %v4776, 0
      %v4825 = vsel %vm4806, %v4778, 0
      %v4827 = vsel %vm4806, %v4780, 0
      %v4829 = vsel %vm4806, %v4782, 0
      %v4831 = vsel %vm4806, %v4784, 0
      %v4833 = vsel %vm4806, %v4786, 0
      %v4835 = vsel %vm4806, %v4788, 0
      %v4837 = vsel %vm4806, %v4790, 0
      %vm4839 = vcmask 1041408
      %v4841 = vsel %vm4839, %v4803, 0
      %4843 = vmatprep.subr.bf16.mxu0 0
      %4844 = vmatpush1.bf16.msra.mxu0 0
      %4845 = vmatprep.subr.bf16.mxu0 0
      %4846 = vmatpush1.bf16.msra.mxu0 0
      %4847 = vmatprep.subr.bf16.mxu0 0
      %4848 = vmatpush1.bf16.msra.mxu0 0
      %4849 = vmatprep.subr.bf16.mxu0 0
      %4850 = vmatpush1.bf16.msra.mxu0 0
      %4851 = vmatprep.subr.bf16.mxu0 0
      %4852 = vmatpush1.bf16.msra.mxu0 0
      %4853 = vmatprep.subr.bf16.mxu0 0
      %4854 = vmatpush1.bf16.msra.mxu0 %v4841
      %4855 = vmatprep.subr.bf16.mxu0 0
      %4856 = vmatpush1.bf16.msra.mxu0 %v4802
      %4857 = vmatprep.subr.bf16.mxu0 0
      %4858 = vmatpush1.bf16.msra.mxu0 %v4801
      %4859 = vmatprep.subr.bf16.mxu0 0
      %4860 = vmatpush2.bf16.msra.mxu0 0
      %4861 = vmatprep.subr.bf16.mxu0 0
      %4862 = vmatpush2.bf16.msra.mxu0 0
      %4863 = vmatprep.subr.bf16.mxu0 0
      %4864 = vmatpush2.bf16.msra.mxu0 0
      %4865 = vmatprep.subr.bf16.mxu0 0
      %4866 = vmatpush2.bf16.msra.mxu0 0
      %4867 = vmatprep.subr.bf16.mxu0 0
      %4868 = vmatpush2.bf16.msra.mxu0 0
      %4869 = vmatprep.subr.bf16.mxu0 0
      %4870 = vmatpush2.bf16.msra.mxu0 0
      %4871 = vmatprep.subr.bf16.mxu0 0
      %4872 = vmatpush2.bf16.msra.mxu0 0
      %4873 = vmatprep.subr.bf16.mxu0 0
      %4874 = vmatpush2.bf16.msra.mxu0 0
      %4875 = vmatprep.mubr.bf16.mxu0 0
      %4876 = vmatmul.mubr.bf16.gmra.mxu0 %v4807
      %v4877 = vpop.f32.mrf.mxu0
      %v4878 = vadd.f32 0.0, %v4877
      %v4879 = vpop.f32.mrf.mxu0
      %v4880 = vpop.f32.mrf.mxu0
      %v4881 = vadd.f32 0.0, %v4880
      %v4882 = vpop.f32.mrf.mxu0
      %4883 = vmatprep.mubr.bf16.mxu0 0
      %4884 = vmatmul.mubr.bf16.gmra.mxu0 %v4809
      %v4885 = vpop.f32.mrf.mxu0
      %v4886 = vadd.f32 0.0, %v4885
      %v4887 = vpop.f32.mrf.mxu0
      %v4888 = vpop.f32.mrf.mxu0
      %v4889 = vadd.f32 0.0, %v4888
      %v4890 = vpop.f32.mrf.mxu0
      %4891 = vmatprep.mubr.bf16.mxu0 0
      %4892 = vmatmul.mubr.bf16.gmra.mxu0 %v4811
      %v4893 = vpop.f32.mrf.mxu0
      %v4894 = vadd.f32 0.0, %v4893
      %v4895 = vpop.f32.mrf.mxu0
      %v4896 = vpop.f32.mrf.mxu0
      %v4897 = vadd.f32 0.0, %v4896
      %v4898 = vpop.f32.mrf.mxu0
      %4899 = vmatprep.mubr.bf16.mxu0 0
      %4900 = vmatmul.mubr.bf16.gmra.mxu0 %v4813
      %v4901 = vpop.f32.mrf.mxu0
      %v4902 = vadd.f32 0.0, %v4901
      %v4903 = vpop.f32.mrf.mxu0
      %v4904 = vpop.f32.mrf.mxu0
      %v4905 = vadd.f32 0.0, %v4904
      %v4906 = vpop.f32.mrf.mxu0
      %4907 = vmatprep.mubr.bf16.mxu0 0
      %4908 = vmatmul.mubr.bf16.gmra.mxu0 %v4815
      %v4909 = vpop.f32.mrf.mxu0
      %v4910 = vadd.f32 0.0, %v4909
      %v4911 = vpop.f32.mrf.mxu0
      %v4912 = vpop.f32.mrf.mxu0
      %v4913 = vadd.f32 0.0, %v4912
      %v4914 = vpop.f32.mrf.mxu0
      %4915 = vmatprep.mubr.bf16.mxu0 0
      %4916 = vmatmul.mubr.bf16.gmra.mxu0 %v4817
      %v4917 = vpop.f32.mrf.mxu0
      %v4918 = vadd.f32 0.0, %v4917
      %v4919 = vpop.f32.mrf.mxu0
      %v4920 = vpop.f32.mrf.mxu0
      %v4921 = vadd.f32 0.0, %v4920
      %v4922 = vpop.f32.mrf.mxu0
      %4923 = vmatprep.mubr.bf16.mxu0 0
      %4924 = vmatmul.mubr.bf16.gmra.mxu0 %v4819
      %v4925 = vpop.f32.mrf.mxu0
      %v4926 = vadd.f32 0.0, %v4925
      %v4927 = vpop.f32.mrf.mxu0
      %v4928 = vpop.f32.mrf.mxu0
      %v4929 = vadd.f32 0.0, %v4928
      %v4930 = vpop.f32.mrf.mxu0
      %4931 = vmatprep.mubr.bf16.mxu0 0
      %4932 = vmatmul.mubr.bf16.gmra.mxu0 %v4821
      %v4933 = vpop.f32.mrf.mxu0
      %v4934 = vadd.f32 0.0, %v4933
      %v4935 = vpop.f32.mrf.mxu0
      %v4936 = vpop.f32.mrf.mxu0
      %v4937 = vadd.f32 0.0, %v4936
      %v4938 = vpop.f32.mrf.mxu0
      %4939 = vmatprep.mubr.bf16.mxu0 0
      %4940 = vmatmul.mubr.bf16.gmra.mxu0 %v4823
      %v4941 = vpop.f32.mrf.mxu0
      %v4942 = vadd.f32 0.0, %v4941
      %v4943 = vpop.f32.mrf.mxu0
      %v4944 = vpop.f32.mrf.mxu0
      %v4945 = vadd.f32 0.0, %v4944
      %v4946 = vpop.f32.mrf.mxu0
      %4947 = vmatprep.mubr.bf16.mxu0 0
      %4948 = vmatmul.mubr.bf16.gmra.mxu0 %v4825
      %v4949 = vpop.f32.mrf.mxu0
      %v4950 = vadd.f32 0.0, %v4949
      %v4951 = vpop.f32.mrf.mxu0
      %v4952 = vpop.f32.mrf.mxu0
      %v4953 = vadd.f32 0.0, %v4952
      %v4954 = vpop.f32.mrf.mxu0
      %4955 = vmatprep.mubr.bf16.mxu0 0
      %4956 = vmatmul.mubr.bf16.gmra.mxu0 %v4827
      %v4957 = vpop.f32.mrf.mxu0
      %v4958 = vadd.f32 0.0, %v4957
      %v4959 = vpop.f32.mrf.mxu0
      %v4960 = vpop.f32.mrf.mxu0
      %v4961 = vadd.f32 0.0, %v4960
      %v4962 = vpop.f32.mrf.mxu0
      %4963 = vmatprep.mubr.bf16.mxu0 0
      %4964 = vmatmul.mubr.bf16.gmra.mxu0 %v4829
      %v4965 = vpop.f32.mrf.mxu0
      %v4966 = vadd.f32 0.0, %v4965
      %v4967 = vpop.f32.mrf.mxu0
      %v4968 = vpop.f32.mrf.mxu0
      %v4969 = vadd.f32 0.0, %v4968
      %v4970 = vpop.f32.mrf.mxu0
      %4971 = vmatprep.mubr.bf16.mxu0 0
      %4972 = vmatmul.mubr.bf16.gmra.mxu0 %v4831
      %v4973 = vpop.f32.mrf.mxu0
      %v4974 = vadd.f32 0.0, %v4973
      %v4975 = vpop.f32.mrf.mxu0
      %v4976 = vpop.f32.mrf.mxu0
      %v4977 = vadd.f32 0.0, %v4976
      %v4978 = vpop.f32.mrf.mxu0
      %4979 = vmatprep.mubr.bf16.mxu0 0
      %4980 = vmatmul.mubr.bf16.gmra.mxu0 %v4833
      %v4981 = vpop.f32.mrf.mxu0
      %v4982 = vadd.f32 0.0, %v4981
      %v4983 = vpop.f32.mrf.mxu0
      %v4984 = vpop.f32.mrf.mxu0
      %v4985 = vadd.f32 0.0, %v4984
      %v4986 = vpop.f32.mrf.mxu0
      %4987 = vmatprep.mubr.bf16.mxu0 0
      %4988 = vmatmul.mubr.bf16.gmra.mxu0 %v4835
      %v4989 = vpop.f32.mrf.mxu0
      %v4990 = vadd.f32 0.0, %v4989
      %v4991 = vpop.f32.mrf.mxu0
      %v4992 = vpop.f32.mrf.mxu0
      %v4993 = vadd.f32 0.0, %v4992
      %v4994 = vpop.f32.mrf.mxu0
      %4995 = vmatprep.mubr.bf16.mxu0 0
      %4996 = vmatmul.mubr.bf16.gmra.mxu0 %v4837
      %v4997 = vpop.f32.mrf.mxu0
      %v4998 = vadd.f32 0.0, %v4997
      %v4999 = vpop.f32.mrf.mxu0
      %v5000 = vpop.f32.mrf.mxu0
      %v5001 = vadd.f32 0.0, %v5000
      %v5002 = vpop.f32.mrf.mxu0
      %5003 = vdwg.mxu0
      %v5005 = vlaneseq
      %v5006 = vshrl.u32 %v5005, 7
      %v5007 = vsub.s32 0, %v5006
      %v5008 = vrot.slane %v3483, %v5007
      %v5010 = vmul.f32 %v4878, %v5008
      %v5011 = vmul.f32 %v4881, %v5008
      %v5012 = vmul.f32 %v4886, %v5008
      %v5013 = vmul.f32 %v4889, %v5008
      %v5014 = vmul.f32 %v4894, %v5008
      %v5015 = vmul.f32 %v4897, %v5008
      %v5016 = vmul.f32 %v4902, %v5008
      %v5017 = vmul.f32 %v4905, %v5008
      %v5018 = vmul.f32 %v4910, %v5008
      %v5019 = vmul.f32 %v4913, %v5008
      %v5020 = vmul.f32 %v4918, %v5008
      %v5021 = vmul.f32 %v4921, %v5008
      %v5022 = vmul.f32 %v4926, %v5008
      %v5023 = vmul.f32 %v4929, %v5008
      %v5024 = vmul.f32 %v4934, %v5008
      %v5025 = vmul.f32 %v4937, %v5008
      %v5026 = vmul.f32 %v4942, %v5008
      %v5027 = vmul.f32 %v4945, %v5008
      %v5028 = vmul.f32 %v4950, %v5008
      %v5029 = vmul.f32 %v4953, %v5008
      %v5030 = vmul.f32 %v4958, %v5008
      %v5031 = vmul.f32 %v4961, %v5008
      %v5032 = vmul.f32 %v4966, %v5008
      %v5033 = vmul.f32 %v4969, %v5008
      %v5034 = vmul.f32 %v4974, %v5008
      %v5035 = vmul.f32 %v4977, %v5008
      %v5036 = vmul.f32 %v4982, %v5008
      %v5037 = vmul.f32 %v4985, %v5008
      %v5038 = vmul.f32 %v4990, %v5008
      %v5039 = vmul.f32 %v4993, %v5008
      %v5040 = vmul.f32 %v4998, %v5008
      %v5041 = vmul.f32 %v5001, %v5008
      %v5043 = vlaneseq
      %v5044 = vshrl.u32 %v5043, 7
      %v5045 = vsub.s32 0, %v5044
      %v5046 = vrot.slane %v3484, %v5045
      %v5048 = vadd.f32 %v5010, %v5046
      %v5049 = vadd.f32 %v5011, %v5046
      %v5050 = vadd.f32 %v5012, %v5046
      %v5051 = vadd.f32 %v5013, %v5046
      %v5052 = vadd.f32 %v5014, %v5046
      %v5053 = vadd.f32 %v5015, %v5046
      %v5054 = vadd.f32 %v5016, %v5046
      %v5055 = vadd.f32 %v5017, %v5046
      %v5056 = vadd.f32 %v5018, %v5046
      %v5057 = vadd.f32 %v5019, %v5046
      %v5058 = vadd.f32 %v5020, %v5046
      %v5059 = vadd.f32 %v5021, %v5046
      %v5060 = vadd.f32 %v5022, %v5046
      %v5061 = vadd.f32 %v5023, %v5046
      %v5062 = vadd.f32 %v5024, %v5046
      %v5063 = vadd.f32 %v5025, %v5046
      %v5064 = vadd.f32 %v5026, %v5046
      %v5065 = vadd.f32 %v5027, %v5046
      %v5066 = vadd.f32 %v5028, %v5046
      %v5067 = vadd.f32 %v5029, %v5046
      %v5068 = vadd.f32 %v5030, %v5046
      %v5069 = vadd.f32 %v5031, %v5046
      %v5070 = vadd.f32 %v5032, %v5046
      %v5071 = vadd.f32 %v5033, %v5046
      %v5072 = vadd.f32 %v5034, %v5046
      %v5073 = vadd.f32 %v5035, %v5046
      %v5074 = vadd.f32 %v5036, %v5046
      %v5075 = vadd.f32 %v5037, %v5046
      %v5076 = vadd.f32 %v5038, %v5046
      %v5077 = vadd.f32 %v5039, %v5046
      %v5078 = vadd.f32 %v5040, %v5046
      %v5079 = vadd.f32 %v5041, %v5046
      %v5080 = vmax.f32 %v5048, 0.0
      %v5081 = vmax.f32 %v5049, 0.0
      %v5082 = vmax.f32 %v5050, 0.0
      %v5083 = vmax.f32 %v5051, 0.0
      %v5084 = vmax.f32 %v5052, 0.0
      %v5085 = vmax.f32 %v5053, 0.0
      %v5086 = vmax.f32 %v5054, 0.0
      %v5087 = vmax.f32 %v5055, 0.0
      %v5088 = vmax.f32 %v5056, 0.0
      %v5089 = vmax.f32 %v5057, 0.0
      %v5090 = vmax.f32 %v5058, 0.0
      %v5091 = vmax.f32 %v5059, 0.0
      %v5092 = vmax.f32 %v5060, 0.0
      %v5093 = vmax.f32 %v5061, 0.0
      %v5094 = vmax.f32 %v5062, 0.0
      %v5095 = vmax.f32 %v5063, 0.0
      %v5096 = vmax.f32 %v5064, 0.0
      %v5097 = vmax.f32 %v5065, 0.0
      %v5098 = vmax.f32 %v5066, 0.0
      %v5099 = vmax.f32 %v5067, 0.0
      %v5100 = vmax.f32 %v5068, 0.0
      %v5101 = vmax.f32 %v5069, 0.0
      %v5102 = vmax.f32 %v5070, 0.0
      %v5103 = vmax.f32 %v5071, 0.0
      %v5104 = vmax.f32 %v5072, 0.0
      %v5105 = vmax.f32 %v5073, 0.0
      %v5106 = vmax.f32 %v5074, 0.0
      %v5107 = vmax.f32 %v5075, 0.0
      %v5108 = vmax.f32 %v5076, 0.0
      %v5109 = vmax.f32 %v5077, 0.0
      %v5110 = vmax.f32 %v5078, 0.0
      %v5111 = vmax.f32 %v5079, 0.0
      %5112 = vst.msk [vmem:[%s403] sm:$0xff] %vm4515, %v5080
      %5113 = vst.msk [vmem:[%s403 + $0x8] sm:$0xff] %vm4515, %v5081
      %5114 = vst.msk [vmem:[%s403 + $0x10] sm:$0xff] %vm4515, %v5082
      %5115 = vst.msk [vmem:[%s403 + $0x18] sm:$0xff] %vm4515, %v5083
      %5116 = vst.msk [vmem:[%s403 + $0x20] sm:$0xff] %vm4515, %v5084
      %5117 = vst.msk [vmem:[%s403 + $0x28] sm:$0xff] %vm4515, %v5085
      %5118 = vst.msk [vmem:[%s403 + $0x30] sm:$0xff] %vm4515, %v5086
      %5119 = vst.msk [vmem:[%s403 + $0x38] sm:$0xff] %vm4515, %v5087
      %5120 = vst.msk [vmem:[%s403 + $0x40] sm:$0xff] %vm4515, %v5088
      %5121 = vst.msk [vmem:[%s403 + $0x48] sm:$0xff] %vm4515, %v5089
      %5122 = vst.msk [vmem:[%s403 + $0x50] sm:$0xff] %vm4515, %v5090
      %5123 = vst.msk [vmem:[%s403 + $0x58] sm:$0xff] %vm4515, %v5091
      %5124 = vst.msk [vmem:[%s403 + $0x60] sm:$0xff] %vm4515, %v5092
      %5125 = vst.msk [vmem:[%s403 + $0x68] sm:$0xff] %vm4515, %v5093
      %5126 = vst.msk [vmem:[%s403 + $0x70] sm:$0xff] %vm4515, %v5094
      %5127 = vst.msk [vmem:[%s403 + $0x78] sm:$0xff] %vm4515, %v5095
      %5128 = vst.msk [vmem:[%s403 + $0x80] sm:$0xff] %vm4515, %v5096
      %5129 = vst.msk [vmem:[%s403 + $0x88] sm:$0xff] %vm4515, %v5097
      %5130 = vst.msk [vmem:[%s403 + $0x90] sm:$0xff] %vm4515, %v5098
      %5131 = vst.msk [vmem:[%s403 + $0x98] sm:$0xff] %vm4515, %v5099
      %5132 = vst.msk [vmem:[%s403 + $0xa0] sm:$0xff] %vm4515, %v5100
      %5133 = vst.msk [vmem:[%s403 + $0xa8] sm:$0xff] %vm4515, %v5101
      %5134 = vst.msk [vmem:[%s403 + $0xb0] sm:$0xff] %vm4515, %v5102
      %5135 = vst.msk [vmem:[%s403 + $0xb8] sm:$0xff] %vm4515, %v5103
      %5136 = vst.msk [vmem:[%s403 + $0xc0] sm:$0xff] %vm4515, %v5104
      %5137 = vst.msk [vmem:[%s403 + $0xc8] sm:$0xff] %vm4515, %v5105
      %5138 = vst.msk [vmem:[%s403 + $0xd0] sm:$0xff] %vm4515, %v5106
      %5139 = vst.msk [vmem:[%s403 + $0xd8] sm:$0xff] %vm4515, %v5107
      %5140 = vst.msk [vmem:[%s403 + $0xe0] sm:$0xff] %vm4515, %v5108
      %5141 = vst.msk [vmem:[%s403 + $0xe8] sm:$0xff] %vm4515, %v5109
      %5142 = vst.msk [vmem:[%s403 + $0xf0] sm:$0xff] %vm4515, %v5110
      %5143 = vst.msk [vmem:[%s403 + $0xf8] sm:$0xff] %vm4515, %v5111
      %s5144 = smul.u32 16, %s26
      %p5145 = scmp.lt.s32.totalorder %s25, 1
      %s5146 = scalar_select %p5145, %s25, 1
      %p5147 = scmp.lt.s32.totalorder %s5144, 15
      %s5148 = scalar_select %p5147, %s5144, 15
      %s5149 = smul.addr %s5148, 2
      %s5150 = smul.addr %s5146, 32
      %s5151 = sadd.s32 %s5149, %s5150
      %s5152 = smul.addr %s5151, 8
      %s5153 = scalar_lea.vmem %s10, %s5152
      // Predicated region
      $region76: #{up_forward.1} parent=59 // pred_check
        %p5154 = pneg %p273
      $region77: #{up_forward.1} parent=59 // pred_check_branch
        %5156 = sbr.rel (%p5154) target = $region79
      $region78: #{up_forward.1} parent=59 // pred_region
        %s5157 = smul.u32 16, %s26
      $region79: #{up_forward.1} parent=59 // pred_fallthru
        _
    $region60: #{up_forward.1} parent=5 // pred_fallthru
      _
    %p5158 = scmp.le.s32.totalorder 2, %s16
    // Predicated region
    $region80: #{up_forward.1} parent=5 // pred_check
      %p5159 = pneg %p5158
    $region81: #{up_forward.1} parent=5 // pred_check_branch
      %5161 = sbr.rel (%p5159) target = $region83
    $region82: #{up_forward.1} parent=5 // pred_region
      %s5162 = ssub.s32 %s16, 2
      // Predicated region
      $region84: #{up_forward.1} parent=82 // pred_check
        %p5163 = pneg %p279
      $region85: #{up_forward.1} parent=82 // pred_check_branch
        %5165 = sbr.rel (%p5163) target = $region87
      $region86: #{up_forward.1} parent=82 // pred_region
        %s5166 = smul.u32 16, %s28
        %p5167 = scmp.lt.s32.totalorder %s27, 1
        %s5168 = scalar_select %p5167, %s27, 1
        %p5169 = scmp.lt.s32.totalorder %s5166, 15
        %s5170 = scalar_select %p5169, %s5166, 15
        %s5171 = smul.addr %s5170, 2
        %s5172 = smul.addr %s5168, 32
        %s5173 = sadd.s32 %s5171, %s5172
        %s5174 = smul.addr %s5173, 8
        %s5175 = scalar_lea.vmem %s10, %s5174
      $region87: #{up_forward.1} parent=82 // pred_fallthru
        _
    $region83: #{up_forward.1} parent=5 // pred_fallthru
      _
  $region6: #{up_forward.1} parent=0 // loop_footer
    %s20 = sadd.s32 1, %s16
  $region7: #{up_forward.1} parent=0 // loop_footer_branch
    %15 = sbr.rel target = $region3
  $region8: #{up_forward.1} parent=0 // loop_exit
    _

</llo_original>
